<compile_context>
chip_gen: v7x
topology: tpu7x:2x2x1
jax: 0.10.0
libtpu: 0.0.40
codegen_flags: <defaults>
</compile_context>

<pallas_src>
import functools

import jax
import jax.numpy as jnp
from jax.experimental import pallas as pl
from jax.experimental.pallas import tpu as pltpu


# ----------------------------------------------------------------------------
# Pallas kernels
# ----------------------------------------------------------------------------
def _conv1_pool_kernel(cols_ref, w_ref, s1_ref, t1_ref, s2_ref, t2_ref, o_ref):
    """Fused Conv1(3x3) + BN1 + ReLU + MaxPool(2x2) + BN2 for one M-tile.

    cols_ref: (4, 27, TM) bf16 -- the 4 pool-phase im2col slabs (phase-major).
    w_ref:    (10, 27)    bf16
    s*/t*:    (10, 1)     f32  -- folded BN affines
    o_ref:    (10, TM)         -- lane-dense (M on lanes)
    """
    w = w_ref[...]
    s1 = s1_ref[...]
    t1 = t1_ref[...]

    def conv_phase(p):
        acc = jnp.dot(w, cols_ref[p], preferred_element_type=jnp.float32)  # (10, TM)
        return jnp.maximum(acc * s1 + t1, 0.0)            # BN1 affine + ReLU

    m = jnp.maximum(jnp.maximum(conv_phase(0), conv_phase(1)),
                    jnp.maximum(conv_phase(2), conv_phase(3)))  # 2x2 max-pool
    o_ref[...] = (m * s2_ref[...] + t2_ref[...]).astype(o_ref.dtype)       # BN2


def _gemm_tn_bias_kernel(w_ref, x_ref, bias_ref, o_ref, *, relu):
    """out(N, TM) = act(w(N,K) @ x(K,TM) + bias); large M on lanes."""
    acc = jnp.dot(w_ref[...], x_ref[...], preferred_element_type=jnp.float32)
    acc = acc + bias_ref[...]
    if relu:
        acc = jnp.maximum(acc, 0.0)
    o_ref[...] = acc.astype(o_ref.dtype)


def _gemm_bias_kernel(x_ref, w_ref, b_ref, o_ref):
    """out(M, TN) = x(M,K) @ w(K,TN) + b; tiny M (= batch), N tiled on lanes."""
    acc = jnp.dot(x_ref[...], w_ref[...], preferred_element_type=jnp.float32)
    o_ref[...] = (acc + b_ref[...]).astype(o_ref.dtype)


# ----------------------------------------------------------------------------
# Pallas wrappers
# ----------------------------------------------------------------------------
def conv1_bn_relu_pool_bn(cols, w1mat, s1, t1, s2, t2, *, tm=1024):
    """cols: (4, 27, M) bf16, w1mat: (10, 27) bf16 -> (10, M) bf16 (pooled+BN2)."""
    _, K, M = cols.shape
    N = w1mat.shape[0]
    tm = min(tm, M)
    return pl.pallas_call(
        _conv1_pool_kernel,
        out_shape=jax.ShapeDtypeStruct((N, M), jnp.bfloat16),
        grid=(pl.cdiv(M, tm),),
        in_specs=[
            pl.BlockSpec((4, K, tm), lambda j: (0, 0, j)),
            pl.BlockSpec((N, K), lambda j: (0, 0)),
            pl.BlockSpec((N, 1), lambda j: (0, 0)),
            pl.BlockSpec((N, 1), lambda j: (0, 0)),
            pl.BlockSpec((N, 1), lambda j: (0, 0)),
            pl.BlockSpec((N, 1), lambda j: (0, 0)),
        ],
        out_specs=pl.BlockSpec((N, tm), lambda j: (0, j)),
        compiler_params=pltpu.CompilerParams(dimension_semantics=("parallel",)),
    )(cols, w1mat, s1, t1, s2, t2)


def gemm_tn_bias(w, x, bias, *, relu, tm=256, out_dtype=jnp.bfloat16):
    """out(N, M) = act(w(N,K) @ x(K,M) + bias); no padding, M tiled on lanes."""
    N, K = w.shape
    M = x.shape[1]
    tm = min(tm, M)
    return pl.pallas_call(
        functools.partial(_gemm_tn_bias_kernel, relu=relu),
        out_shape=jax.ShapeDtypeStruct((N, M), out_dtype),
        grid=(pl.cdiv(M, tm),),
        in_specs=[
            pl.BlockSpec((N, K), lambda j: (0, 0)),
            pl.BlockSpec((K, tm), lambda j: (0, j)),
            pl.BlockSpec((N, 1), lambda j: (0, 0)),
        ],
        out_specs=pl.BlockSpec((N, tm), lambda j: (0, j)),
        compiler_params=pltpu.CompilerParams(dimension_semantics=("parallel",)),
    )(w, x, bias)


def linear_bias(x, w, b, *, tn=128):
    """out(M, N) = x(M,K) @ w(K,N) + b(1,N); N tiled (>=2 parallel steps)."""
    M, K = x.shape
    N = w.shape[1]
    tn = min(tn, N)
    return pl.pallas_call(
        _gemm_bias_kernel,
        out_shape=jax.ShapeDtypeStruct((M, N), jnp.float32),
        grid=(pl.cdiv(N, tn),),
        in_specs=[
            pl.BlockSpec((M, K), lambda j: (0, 0)),
            pl.BlockSpec((K, tn), lambda j: (0, j)),
            pl.BlockSpec((1, tn), lambda j: (0, j)),
        ],
        out_specs=pl.BlockSpec((M, tn), lambda j: (0, j)),
        compiler_params=pltpu.CompilerParams(dimension_semantics=("parallel",)),
    )(x, w, b)


# ----------------------------------------------------------------------------
# im2col glue (pure data rearrangement; XLA fuses the slices + stack)
# ----------------------------------------------------------------------------
def _pooled_im2col_conv1(xc):
    """xc: (3, B, 64, 64) -> (4, 27, B*31*31), phase-major; tap order (kh,kw,ci),
    column order (b, oh, ow) of the POOLED output grid."""
    C, B, _, _ = xc.shape
    OH = OW = 31
    phases = []
    for ph in range(2):
        for pw in range(2):
            taps = [xc[:, :, ph + kh: ph + kh + 2 * OH - 1: 2,
                         pw + kw: pw + kw + 2 * OW - 1: 2]        # (3, B, 31, 31)
                    for kh in range(3) for kw in range(3)]
            phases.append(jnp.stack(taps, axis=0))                # (9, 3, B, 31, 31)
    cols = jnp.stack(phases, axis=0)                              # (4, 9, 3, B, 31, 31)
    return cols.reshape(4, 9 * C, B * OH * OW)


def _im2col_t(a, kh, kw, stride):
    """a: (C, B, H, W) -> (kh*kw*C, B*OH*OW); K order (kh, kw, ci), cols (b, oh, ow)."""
    C, B, H, W = a.shape
    OH = (H - kh) // stride + 1
    OW = (W - kw) // stride + 1
    taps = [a[:, :, i: i + stride * (OH - 1) + 1: stride,
                j: j + stride * (OW - 1) + 1: stride]             # (C, B, OH, OW)
            for i in range(kh) for j in range(kw)]
    return jnp.stack(taps, axis=0).reshape(kh * kw * C, B * OH * OW)


# ----------------------------------------------------------------------------
# Full forward pass (matches torch ImageEmbedding.forward, eval-mode BN)
# ----------------------------------------------------------------------------
def image_embedding_forward(x_nchw, p):
    eps = 1e-5
    B = x_nchw.shape[0]
    cdt = jnp.bfloat16
    f32 = jnp.float32

    # --- Conv2d(3,10,3x3,s1) + BN1 + ReLU + MaxPool(2,2,s2) + BN2 : one kernel ---
    xc = jnp.transpose(x_nchw, (1, 0, 2, 3)).astype(cdt)            # (3, B, 64, 64)
    cols1 = _pooled_im2col_conv1(xc)                                # (4, 27, B*961)
    w1 = jnp.transpose(p["conv1_w"], (3, 0, 1, 2)).reshape(10, 27).astype(cdt)
    s1 = p["bn1_gamma"] / jnp.sqrt(p["bn1_var"] + eps)
    t1 = (p["conv1_b"] - p["bn1_mean"]) * s1 + p["bn1_beta"]
    s2 = p["bn2_gamma"] / jnp.sqrt(p["bn2_var"] + eps)
    t2 = p["bn2_beta"] - p["bn2_mean"] * s2
    a1 = conv1_bn_relu_pool_bn(
        cols1, w1,
        s1.reshape(10, 1).astype(f32), t1.reshape(10, 1).astype(f32),
        s2.reshape(10, 1).astype(f32), t2.reshape(10, 1).astype(f32),
        tm=1024)                                                    # (10, B*961) bf16

    # --- Conv2d(10,4,5x5,s2) + ReLU ---
    cols2 = _im2col_t(a1.reshape(10, B, 31, 31), 5, 5, 2)           # (250, B*196)
    w2 = jnp.transpose(p["conv2_w"], (3, 0, 1, 2)).reshape(4, 250).astype(cdt)
    a2 = gemm_tn_bias(w2, cols2, p["conv2_b"].reshape(4, 1).astype(f32),
                      relu=True, tm=256)                            # (4, B*196) bf16

    # --- Conv2d(4,4,7x7,s1) ---
    cols3 = _im2col_t(a2.reshape(4, B, 14, 14), 7, 7, 1)            # (196, B*64)
    w3 = jnp.transpose(p["conv3_w"], (3, 0, 1, 2)).reshape(4, 196).astype(cdt)
    a3 = gemm_tn_bias(w3, cols3, p["conv3_b"].reshape(4, 1).astype(f32),
                      relu=False, tm=256)                           # (4, B*64) bf16

    # --- Flatten (NCHW order: c, h, w) + Linear(256, 256) ---
    flat = jnp.transpose(a3.reshape(4, B, 8, 8), (1, 0, 2, 3)).reshape(B, 256)
    out = linear_bias(flat.astype(cdt), p["fc_w"].astype(cdt),
                      p["fc_b"].reshape(1, 256).astype(f32), tn=128)  # (B, 256) f32
    return out


# ----------------------------------------------------------------------------
# Deterministic parameter init (shapes from the torch module __init__)
# ----------------------------------------------------------------------------
def init_params(key):
    ks = jax.random.split(key, 16)
    nrm = lambda k, shape, s=0.1: s * jax.random.normal(k, shape, jnp.float32)
    return {
        # conv weights stored as (KH, KW, Cin, Cout) == torch (Cout,Cin,KH,KW).permute(2,3,1,0)
        "conv1_w": nrm(ks[0], (3, 3, 3, 10)),
        "conv1_b": nrm(ks[1], (10,)),
        "bn1_gamma": 1.0 + nrm(ks[2], (10,)),
        "bn1_beta": nrm(ks[3], (10,)),
        "bn1_mean": nrm(ks[4], (10,)),
        "bn1_var": 1.0 + jnp.abs(nrm(ks[5], (10,))),
        "bn2_gamma": 1.0 + nrm(ks[6], (10,)),
        "bn2_beta": nrm(ks[7], (10,)),
        "bn2_mean": nrm(ks[8], (10,)),
        "bn2_var": 1.0 + jnp.abs(nrm(ks[9], (10,))),
        "conv2_w": nrm(ks[10], (5, 5, 10, 4)),
        "conv2_b": nrm(ks[11], (4,)),
        "conv3_w": nrm(ks[12], (7, 7, 4, 4)),
        "conv3_b": nrm(ks[13], (4,)),
        # linear stored as (in, out) == torch weight (out, in) transposed
        "fc_w": nrm(ks[14], (256, 256)),
        "fc_b": nrm(ks[15], (256,)),
    }


if __name__ == "__main__":
    key = jax.random.PRNGKey(0)
    pkey, xkey = jax.random.split(key)
    params = init_params(pkey)
    # Linear(256,256) after the conv stack implies 3x64x64 inputs; batch=2.
    x = jax.random.normal(xkey, (2, 3, 64, 64), jnp.float32)

    out = jax.jit(image_embedding_forward)(x, params)
    jax.block_until_ready(out)
    assert out.shape == (2, 256), out.shape
    assert bool(jnp.all(jnp.isfinite(out)))
    print("KERNEL_OK")
</pallas_src>

<mosaic_0001>
module attributes {stable_mosaic.version = 11 : i64} {
  func.func @_conv1_pool_kernel(%arg0: i32, %arg1: memref<4x27x1024xbf16, #tpu.memory_space<vmem>>, %arg2: memref<10x27xbf16, #tpu.memory_space<vmem>>, %arg3: memref<10x1xf32, #tpu.memory_space<vmem>>, %arg4: memref<10x1xf32, #tpu.memory_space<vmem>>, %arg5: memref<10x1xf32, #tpu.memory_space<vmem>>, %arg6: memref<10x1xf32, #tpu.memory_space<vmem>>, %arg7: memref<10x1024xbf16, #tpu.memory_space<vmem>>) attributes {dimension_semantics = [#tpu.dimension_semantics<parallel>], iteration_bounds = array<i64: 2>, scalar_prefetch = 0 : i64, scratch_operands = 0 : i64, tpu.core_type = #tpu.core_type<tc>, window_params = [{transform_indices = @transform_0, window_bounds = array<i64: 4, 27, 1024>}, {pipeline_mode = #tpu.pipeline_mode<synchronous>, transform_indices = @transform_1, window_bounds = array<i64: 10, 27>}, {pipeline_mode = #tpu.pipeline_mode<synchronous>, transform_indices = @transform_2, window_bounds = array<i64: 10, 1>}, {pipeline_mode = #tpu.pipeline_mode<synchronous>, transform_indices = @transform_3, window_bounds = array<i64: 10, 1>}, {pipeline_mode = #tpu.pipeline_mode<synchronous>, transform_indices = @transform_4, window_bounds = array<i64: 10, 1>}, {pipeline_mode = #tpu.pipeline_mode<synchronous>, transform_indices = @transform_5, window_bounds = array<i64: 10, 1>}, {transform_indices = @transform_6, window_bounds = array<i64: 10, 1024>}]} {
    %c0 = arith.constant 0 : index
    %c0_0 = arith.constant 0 : index
    %0 = vector.load %arg2[%c0, %c0_0] : memref<10x27xbf16, #tpu.memory_space<vmem>>, vector<10x27xbf16>
    %c0_1 = arith.constant 0 : index
    %c0_2 = arith.constant 0 : index
    %1 = vector.load %arg3[%c0_1, %c0_2] : memref<10x1xf32, #tpu.memory_space<vmem>>, vector<10x1xf32>
    %c0_3 = arith.constant 0 : index
    %c0_4 = arith.constant 0 : index
    %2 = vector.load %arg4[%c0_3, %c0_4] : memref<10x1xf32, #tpu.memory_space<vmem>>, vector<10x1xf32>
    %c0_5 = arith.constant 0 : index
    %c0_6 = arith.constant 0 : index
    %c0_7 = arith.constant 0 : index
    %3 = vector.load %arg1[%c0_5, %c0_6, %c0_7] : memref<4x27x1024xbf16, #tpu.memory_space<vmem>>, vector<1x27x1024xbf16>
    %4 = vector.shape_cast %3 : vector<1x27x1024xbf16> to vector<27x1024xbf16>
    %cst = arith.constant dense<0.000000e+00> : vector<10x1024xf32>
    %5 = tpu.matmul %0, %4, %cst {dimension_numbers = #tpu.dot_dimension_numbers<[1], [0], [0], [1], [0, 0, 1, 1], [], []>} : vector<10x27xbf16>, vector<27x1024xbf16>, vector<10x1024xf32> -> vector<10x1024xf32>
    %6 = vector.broadcast %1 : vector<10x1xf32> to vector<10x1024xf32>
    %7 = arith.mulf %5, %6 : vector<10x1024xf32>
    %8 = vector.broadcast %2 : vector<10x1xf32> to vector<10x1024xf32>
    %9 = arith.addf %7, %8 : vector<10x1024xf32>
    %cst_8 = arith.constant 0.000000e+00 : f32
    %10 = vector.broadcast %cst_8 : f32 to vector<10x1024xf32>
    %11 = arith.maximumf %9, %10 : vector<10x1024xf32>
    %c1 = arith.constant 1 : index
    %c0_9 = arith.constant 0 : index
    %c0_10 = arith.constant 0 : index
    %12 = vector.load %arg1[%c1, %c0_9, %c0_10] : memref<4x27x1024xbf16, #tpu.memory_space<vmem>>, vector<1x27x1024xbf16>
    %13 = vector.shape_cast %12 : vector<1x27x1024xbf16> to vector<27x1024xbf16>
    %cst_11 = arith.constant dense<0.000000e+00> : vector<10x1024xf32>
    %14 = tpu.matmul %0, %13, %cst_11 {dimension_numbers = #tpu.dot_dimension_numbers<[1], [0], [0], [1], [0, 0, 1, 1], [], []>} : vector<10x27xbf16>, vector<27x1024xbf16>, vector<10x1024xf32> -> vector<10x1024xf32>
    %15 = vector.broadcast %1 : vector<10x1xf32> to vector<10x1024xf32>
    %16 = arith.mulf %14, %15 : vector<10x1024xf32>
    %17 = vector.broadcast %2 : vector<10x1xf32> to vector<10x1024xf32>
    %18 = arith.addf %16, %17 : vector<10x1024xf32>
    %cst_12 = arith.constant 0.000000e+00 : f32
    %19 = vector.broadcast %cst_12 : f32 to vector<10x1024xf32>
    %20 = arith.maximumf %18, %19 : vector<10x1024xf32>
    %21 = arith.maximumf %11, %20 : vector<10x1024xf32>
    %c2 = arith.constant 2 : index
    %c0_13 = arith.constant 0 : index
    %c0_14 = arith.constant 0 : index
    %22 = vector.load %arg1[%c2, %c0_13, %c0_14] : memref<4x27x1024xbf16, #tpu.memory_space<vmem>>, vector<1x27x1024xbf16>
    %23 = vector.shape_cast %22 : vector<1x27x1024xbf16> to vector<27x1024xbf16>
    %cst_15 = arith.constant dense<0.000000e+00> : vector<10x1024xf32>
    %24 = tpu.matmul %0, %23, %cst_15 {dimension_numbers = #tpu.dot_dimension_numbers<[1], [0], [0], [1], [0, 0, 1, 1], [], []>} : vector<10x27xbf16>, vector<27x1024xbf16>, vector<10x1024xf32> -> vector<10x1024xf32>
    %25 = vector.broadcast %1 : vector<10x1xf32> to vector<10x1024xf32>
    %26 = arith.mulf %24, %25 : vector<10x1024xf32>
    %27 = vector.broadcast %2 : vector<10x1xf32> to vector<10x1024xf32>
    %28 = arith.addf %26, %27 : vector<10x1024xf32>
    %cst_16 = arith.constant 0.000000e+00 : f32
    %29 = vector.broadcast %cst_16 : f32 to vector<10x1024xf32>
    %30 = arith.maximumf %28, %29 : vector<10x1024xf32>
    %c3 = arith.constant 3 : index
    %c0_17 = arith.constant 0 : index
    %c0_18 = arith.constant 0 : index
    %31 = vector.load %arg1[%c3, %c0_17, %c0_18] : memref<4x27x1024xbf16, #tpu.memory_space<vmem>>, vector<1x27x1024xbf16>
    %32 = vector.shape_cast %31 : vector<1x27x1024xbf16> to vector<27x1024xbf16>
    %cst_19 = arith.constant dense<0.000000e+00> : vector<10x1024xf32>
    %33 = tpu.matmul %0, %32, %cst_19 {dimension_numbers = #tpu.dot_dimension_numbers<[1], [0], [0], [1], [0, 0, 1, 1], [], []>} : vector<10x27xbf16>, vector<27x1024xbf16>, vector<10x1024xf32> -> vector<10x1024xf32>
    %34 = vector.broadcast %1 : vector<10x1xf32> to vector<10x1024xf32>
    %35 = arith.mulf %33, %34 : vector<10x1024xf32>
    %36 = vector.broadcast %2 : vector<10x1xf32> to vector<10x1024xf32>
    %37 = arith.addf %35, %36 : vector<10x1024xf32>
    %cst_20 = arith.constant 0.000000e+00 : f32
    %38 = vector.broadcast %cst_20 : f32 to vector<10x1024xf32>
    %39 = arith.maximumf %37, %38 : vector<10x1024xf32>
    %40 = arith.maximumf %30, %39 : vector<10x1024xf32>
    %41 = arith.maximumf %21, %40 : vector<10x1024xf32>
    %c0_21 = arith.constant 0 : index
    %c0_22 = arith.constant 0 : index
    %42 = vector.load %arg5[%c0_21, %c0_22] : memref<10x1xf32, #tpu.memory_space<vmem>>, vector<10x1xf32>
    %43 = vector.broadcast %42 : vector<10x1xf32> to vector<10x1024xf32>
    %44 = arith.mulf %41, %43 : vector<10x1024xf32>
    %c0_23 = arith.constant 0 : index
    %c0_24 = arith.constant 0 : index
    %45 = vector.load %arg6[%c0_23, %c0_24] : memref<10x1xf32, #tpu.memory_space<vmem>>, vector<10x1xf32>
    %46 = vector.broadcast %45 : vector<10x1xf32> to vector<10x1024xf32>
    %47 = arith.addf %44, %46 : vector<10x1024xf32>
    %48 = arith.truncf %47 : vector<10x1024xf32> to vector<10x1024xbf16>
    %c0_25 = arith.constant 0 : index
    %c0_26 = arith.constant 0 : index
    %49 = vector.load %arg7[%c0_25, %c0_26] : memref<10x1024xbf16, #tpu.memory_space<vmem>>, vector<10x1024xbf16>
    tpu.vector_store %arg7[%c0_25, %c0_26], %48 {strides = array<i32>} : memref<10x1024xbf16, #tpu.memory_space<vmem>>, vector<10x1024xbf16>,
    return
  }
  func.func @transform_0(%arg0: i32) -> (i32, i32, i32) {
    %c0_i32 = arith.constant 0 : i32
    %c0_i32_0 = arith.constant 0 : i32
    %c0_i32_1 = arith.constant 0 : i32
    return %c0_i32, %c0_i32_0, %arg0 : i32, i32, i32
  }
  func.func @transform_1(%arg0: i32) -> (i32, i32) {
    %c0_i32 = arith.constant 0 : i32
    %c0_i32_0 = arith.constant 0 : i32
    %c0_i32_1 = arith.constant 0 : i32
    return %c0_i32, %c0_i32_0 : i32, i32
  }
  func.func @transform_2(%arg0: i32) -> (i32, i32) {
    %c0_i32 = arith.constant 0 : i32
    %c0_i32_0 = arith.constant 0 : i32
    %c0_i32_1 = arith.constant 0 : i32
    return %c0_i32, %c0_i32_0 : i32, i32
  }
  func.func @transform_3(%arg0: i32) -> (i32, i32) {
    %c0_i32 = arith.constant 0 : i32
    %c0_i32_0 = arith.constant 0 : i32
    %c0_i32_1 = arith.constant 0 : i32
    return %c0_i32, %c0_i32_0 : i32, i32
  }
  func.func @transform_4(%arg0: i32) -> (i32, i32) {
    %c0_i32 = arith.constant 0 : i32
    %c0_i32_0 = arith.constant 0 : i32
    %c0_i32_1 = arith.constant 0 : i32
    return %c0_i32, %c0_i32_0 : i32, i32
  }
  func.func @transform_5(%arg0: i32) -> (i32, i32) {
    %c0_i32 = arith.constant 0 : i32
    %c0_i32_0 = arith.constant 0 : i32
    %c0_i32_1 = arith.constant 0 : i32
    return %c0_i32, %c0_i32_0 : i32, i32
  }
  func.func @transform_6(%arg0: i32) -> (i32, i32) {
    %c0_i32 = arith.constant 0 : i32
    %c0_i32_0 = arith.constant 0 : i32
    return %c0_i32, %arg0 : i32, i32
  }
}

module attributes {stable_mosaic.version = 11 : i64} {
  func.func @_gemm_tn_bias_kernel(%arg0: i32, %arg1: memref<4x250xbf16, #tpu.memory_space<vmem>>, %arg2: memref<250x256xbf16, #tpu.memory_space<vmem>>, %arg3: memref<4x1xf32, #tpu.memory_space<vmem>>, %arg4: memref<4x256xbf16, #tpu.memory_space<vmem>>) attributes {dimension_semantics = [#tpu.dimension_semantics<parallel>], iteration_bounds = array<i64: 2>, scalar_prefetch = 0 : i64, scratch_operands = 0 : i64, tpu.core_type = #tpu.core_type<tc>, window_params = [{pipeline_mode = #tpu.pipeline_mode<synchronous>, transform_indices = @transform_0, window_bounds = array<i64: 4, 250>}, {transform_indices = @transform_1, window_bounds = array<i64: 250, 256>}, {pipeline_mode = #tpu.pipeline_mode<synchronous>, transform_indices = @transform_2, window_bounds = array<i64: 4, 1>}, {transform_indices = @transform_3, window_bounds = array<i64: 4, 256>}]} {
    %c0 = arith.constant 0 : index
    %c0_0 = arith.constant 0 : index
    %0 = vector.load %arg1[%c0, %c0_0] : memref<4x250xbf16, #tpu.memory_space<vmem>>, vector<4x250xbf16>
    %c0_1 = arith.constant 0 : index
    %c0_2 = arith.constant 0 : index
    %1 = vector.load %arg2[%c0_1, %c0_2] : memref<250x256xbf16, #tpu.memory_space<vmem>>, vector<250x256xbf16>
    %cst = arith.constant dense<0.000000e+00> : vector<4x256xf32>
    %2 = tpu.matmul %0, %1, %cst {dimension_numbers = #tpu.dot_dimension_numbers<[1], [0], [0], [1], [0, 0, 1, 1], [], []>} : vector<4x250xbf16>, vector<250x256xbf16>, vector<4x256xf32> -> vector<4x256xf32>
    %c0_3 = arith.constant 0 : index
    %c0_4 = arith.constant 0 : index
    %3 = vector.load %arg3[%c0_3, %c0_4] : memref<4x1xf32, #tpu.memory_space<vmem>>, vector<4x1xf32>
    %4 = vector.broadcast %3 : vector<4x1xf32> to vector<4x256xf32>
    %5 = arith.addf %2, %4 : vector<4x256xf32>
    %cst_5 = arith.constant 0.000000e+00 : f32
    %6 = vector.broadcast %cst_5 : f32 to vector<4x256xf32>
    %7 = arith.maximumf %5, %6 : vector<4x256xf32>
    %8 = arith.truncf %7 : vector<4x256xf32> to vector<4x256xbf16>
    %c0_6 = arith.constant 0 : index
    %c0_7 = arith.constant 0 : index
    %9 = vector.load %arg4[%c0_6, %c0_7] : memref<4x256xbf16, #tpu.memory_space<vmem>>, vector<4x256xbf16>
    tpu.vector_store %arg4[%c0_6, %c0_7], %8 {strides = array<i32>} : memref<4x256xbf16, #tpu.memory_space<vmem>>, vector<4x256xbf16>,
    return
  }
  func.func @transform_0(%arg0: i32) -> (i32, i32) {
    %c0_i32 = arith.constant 0 : i32
    %c0_i32_0 = arith.constant 0 : i32
    %c0_i32_1 = arith.constant 0 : i32
    return %c0_i32, %c0_i32_0 : i32, i32
  }
  func.func @transform_1(%arg0: i32) -> (i32, i32) {
    %c0_i32 = arith.constant 0 : i32
    %c0_i32_0 = arith.constant 0 : i32
    return %c0_i32, %arg0 : i32, i32
  }
  func.func @transform_2(%arg0: i32) -> (i32, i32) {
    %c0_i32 = arith.constant 0 : i32
    %c0_i32_0 = arith.constant 0 : i32
    %c0_i32_1 = arith.constant 0 : i32
    return %c0_i32, %c0_i32_0 : i32, i32
  }
  func.func @transform_3(%arg0: i32) -> (i32, i32) {
    %c0_i32 = arith.constant 0 : i32
    %c0_i32_0 = arith.constant 0 : i32
    return %c0_i32, %arg0 : i32, i32
  }
}

module attributes {stable_mosaic.version = 11 : i64} {
  func.func @_gemm_tn_bias_kernel(%arg0: i32, %arg1: memref<4x196xbf16, #tpu.memory_space<vmem>>, %arg2: memref<196x128xbf16, #tpu.memory_space<vmem>>, %arg3: memref<4x1xf32, #tpu.memory_space<vmem>>, %arg4: memref<4x128xbf16, #tpu.memory_space<vmem>>) attributes {dimension_semantics = [#tpu.dimension_semantics<parallel>], iteration_bounds = array<i64: 1>, scalar_prefetch = 0 : i64, scratch_operands = 0 : i64, tpu.core_type = #tpu.core_type<tc>, window_params = [{pipeline_mode = #tpu.pipeline_mode<synchronous>, transform_indices = @transform_0, window_bounds = array<i64: 4, 196>}, {transform_indices = @transform_1, window_bounds = array<i64: 196, 128>}, {pipeline_mode = #tpu.pipeline_mode<synchronous>, transform_indices = @transform_2, window_bounds = array<i64: 4, 1>}, {transform_indices = @transform_3, window_bounds = array<i64: 4, 128>}]} {
    %c0 = arith.constant 0 : index
    %c0_0 = arith.constant 0 : index
    %0 = vector.load %arg1[%c0, %c0_0] : memref<4x196xbf16, #tpu.memory_space<vmem>>, vector<4x196xbf16>
    %c0_1 = arith.constant 0 : index
    %c0_2 = arith.constant 0 : index
    %1 = vector.load %arg2[%c0_1, %c0_2] : memref<196x128xbf16, #tpu.memory_space<vmem>>, vector<196x128xbf16>
    %cst = arith.constant dense<0.000000e+00> : vector<4x128xf32>
    %2 = tpu.matmul %0, %1, %cst {dimension_numbers = #tpu.dot_dimension_numbers<[1], [0], [0], [1], [0, 0, 1, 1], [], []>} : vector<4x196xbf16>, vector<196x128xbf16>, vector<4x128xf32> -> vector<4x128xf32>
    %c0_3 = arith.constant 0 : index
    %c0_4 = arith.constant 0 : index
    %3 = vector.load %arg3[%c0_3, %c0_4] : memref<4x1xf32, #tpu.memory_space<vmem>>, vector<4x1xf32>
    %4 = vector.broadcast %3 : vector<4x1xf32> to vector<4x128xf32>
    %5 = arith.addf %2, %4 : vector<4x128xf32>
    %6 = arith.truncf %5 : vector<4x128xf32> to vector<4x128xbf16>
    %c0_5 = arith.constant 0 : index
    %c0_6 = arith.constant 0 : index
    %7 = vector.load %arg4[%c0_5, %c0_6] : memref<4x128xbf16, #tpu.memory_space<vmem>>, vector<4x128xbf16>
    tpu.vector_store %arg4[%c0_5, %c0_6], %6 {strides = array<i32>} : memref<4x128xbf16, #tpu.memory_space<vmem>>, vector<4x128xbf16>,
    return
  }
  func.func @transform_0(%arg0: i32) -> (i32, i32) {
    %c0_i32 = arith.constant 0 : i32
    %c0_i32_0 = arith.constant 0 : i32
    %c0_i32_1 = arith.constant 0 : i32
    return %c0_i32, %c0_i32_0 : i32, i32
  }
  func.func @transform_1(%arg0: i32) -> (i32, i32) {
    %c0_i32 = arith.constant 0 : i32
    %c0_i32_0 = arith.constant 0 : i32
    return %c0_i32, %arg0 : i32, i32
  }
  func.func @transform_2(%arg0: i32) -> (i32, i32) {
    %c0_i32 = arith.constant 0 : i32
    %c0_i32_0 = arith.constant 0 : i32
    %c0_i32_1 = arith.constant 0 : i32
    return %c0_i32, %c0_i32_0 : i32, i32
  }
  func.func @transform_3(%arg0: i32) -> (i32, i32) {
    %c0_i32 = arith.constant 0 : i32
    %c0_i32_0 = arith.constant 0 : i32
    return %c0_i32, %arg0 : i32, i32
  }
}

module attributes {stable_mosaic.version = 11 : i64} {
  func.func @_gemm_bias_kernel(%arg0: i32, %arg1: memref<2x256xbf16, #tpu.memory_space<vmem>>, %arg2: memref<256x128xbf16, #tpu.memory_space<vmem>>, %arg3: memref<1x128xf32, #tpu.memory_space<vmem>>, %arg4: memref<2x128xf32, #tpu.memory_space<vmem>>) attributes {dimension_semantics = [#tpu.dimension_semantics<parallel>], iteration_bounds = array<i64: 2>, scalar_prefetch = 0 : i64, scratch_operands = 0 : i64, tpu.core_type = #tpu.core_type<tc>, window_params = [{pipeline_mode = #tpu.pipeline_mode<synchronous>, transform_indices = @transform_0, window_bounds = array<i64: 2, 256>}, {transform_indices = @transform_1, window_bounds = array<i64: 256, 128>}, {transform_indices = @transform_2, window_bounds = array<i64: 1, 128>}, {transform_indices = @transform_3, window_bounds = array<i64: 2, 128>}]} {
    %c0 = arith.constant 0 : index
    %c0_0 = arith.constant 0 : index
    %0 = vector.load %arg1[%c0, %c0_0] : memref<2x256xbf16, #tpu.memory_space<vmem>>, vector<2x256xbf16>
    %c0_1 = arith.constant 0 : index
    %c0_2 = arith.constant 0 : index
    %1 = vector.load %arg2[%c0_1, %c0_2] : memref<256x128xbf16, #tpu.memory_space<vmem>>, vector<256x128xbf16>
    %cst = arith.constant dense<0.000000e+00> : vector<2x128xf32>
    %2 = tpu.matmul %0, %1, %cst {dimension_numbers = #tpu.dot_dimension_numbers<[1], [0], [0], [1], [0, 0, 1, 1], [], []>} : vector<2x256xbf16>, vector<256x128xbf16>, vector<2x128xf32> -> vector<2x128xf32>
    %c0_3 = arith.constant 0 : index
    %c0_4 = arith.constant 0 : index
    %3 = vector.load %arg3[%c0_3, %c0_4] : memref<1x128xf32, #tpu.memory_space<vmem>>, vector<1x128xf32>
    %4 = vector.broadcast %3 : vector<1x128xf32> to vector<2x128xf32>
    %5 = arith.addf %2, %4 : vector<2x128xf32>
    %c0_5 = arith.constant 0 : index
    %c0_6 = arith.constant 0 : index
    %6 = vector.load %arg4[%c0_5, %c0_6] : memref<2x128xf32, #tpu.memory_space<vmem>>, vector<2x128xf32>
    tpu.vector_store %arg4[%c0_5, %c0_6], %5 {strides = array<i32>} : memref<2x128xf32, #tpu.memory_space<vmem>>, vector<2x128xf32>,
    return
  }
  func.func @transform_0(%arg0: i32) -> (i32, i32) {
    %c0_i32 = arith.constant 0 : i32
    %c0_i32_0 = arith.constant 0 : i32
    %c0_i32_1 = arith.constant 0 : i32
    return %c0_i32, %c0_i32_0 : i32, i32
  }
  func.func @transform_1(%arg0: i32) -> (i32, i32) {
    %c0_i32 = arith.constant 0 : i32
    %c0_i32_0 = arith.constant 0 : i32
    return %c0_i32, %arg0 : i32, i32
  }
  func.func @transform_2(%arg0: i32) -> (i32, i32) {
    %c0_i32 = arith.constant 0 : i32
    %c0_i32_0 = arith.constant 0 : i32
    return %c0_i32, %arg0 : i32, i32
  }
  func.func @transform_3(%arg0: i32) -> (i32, i32) {
    %c0_i32 = arith.constant 0 : i32
    %c0_i32_0 = arith.constant 0 : i32
    return %c0_i32, %arg0 : i32, i32
  }
}

</mosaic_0001>

<llo_original>
// kernel: image_embedding_forward.4
$region0: #{image_embedding_forward.4}
  #allocation0 [shape = 'u32[]', space=smem, size = 0x4, offset = 0x4, fixed_abs, tag = 'smem constant byte address 0x4 - core index']
  #allocation1 [shape = 'u32[144,128]{1,0:T(1,128)}', space=vmem, size = 0x12000, scoped, tag = 'internal scratch']
  %s0 = inlined_call_operand.vmem [shape: bf16[4,27,1922], index: 0, kind: input, shape index: {}]
  %s1 = inlined_call_operand.vmem [shape: bf16[10,27], index: 1, kind: input, shape index: {}]
  %s2 = inlined_call_operand.vmem [shape: f32[10,1], index: 2, kind: input, shape index: {}]
  %s3 = inlined_call_operand.vmem [shape: f32[10,1], index: 3, kind: input, shape index: {}]
  %s4 = inlined_call_operand.vmem [shape: f32[10,1], index: 4, kind: input, shape index: {}]
  %s5 = inlined_call_operand.vmem [shape: f32[10,1], index: 5, kind: input, shape index: {}]
  %s6 = inlined_call_operand.vmem [shape: bf16[10,1922], index: 6, kind: output, shape index: {}]
  %s7 = sld [smem:[#allocation0]]
  $region99: #{image_embedding_forward.4} parent=0
    _
  %s9 = ssub.s32 1, %s7
  %s10 = scalar_select 0, %s9, %s7
  $region1: #{image_embedding_forward.4} parent=0
    #allocation2 [shape = 'u8[524288]{0}', space=vmem, size = 0x80000, scoped, tag = 'input window, operand 0']
    #allocation3 [shape = 'u8[65536]{0}', space=vmem, size = 0x10000, scoped, tag = 'output window, operand 0']
    loop: start=0, step=1, limit=4
    $region2: #{image_embedding_forward.4} parent=1 // loop_pre_header
      _
    $region3: #{image_embedding_forward.4} parent=1 // loop_header
      %s12 = sphi 0, %s16
      %p13 = scmp.ge.s32.totalorder %s12, 4
      %s22 = sphi 0, %s24
      %s25 = sphi 0, %s22
      %s26 = sphi 0, %s25
      %s42 = sphi 0, %s26
      %s46 = sphi 0, %s46
      %s48 = sphi 0, %s46
      %s49 = sphi 0, %s48
      %s63 = sphi 0, %s49
      %s67 = sphi 0, %s67
      %s69 = sphi 0, %s67
      %s70 = sphi 0, %s69
      %s84 = sphi 0, %s70
      %s88 = sphi 0, %s88
      %s90 = sphi 0, %s88
      %s91 = sphi 0, %s90
      %s105 = sphi 0, %s91
      %s109 = sphi 0, %s109
      %s111 = sphi 0, %s109
      %s112 = sphi 0, %s111
      %s126 = sphi 0, %s112
      %s130 = sphi 0, %s130
      %s132 = sphi 0, %s130
      %s133 = sphi 0, %s132
      %s147 = sphi 0, %s133
      %s153 = sphi 0, %s155
      %s156 = sphi 0, %s153
      %s157 = sphi 0, %s156
      %s173 = sphi 0, %s157
    $region4: #{image_embedding_forward.4} parent=1 // loop_header_branch
      %15 = sbr.rel (%p13) target = $region8
    $region5: #{image_embedding_forward.4} parent=1 // loop_body
      %s17 = ssub.s32 %s12, 1
      %s18 = ssub.s32 %s12, 2
      %s19 = sadd.s32 %s12, 1
      %s20 = ssub.s32 %s12, %s19
      %p21 = scmp.eq.s32.totalorder %s20, 0
      %s23 = sadd.s32 %s22, 1
      %s24 = scalar_select %p21, %s22, %s23
      %p27 = pneg %p21
      %p28 = scmp.eq.s32.totalorder %s12, 1
      %p29 = por %p27, %p28
      %p30 = scmp.ne.s32.totalorder %s22, %s25
      %p31 = scmp.eq.s32.totalorder %s12, 0
      %p32 = por %p30, %p31
      %p33 = scmp.ne.s32.totalorder %s22, %s25
      %p34 = scmp.eq.s32.totalorder %s17, 1
      %p35 = por %p33, %p34
      %p36 = scmp.ne.s32.totalorder %s25, %s26
      %p37 = scmp.eq.s32.totalorder %s17, 0
      %p38 = por %p36, %p37
      %p39 = scmp.ne.s32.totalorder %s25, %s26
      %p40 = scmp.eq.s32.totalorder %s18, 1
      %p41 = por %p39, %p40
      %p43 = scmp.ne.s32.totalorder %s26, %s42
      %p44 = scmp.eq.s32.totalorder %s18, 0
      %p45 = por %p43, %p44
      %s47 = sadd.s32 %s46, 1
      %p50 = scmp.eq.s32.totalorder %s12, 1
      %p51 = scmp.ne.s32.totalorder %s46, %s48
      %p52 = scmp.eq.s32.totalorder %s12, 0
      %p53 = por %p51, %p52
      %p54 = scmp.ne.s32.totalorder %s46, %s48
      %p55 = scmp.eq.s32.totalorder %s17, 1
      %p56 = por %p54, %p55
      %p57 = scmp.ne.s32.totalorder %s48, %s49
      %p58 = scmp.eq.s32.totalorder %s17, 0
      %p59 = por %p57, %p58
      %p60 = scmp.ne.s32.totalorder %s48, %s49
      %p61 = scmp.eq.s32.totalorder %s18, 1
      %p62 = por %p60, %p61
      %p64 = scmp.ne.s32.totalorder %s49, %s63
      %p65 = scmp.eq.s32.totalorder %s18, 0
      %p66 = por %p64, %p65
      %s68 = sadd.s32 %s67, 1
      %p71 = scmp.eq.s32.totalorder %s12, 1
      %p72 = scmp.ne.s32.totalorder %s67, %s69
      %p73 = scmp.eq.s32.totalorder %s12, 0
      %p74 = por %p72, %p73
      %p75 = scmp.ne.s32.totalorder %s67, %s69
      %p76 = scmp.eq.s32.totalorder %s17, 1
      %p77 = por %p75, %p76
      %p78 = scmp.ne.s32.totalorder %s69, %s70
      %p79 = scmp.eq.s32.totalorder %s17, 0
      %p80 = por %p78, %p79
      %p81 = scmp.ne.s32.totalorder %s69, %s70
      %p82 = scmp.eq.s32.totalorder %s18, 1
      %p83 = por %p81, %p82
      %p85 = scmp.ne.s32.totalorder %s70, %s84
      %p86 = scmp.eq.s32.totalorder %s18, 0
      %p87 = por %p85, %p86
      %s89 = sadd.s32 %s88, 1
      %p92 = scmp.eq.s32.totalorder %s12, 1
      %p93 = scmp.ne.s32.totalorder %s88, %s90
      %p94 = scmp.eq.s32.totalorder %s12, 0
      %p95 = por %p93, %p94
      %p96 = scmp.ne.s32.totalorder %s88, %s90
      %p97 = scmp.eq.s32.totalorder %s17, 1
      %p98 = por %p96, %p97
      %p99 = scmp.ne.s32.totalorder %s90, %s91
      %p100 = scmp.eq.s32.totalorder %s17, 0
      %p101 = por %p99, %p100
      %p102 = scmp.ne.s32.totalorder %s90, %s91
      %p103 = scmp.eq.s32.totalorder %s18, 1
      %p104 = por %p102, %p103
      %p106 = scmp.ne.s32.totalorder %s91, %s105
      %p107 = scmp.eq.s32.totalorder %s18, 0
      %p108 = por %p106, %p107
      %s110 = sadd.s32 %s109, 1
      %p113 = scmp.eq.s32.totalorder %s12, 1
      %p114 = scmp.ne.s32.totalorder %s109, %s111
      %p115 = scmp.eq.s32.totalorder %s12, 0
      %p116 = por %p114, %p115
      %p117 = scmp.ne.s32.totalorder %s109, %s111
      %p118 = scmp.eq.s32.totalorder %s17, 1
      %p119 = por %p117, %p118
      %p120 = scmp.ne.s32.totalorder %s111, %s112
      %p121 = scmp.eq.s32.totalorder %s17, 0
      %p122 = por %p120, %p121
      %p123 = scmp.ne.s32.totalorder %s111, %s112
      %p124 = scmp.eq.s32.totalorder %s18, 1
      %p125 = por %p123, %p124
      %p127 = scmp.ne.s32.totalorder %s112, %s126
      %p128 = scmp.eq.s32.totalorder %s18, 0
      %p129 = por %p127, %p128
      %s131 = sadd.s32 %s130, 1
      %p134 = scmp.eq.s32.totalorder %s12, 1
      %p135 = scmp.ne.s32.totalorder %s130, %s132
      %p136 = scmp.eq.s32.totalorder %s12, 0
      %p137 = por %p135, %p136
      %p138 = scmp.ne.s32.totalorder %s130, %s132
      %p139 = scmp.eq.s32.totalorder %s17, 1
      %p140 = por %p138, %p139
      %p141 = scmp.ne.s32.totalorder %s132, %s133
      %p142 = scmp.eq.s32.totalorder %s17, 0
      %p143 = por %p141, %p142
      %p144 = scmp.ne.s32.totalorder %s132, %s133
      %p145 = scmp.eq.s32.totalorder %s18, 1
      %p146 = por %p144, %p145
      %p148 = scmp.ne.s32.totalorder %s133, %s147
      %p149 = scmp.eq.s32.totalorder %s18, 0
      %p150 = por %p148, %p149
      %s151 = ssub.s32 %s12, %s19
      %p152 = scmp.eq.s32.totalorder %s151, 0
      %s154 = sadd.s32 %s153, 1
      %s155 = scalar_select %p152, %s153, %s154
      %p158 = pneg %p152
      %p159 = scmp.eq.s32.totalorder %s12, 1
      %p160 = por %p158, %p159
      %p161 = scmp.ne.s32.totalorder %s153, %s156
      %p162 = scmp.eq.s32.totalorder %s12, 0
      %p163 = por %p161, %p162
      %p164 = scmp.ne.s32.totalorder %s153, %s156
      %p165 = scmp.eq.s32.totalorder %s17, 1
      %p166 = por %p164, %p165
      %p167 = scmp.ne.s32.totalorder %s156, %s157
      %p168 = scmp.eq.s32.totalorder %s17, 0
      %p169 = por %p167, %p168
      %p170 = scmp.ne.s32.totalorder %s156, %s157
      %p171 = scmp.eq.s32.totalorder %s18, 1
      %p172 = por %p170, %p171
      %p174 = scmp.ne.s32.totalorder %s157, %s173
      %p175 = scmp.eq.s32.totalorder %s18, 0
      %p176 = por %p174, %p175
      %p177 = scmp.le.s32.totalorder 1, %s12
      %p178 = scmp.lt.s32.totalorder %s12, 3
      %p179 = pnand %p177, %p178
      %p180 = pneg %p179
      // Predicated region
      $region9: #{image_embedding_forward.4} parent=5 // pred_check
        _
      $region10: #{image_embedding_forward.4} parent=5 // pred_check_branch
        %182 = sbr.rel (%p179) target = $region12
      $region11: #{image_embedding_forward.4} parent=5 // pred_region
        %s183 = ssub.s32 %s12, 1
        // Predicated region
        $region13: #{image_embedding_forward.4} parent=11 // pred_check
          %p184 = pneg %p59
        $region14: #{image_embedding_forward.4} parent=11 // pred_check_branch
          %186 = sbr.rel (%p184) target = $region16
        $region15: #{image_embedding_forward.4} parent=11 // pred_region
          _
        $region16: #{image_embedding_forward.4} parent=11 // pred_fallthru
          _
        // Predicated region
        $region17: #{image_embedding_forward.4} parent=11 // pred_check
          %p187 = pneg %p80
        $region18: #{image_embedding_forward.4} parent=11 // pred_check_branch
          %189 = sbr.rel (%p187) target = $region20
        $region19: #{image_embedding_forward.4} parent=11 // pred_region
          _
        $region20: #{image_embedding_forward.4} parent=11 // pred_fallthru
          _
        // Predicated region
        $region21: #{image_embedding_forward.4} parent=11 // pred_check
          %p190 = pneg %p101
        $region22: #{image_embedding_forward.4} parent=11 // pred_check_branch
          %192 = sbr.rel (%p190) target = $region24
        $region23: #{image_embedding_forward.4} parent=11 // pred_region
          _
        $region24: #{image_embedding_forward.4} parent=11 // pred_fallthru
          _
        // Predicated region
        $region25: #{image_embedding_forward.4} parent=11 // pred_check
          %p193 = pneg %p122
        $region26: #{image_embedding_forward.4} parent=11 // pred_check_branch
          %195 = sbr.rel (%p193) target = $region28
        $region27: #{image_embedding_forward.4} parent=11 // pred_region
          _
        $region28: #{image_embedding_forward.4} parent=11 // pred_fallthru
          _
        // Predicated region
        $region29: #{image_embedding_forward.4} parent=11 // pred_check
          %p196 = pneg %p143
        $region30: #{image_embedding_forward.4} parent=11 // pred_check_branch
          %198 = sbr.rel (%p196) target = $region32
        $region31: #{image_embedding_forward.4} parent=11 // pred_region
          _
        $region32: #{image_embedding_forward.4} parent=11 // pred_fallthru
          _
      $region12: #{image_embedding_forward.4} parent=5 // pred_fallthru
        _
      %p199 = scmp.lt.s32.totalorder %s12, 2
      // Predicated region
      $region33: #{image_embedding_forward.4} parent=5 // pred_check
        %p200 = pneg %p199
      $region34: #{image_embedding_forward.4} parent=5 // pred_check_branch
        %202 = sbr.rel (%p200) target = $region36
      $region35: #{image_embedding_forward.4} parent=5 // pred_region
        // Predicated region
        $region37: #{image_embedding_forward.4} parent=35 // pred_check
          %p203 = pneg %p32
        $region38: #{image_embedding_forward.4} parent=35 // pred_check_branch
          %205 = sbr.rel (%p203) target = $region40
        $region39: #{image_embedding_forward.4} parent=35 // pred_region
          %s206 = sand.u32 %s22, 1
          %s207 = sand.u32 %s22, 1
          %s208 = smul.addr %s207, 512
          %s209 = scalar_lea.vmem [#allocation2], %s208
          %s210 = smul.u32 8, %s12
          %s211 = smul.addr %s210, 4
          %s212 = scalar_lea.vmem %s0, %s211
          // Predicated region
          $region41: #{image_embedding_forward.4} parent=39 // pred_check
            _
          $region42: #{image_embedding_forward.4} parent=39 // pred_check_branch
            %214 = sbr.rel (0) target = $region44
          $region43: #{image_embedding_forward.4} parent=39 // pred_region
            // Predicated region
            $region45: #{image_embedding_forward.4} parent=43 // pred_check
              _
            $region46: #{image_embedding_forward.4} parent=43 // pred_check_branch
              %216 = sbr.rel (0) target = $region48
            $region47: #{image_embedding_forward.4} parent=43 // pred_region
              loop: start=0, step=1, limit=1
              $region49: #{image_embedding_forward.4} parent=47 // loop_pre_header
                _
              $region50: #{image_embedding_forward.4} parent=47 // loop_header
                %s218 = sphi 0, %s222
                %p219 = scmp.ge.s32.totalorder %s218, 1
                %s223 = sphi %s212, %s212
                %s224 = sphi %s209, %s209
              $region51: #{image_embedding_forward.4} parent=47 // loop_header_branch
                %221 = sbr.rel (%p219) target = $region55
              $region52: #{image_embedding_forward.4} parent=47 // loop_body
                %v225 = vld [vmem:[%s223] sm:$0xff]
                %226 = vst [vmem:[%s224] sm:$0xff] %v225
                %v227 = vld [vmem:[%s223 + $0x8] sm:$0xff]
                %228 = vst [vmem:[%s224 + $0x8] sm:$0xff] %v227
                %v229 = vld [vmem:[%s223 + $0x10] sm:$0xff]
                %230 = vst [vmem:[%s224 + $0x10] sm:$0xff] %v229
                %v231 = vld [vmem:[%s223 + $0x18] sm:$0xff]
                %232 = vst [vmem:[%s224 + $0x18] sm:$0xff] %v231
                %v233 = vld [vmem:[%s223 + $0x40] sm:$0xff]
                %234 = vst [vmem:[%s224 + $0x20] sm:$0xff] %v233
                %v235 = vld [vmem:[%s223 + $0x48] sm:$0xff]
                %236 = vst [vmem:[%s224 + $0x28] sm:$0xff] %v235
                %v237 = vld [vmem:[%s223 + $0x50] sm:$0xff]
                %238 = vst [vmem:[%s224 + $0x30] sm:$0xff] %v237
                %v239 = vld [vmem:[%s223 + $0x58] sm:$0xff]
                %240 = vst [vmem:[%s224 + $0x38] sm:$0xff] %v239
                %v241 = vld [vmem:[%s223 + $0x80] sm:$0xff]
                %242 = vst [vmem:[%s224 + $0x40] sm:$0xff] %v241
                %v243 = vld [vmem:[%s223 + $0x88] sm:$0xff]
                %244 = vst [vmem:[%s224 + $0x48] sm:$0xff] %v243
                %v245 = vld [vmem:[%s223 + $0x90] sm:$0xff]
                %246 = vst [vmem:[%s224 + $0x50] sm:$0xff] %v245
                %v247 = vld [vmem:[%s223 + $0x98] sm:$0xff]
                %248 = vst [vmem:[%s224 + $0x58] sm:$0xff] %v247
                %v249 = vld [vmem:[%s223 + $0xc0] sm:$0xff]
                %250 = vst [vmem:[%s224 + $0x60] sm:$0xff] %v249
                %v251 = vld [vmem:[%s223 + $0xc8] sm:$0xff]
                %252 = vst [vmem:[%s224 + $0x68] sm:$0xff] %v251
                %v253 = vld [vmem:[%s223 + $0xd0] sm:$0xff]
                %254 = vst [vmem:[%s224 + $0x70] sm:$0xff] %v253
                %v255 = vld [vmem:[%s223 + $0xd8] sm:$0xff]
                %256 = vst [vmem:[%s224 + $0x78] sm:$0xff] %v255
                %v257 = vld [vmem:[%s223 + $0x100] sm:$0xff]
                %258 = vst [vmem:[%s224 + $0x80] sm:$0xff] %v257
                %v259 = vld [vmem:[%s223 + $0x108] sm:$0xff]
                %260 = vst [vmem:[%s224 + $0x88] sm:$0xff] %v259
                %v261 = vld [vmem:[%s223 + $0x110] sm:$0xff]
                %262 = vst [vmem:[%s224 + $0x90] sm:$0xff] %v261
                %v263 = vld [vmem:[%s223 + $0x118] sm:$0xff]
                %264 = vst [vmem:[%s224 + $0x98] sm:$0xff] %v263
                %v265 = vld [vmem:[%s223 + $0x140] sm:$0xff]
                %266 = vst [vmem:[%s224 + $0xa0] sm:$0xff] %v265
                %v267 = vld [vmem:[%s223 + $0x148] sm:$0xff]
                %268 = vst [vmem:[%s224 + $0xa8] sm:$0xff] %v267
                %v269 = vld [vmem:[%s223 + $0x150] sm:$0xff]
                %270 = vst [vmem:[%s224 + $0xb0] sm:$0xff] %v269
                %v271 = vld [vmem:[%s223 + $0x158] sm:$0xff]
                %272 = vst [vmem:[%s224 + $0xb8] sm:$0xff] %v271
                %v273 = vld [vmem:[%s223 + $0x180] sm:$0xff]
                %274 = vst [vmem:[%s224 + $0xc0] sm:$0xff] %v273
                %v275 = vld [vmem:[%s223 + $0x188] sm:$0xff]
                %276 = vst [vmem:[%s224 + $0xc8] sm:$0xff] %v275
                %v277 = vld [vmem:[%s223 + $0x190] sm:$0xff]
                %278 = vst [vmem:[%s224 + $0xd0] sm:$0xff] %v277
                %v279 = vld [vmem:[%s223 + $0x198] sm:$0xff]
                %280 = vst [vmem:[%s224 + $0xd8] sm:$0xff] %v279
                %v281 = vld [vmem:[%s223 + $0x1c0] sm:$0xff]
                %282 = vst [vmem:[%s224 + $0xe0] sm:$0xff] %v281
                %v283 = vld [vmem:[%s223 + $0x1c8] sm:$0xff]
                %284 = vst [vmem:[%s224 + $0xe8] sm:$0xff] %v283
                %v285 = vld [vmem:[%s223 + $0x1d0] sm:$0xff]
                %286 = vst [vmem:[%s224 + $0xf0] sm:$0xff] %v285
                %v287 = vld [vmem:[%s223 + $0x1d8] sm:$0xff]
                %288 = vst [vmem:[%s224 + $0xf8] sm:$0xff] %v287
                %v289 = vld [vmem:[%s223 + $0x200] sm:$0xff]
                %290 = vst [vmem:[%s224 + $0x100] sm:$0xff] %v289
                %v291 = vld [vmem:[%s223 + $0x208] sm:$0xff]
                %292 = vst [vmem:[%s224 + $0x108] sm:$0xff] %v291
                %v293 = vld [vmem:[%s223 + $0x210] sm:$0xff]
                %294 = vst [vmem:[%s224 + $0x110] sm:$0xff] %v293
                %v295 = vld [vmem:[%s223 + $0x218] sm:$0xff]
                %296 = vst [vmem:[%s224 + $0x118] sm:$0xff] %v295
                %v297 = vld [vmem:[%s223 + $0x240] sm:$0xff]
                %298 = vst [vmem:[%s224 + $0x120] sm:$0xff] %v297
                %v299 = vld [vmem:[%s223 + $0x248] sm:$0xff]
                %300 = vst [vmem:[%s224 + $0x128] sm:$0xff] %v299
                %v301 = vld [vmem:[%s223 + $0x250] sm:$0xff]
                %302 = vst [vmem:[%s224 + $0x130] sm:$0xff] %v301
                %v303 = vld [vmem:[%s223 + $0x258] sm:$0xff]
                %304 = vst [vmem:[%s224 + $0x138] sm:$0xff] %v303
                %v305 = vld [vmem:[%s223 + $0x280] sm:$0xff]
                %306 = vst [vmem:[%s224 + $0x140] sm:$0xff] %v305
                %v307 = vld [vmem:[%s223 + $0x288] sm:$0xff]
                %308 = vst [vmem:[%s224 + $0x148] sm:$0xff] %v307
                %v309 = vld [vmem:[%s223 + $0x290] sm:$0xff]
                %310 = vst [vmem:[%s224 + $0x150] sm:$0xff] %v309
                %v311 = vld [vmem:[%s223 + $0x298] sm:$0xff]
                %312 = vst [vmem:[%s224 + $0x158] sm:$0xff] %v311
                %v313 = vld [vmem:[%s223 + $0x2c0] sm:$0xff]
                %314 = vst [vmem:[%s224 + $0x160] sm:$0xff] %v313
                %v315 = vld [vmem:[%s223 + $0x2c8] sm:$0xff]
                %316 = vst [vmem:[%s224 + $0x168] sm:$0xff] %v315
                %v317 = vld [vmem:[%s223 + $0x2d0] sm:$0xff]
                %318 = vst [vmem:[%s224 + $0x170] sm:$0xff] %v317
                %v319 = vld [vmem:[%s223 + $0x2d8] sm:$0xff]
                %320 = vst [vmem:[%s224 + $0x178] sm:$0xff] %v319
                %v321 = vld [vmem:[%s223 + $0x300] sm:$0xff]
                %322 = vst [vmem:[%s224 + $0x180] sm:$0xff] %v321
                %v323 = vld [vmem:[%s223 + $0x308] sm:$0xff]
                %324 = vst [vmem:[%s224 + $0x188] sm:$0xff] %v323
                %v325 = vld [vmem:[%s223 + $0x310] sm:$0xff]
                %326 = vst [vmem:[%s224 + $0x190] sm:$0xff] %v325
                %v327 = vld [vmem:[%s223 + $0x318] sm:$0xff]
                %328 = vst [vmem:[%s224 + $0x198] sm:$0xff] %v327
                %v329 = vld [vmem:[%s223 + $0x340] sm:$0xff]
                %330 = vst [vmem:[%s224 + $0x1a0] sm:$0xff] %v329
                %v331 = vld [vmem:[%s223 + $0x348] sm:$0xff]
                %332 = vst [vmem:[%s224 + $0x1a8] sm:$0xff] %v331
                %v333 = vld [vmem:[%s223 + $0x350] sm:$0xff]
                %334 = vst [vmem:[%s224 + $0x1b0] sm:$0xff] %v333
                %v335 = vld [vmem:[%s223 + $0x358] sm:$0xff]
                %336 = vst [vmem:[%s224 + $0x1b8] sm:$0xff] %v335
                %v337 = vld [vmem:[%s223 + $0x380] sm:$0xff]
                %338 = vst [vmem:[%s224 + $0x1c0] sm:$0xff] %v337
                %v339 = vld [vmem:[%s223 + $0x388] sm:$0xff]
                %340 = vst [vmem:[%s224 + $0x1c8] sm:$0xff] %v339
                %v341 = vld [vmem:[%s223 + $0x390] sm:$0xff]
                %342 = vst [vmem:[%s224 + $0x1d0] sm:$0xff] %v341
                %v343 = vld [vmem:[%s223 + $0x398] sm:$0xff]
                %344 = vst [vmem:[%s224 + $0x1d8] sm:$0xff] %v343
                %v345 = vld [vmem:[%s223 + $0x3c0] sm:$0xff]
                %346 = vst [vmem:[%s224 + $0x1e0] sm:$0xff] %v345
                %v347 = vld [vmem:[%s223 + $0x3c8] sm:$0xff]
                %348 = vst [vmem:[%s224 + $0x1e8] sm:$0xff] %v347
                %v349 = vld [vmem:[%s223 + $0x3d0] sm:$0xff]
                %350 = vst [vmem:[%s224 + $0x1f0] sm:$0xff] %v349
                %v351 = vld [vmem:[%s223 + $0x3d8] sm:$0xff]
                %352 = vst [vmem:[%s224 + $0x1f8] sm:$0xff] %v351
              $region53: #{image_embedding_forward.4} parent=47 // loop_footer
                %s222 = sadd.s32 1, %s218
              $region54: #{image_embedding_forward.4} parent=47 // loop_footer_branch
                %217 = sbr.rel target = $region50
              $region55: #{image_embedding_forward.4} parent=47 // loop_exit
                _
            $region48: #{image_embedding_forward.4} parent=43 // pred_fallthru
              _
            // Predicated region
            $region56: #{image_embedding_forward.4} parent=43 // pred_check
              _
            $region57: #{image_embedding_forward.4} parent=43 // pred_check_branch
              %354 = sbr.rel target = $region59
            $region58: #{image_embedding_forward.4} parent=43 // pred_region
              _
            $region59: #{image_embedding_forward.4} parent=43 // pred_fallthru
              _
          $region44: #{image_embedding_forward.4} parent=39 // pred_fallthru
            _
          %355 = vnop
        $region40: #{image_embedding_forward.4} parent=35 // pred_fallthru
          _
      $region36: #{image_embedding_forward.4} parent=5 // pred_fallthru
        _
      %p356 = scmp.le.s32.totalorder 1, %s12
      %p357 = scmp.lt.s32.totalorder %s12, 3
      %p358 = pnand %p356, %p357
      %p359 = pneg %p358
      // Predicated region
      $region60: #{image_embedding_forward.4} parent=5 // pred_check
        _
      $region61: #{image_embedding_forward.4} parent=5 // pred_check_branch
        %361 = sbr.rel (%p358) target = $region63
      $region62: #{image_embedding_forward.4} parent=5 // pred_region
        %s362 = ssub.s32 %s12, 1
        %s363 = sand.u32 %s25, 1
        %s364 = sand.u32 %s25, 1
        %s365 = smul.addr %s364, 512
        %s366 = scalar_lea.vmem [#allocation2], %s365
        // Predicated region
        $region64: #{image_embedding_forward.4} parent=62 // pred_check
          %p367 = pneg %p38
        $region65: #{image_embedding_forward.4} parent=62 // pred_check_branch
          %369 = sbr.rel (%p367) target = $region67
        $region66: #{image_embedding_forward.4} parent=62 // pred_region
          _
        $region67: #{image_embedding_forward.4} parent=62 // pred_fallthru
          _
        %s370 = sand.u32 %s25, 1
        %s371 = sand.u32 %s25, 1
        %s372 = smul.addr %s371, 512
        %s373 = scalar_lea.vmem [#allocation2], %s372
        %p374 = pneg %p38
        %p375 = pneg %p35
        %p376 = pneg %p59
        %p377 = pneg %p56
        %p378 = pneg %p80
        %p379 = pneg %p77
        %p380 = pneg %p101
        %p381 = pneg %p98
        %p382 = pneg %p122
        %p383 = pneg %p119
        %p384 = pneg %p143
        %p385 = pneg %p140
        %p386 = pneg %p169
        %p387 = pneg %p166
        %s388 = sand.u32 %s156, 1
        %s389 = sand.u32 %s156, 1
        %s390 = smul.addr %s389, 64
        %s391 = scalar_lea.vmem [#allocation3], %s390
        %s392 = smul.u32 8, %s17
        %s393 = smul.u32 8, %s17
        %v395 = vld [vmem:[%s1] sm:$0xf]
        %v396 = vld [vmem:[%s1 + $0x4] sm:$0x1]
        %v397 = vld [vmem:[%s2] sm:$0xff]
        %v398 = vld [vmem:[%s2 + $0x8] sm:$0x3]
        %v399 = vld [vmem:[%s3] sm:$0xff]
        %v400 = vld [vmem:[%s3 + $0x8] sm:$0x3]
        %v401 = vld [vmem:[%s366] sm:$0xff]
        %v402 = vld [vmem:[%s366 + $0x8] sm:$0xff]
        %v403 = vld [vmem:[%s366 + $0x10] sm:$0xff]
        %v404 = vld [vmem:[%s366 + $0x18] sm:$0xff]
        %v405 = vld [vmem:[%s366 + $0x20] sm:$0xff]
        %v406 = vld [vmem:[%s366 + $0x28] sm:$0xff]
        %v407 = vld [vmem:[%s366 + $0x30] sm:$0xff]
        %v408 = vld [vmem:[%s366 + $0x38] sm:$0xff]
        %v409 = vld [vmem:[%s366 + $0x40] sm:$0xff]
        %v410 = vld [vmem:[%s366 + $0x48] sm:$0xff]
        %v411 = vld [vmem:[%s366 + $0x50] sm:$0xff]
        %v412 = vld [vmem:[%s366 + $0x58] sm:$0xff]
        %v413 = vld [vmem:[%s366 + $0x60] sm:$0x33]
        %v414 = vld [vmem:[%s366 + $0x68] sm:$0x33]
        %v415 = vld [vmem:[%s366 + $0x70] sm:$0x33]
        %v416 = vld [vmem:[%s366 + $0x78] sm:$0x33]
        %v419 = vunpack.c.l.b16 %v395
        %v420 = vunpack.c.l.b16 %v396
        %v421 = vpack.c.b16 %v420, %v419
        %v438 = vunpack.c.l.b16 %v401
        %v439 = vunpack.c.h.b16 %v401
        %v440 = vunpack.c.l.b16 %v402
        %v441 = vunpack.c.h.b16 %v402
        %v442 = vunpack.c.l.b16 %v403
        %v443 = vunpack.c.h.b16 %v403
        %v444 = vunpack.c.l.b16 %v404
        %v445 = vunpack.c.h.b16 %v404
        %v446 = vunpack.c.l.b16 %v405
        %v447 = vunpack.c.h.b16 %v405
        %v448 = vunpack.c.l.b16 %v406
        %v449 = vunpack.c.h.b16 %v406
        %v450 = vunpack.c.l.b16 %v407
        %v451 = vunpack.c.h.b16 %v407
        %v452 = vunpack.c.l.b16 %v408
        %v453 = vunpack.c.h.b16 %v408
        %v454 = vunpack.c.l.b16 %v409
        %v455 = vunpack.c.h.b16 %v409
        %v456 = vunpack.c.l.b16 %v410
        %v457 = vunpack.c.h.b16 %v410
        %v458 = vunpack.c.l.b16 %v411
        %v459 = vunpack.c.h.b16 %v411
        %v460 = vunpack.c.l.b16 %v412
        %v461 = vunpack.c.h.b16 %v412
        %v462 = vunpack.c.l.b16 %v413
        %v463 = vunpack.c.h.b16 %v413
        %v464 = vunpack.c.l.b16 %v414
        %v465 = vunpack.c.h.b16 %v414
        %v466 = vunpack.c.l.b16 %v415
        %v467 = vunpack.c.h.b16 %v415
        %v468 = vunpack.c.l.b16 %v416
        %v469 = vunpack.c.h.b16 %v416
        %v470 = vpack.c.b16 %v446, %v438
        %v471 = vpack.c.b16 %v447, %v439
        %v472 = vpack.c.b16 %v448, %v440
        %v473 = vpack.c.b16 %v449, %v441
        %v474 = vpack.c.b16 %v450, %v442
        %v475 = vpack.c.b16 %v451, %v443
        %v476 = vpack.c.b16 %v452, %v444
        %v477 = vpack.c.b16 %v453, %v445
        %v478 = vpack.c.b16 %v462, %v454
        %v479 = vpack.c.b16 %v463, %v455
        %v480 = vpack.c.b16 %v464, %v456
        %v481 = vpack.c.b16 %v465, %v457
        %v482 = vpack.c.b16 %v466, %v458
        %v483 = vpack.c.b16 %v467, %v459
        %v484 = vpack.c.b16 %v468, %v460
        %v485 = vpack.c.b16 %v469, %v461
        %vm494 = vcmask 220160
        %v496 = vsel %vm494, %v421, 0
        %vm498 = vcmask 1044480
        %vm499 = vcmask 1045504
        %v500 = vsel %vm498, 4294967295, 65535
        %v501 = vsel %vm499, %v500, 0
        %v503 = vand.u32 %v478, %v501
        %v506 = vand.u32 %v479, %v501
        %v509 = vand.u32 %v480, %v501
        %v512 = vand.u32 %v481, %v501
        %v515 = vand.u32 %v482, %v501
        %v518 = vand.u32 %v483, %v501
        %v521 = vand.u32 %v484, %v501
        %v524 = vand.u32 %v485, %v501
        %526 = vmatprep.subr.bf16.mxu0 %v471
        %527 = vmatpush1.bf16.msra.mxu0 %v470
        %528 = vmatprep.subr.bf16.mxu0 %v506
        %529 = vmatpush1.bf16.msra.mxu0 %v503
        %530 = vmatprep.subr.bf16.mxu0 0
        %531 = vmatpush1.bf16.msra.mxu0 0
        %532 = vmatprep.subr.bf16.mxu0 0
        %533 = vmatpush1.bf16.msra.mxu0 0
        %534 = vmatprep.subr.bf16.mxu0 0
        %535 = vmatpush1.bf16.msra.mxu0 0
        %536 = vmatprep.subr.bf16.mxu0 0
        %537 = vmatpush1.bf16.msra.mxu0 0
        %538 = vmatprep.subr.bf16.mxu0 0
        %539 = vmatpush1.bf16.msra.mxu0 0
        %540 = vmatprep.subr.bf16.mxu0 0
        %541 = vmatpush1.bf16.msra.mxu0 0
        %542 = vmatprep.subr.bf16.mxu0 0
        %543 = vmatpush1.bf16.msra.mxu0 0
        %544 = vmatprep.subr.bf16.mxu0 0
        %545 = vmatpush1.bf16.msra.mxu0 0
        %546 = vmatprep.subr.bf16.mxu0 0
        %547 = vmatpush1.bf16.msra.mxu0 0
        %548 = vmatprep.subr.bf16.mxu0 0
        %549 = vmatpush1.bf16.msra.mxu0 0
        %550 = vmatprep.subr.bf16.mxu0 0
        %551 = vmatpush1.bf16.msra.mxu0 0
        %552 = vmatprep.subr.bf16.mxu0 0
        %553 = vmatpush1.bf16.msra.mxu0 0
        %554 = vmatprep.subr.bf16.mxu0 0
        %555 = vmatpush1.bf16.msra.mxu0 0
        %556 = vmatprep.subr.bf16.mxu0 0
        %557 = vmatpush1.bf16.msra.mxu0 0
        %558 = vmatprep.mubr.bf16.mxu0 0
        %559 = vmatmul.mubr.bf16.gmra.mrb[0].mxu0 %v496
        %v560 = vpop.f32.mrb[0].mxu0
        %v561 = vadd.f32 0.0, %v560
        %v562 = vpop.f32.mrb[0].mxu0
        %v563 = vadd.f32 0.0, %v562
        %v564 = vpop.f32.mrb[0].mxu0
        %v565 = vadd.f32 0.0, %v564
        %v566 = vpop.f32.mrb[0].mxu0
        %v567 = vadd.f32 0.0, %v566
        %568 = vdwg.mxu0
        %569 = vmatprep.subr.bf16.mxu0 %v473
        %570 = vmatpush1.bf16.msra.mxu0 %v472
        %571 = vmatprep.subr.bf16.mxu0 %v512
        %572 = vmatpush1.bf16.msra.mxu0 %v509
        %573 = vmatprep.subr.bf16.mxu0 0
        %574 = vmatpush1.bf16.msra.mxu0 0
        %575 = vmatprep.subr.bf16.mxu0 0
        %576 = vmatpush1.bf16.msra.mxu0 0
        %577 = vmatprep.subr.bf16.mxu0 0
        %578 = vmatpush1.bf16.msra.mxu0 0
        %579 = vmatprep.subr.bf16.mxu0 0
        %580 = vmatpush1.bf16.msra.mxu0 0
        %581 = vmatprep.subr.bf16.mxu0 0
        %582 = vmatpush1.bf16.msra.mxu0 0
        %583 = vmatprep.subr.bf16.mxu0 0
        %584 = vmatpush1.bf16.msra.mxu0 0
        %585 = vmatprep.subr.bf16.mxu0 0
        %586 = vmatpush1.bf16.msra.mxu0 0
        %587 = vmatprep.subr.bf16.mxu0 0
        %588 = vmatpush1.bf16.msra.mxu0 0
        %589 = vmatprep.subr.bf16.mxu0 0
        %590 = vmatpush1.bf16.msra.mxu0 0
        %591 = vmatprep.subr.bf16.mxu0 0
        %592 = vmatpush1.bf16.msra.mxu0 0
        %593 = vmatprep.subr.bf16.mxu0 0
        %594 = vmatpush1.bf16.msra.mxu0 0
        %595 = vmatprep.subr.bf16.mxu0 0
        %596 = vmatpush1.bf16.msra.mxu0 0
        %597 = vmatprep.subr.bf16.mxu0 0
        %598 = vmatpush1.bf16.msra.mxu0 0
        %599 = vmatprep.subr.bf16.mxu0 0
        %600 = vmatpush1.bf16.msra.mxu0 0
        %601 = vmatprep.mubr.bf16.mxu0 0
        %602 = vmatmul.mubr.bf16.gmra.mrb[0].mxu0 %v496
        %v603 = vpop.f32.mrb[0].mxu0
        %v604 = vadd.f32 0.0, %v603
        %v605 = vpop.f32.mrb[0].mxu0
        %v606 = vadd.f32 0.0, %v605
        %v607 = vpop.f32.mrb[0].mxu0
        %v608 = vadd.f32 0.0, %v607
        %v609 = vpop.f32.mrb[0].mxu0
        %v610 = vadd.f32 0.0, %v609
        %611 = vdwg.mxu0
        %612 = vmatprep.subr.bf16.mxu0 %v475
        %613 = vmatpush1.bf16.msra.mxu0 %v474
        %614 = vmatprep.subr.bf16.mxu0 %v518
        %615 = vmatpush1.bf16.msra.mxu0 %v515
        %616 = vmatprep.subr.bf16.mxu0 0
        %617 = vmatpush1.bf16.msra.mxu0 0
        %618 = vmatprep.subr.bf16.mxu0 0
        %619 = vmatpush1.bf16.msra.mxu0 0
        %620 = vmatprep.subr.bf16.mxu0 0
        %621 = vmatpush1.bf16.msra.mxu0 0
        %622 = vmatprep.subr.bf16.mxu0 0
        %623 = vmatpush1.bf16.msra.mxu0 0
        %624 = vmatprep.subr.bf16.mxu0 0
        %625 = vmatpush1.bf16.msra.mxu0 0
        %626 = vmatprep.subr.bf16.mxu0 0
        %627 = vmatpush1.bf16.msra.mxu0 0
        %628 = vmatprep.subr.bf16.mxu0 0
        %629 = vmatpush1.bf16.msra.mxu0 0
        %630 = vmatprep.subr.bf16.mxu0 0
        %631 = vmatpush1.bf16.msra.mxu0 0
        %632 = vmatprep.subr.bf16.mxu0 0
        %633 = vmatpush1.bf16.msra.mxu0 0
        %634 = vmatprep.subr.bf16.mxu0 0
        %635 = vmatpush1.bf16.msra.mxu0 0
        %636 = vmatprep.subr.bf16.mxu0 0
        %637 = vmatpush1.bf16.msra.mxu0 0
        %638 = vmatprep.subr.bf16.mxu0 0
        %639 = vmatpush1.bf16.msra.mxu0 0
        %640 = vmatprep.subr.bf16.mxu0 0
        %641 = vmatpush1.bf16.msra.mxu0 0
        %642 = vmatprep.subr.bf16.mxu0 0
        %643 = vmatpush1.bf16.msra.mxu0 0
        %644 = vmatprep.mubr.bf16.mxu0 0
        %645 = vmatmul.mubr.bf16.gmra.mrb[0].mxu0 %v496
        %v646 = vpop.f32.mrb[0].mxu0
        %v647 = vadd.f32 0.0, %v646
        %v648 = vpop.f32.mrb[0].mxu0
        %v649 = vadd.f32 0.0, %v648
        %v650 = vpop.f32.mrb[0].mxu0
        %v651 = vadd.f32 0.0, %v650
        %v652 = vpop.f32.mrb[0].mxu0
        %v653 = vadd.f32 0.0, %v652
        %654 = vdwg.mxu0
        %655 = vmatprep.subr.bf16.mxu0 %v477
        %656 = vmatpush1.bf16.msra.mxu0 %v476
        %657 = vmatprep.subr.bf16.mxu0 %v524
        %658 = vmatpush1.bf16.msra.mxu0 %v521
        %659 = vmatprep.subr.bf16.mxu0 0
        %660 = vmatpush1.bf16.msra.mxu0 0
        %661 = vmatprep.subr.bf16.mxu0 0
        %662 = vmatpush1.bf16.msra.mxu0 0
        %663 = vmatprep.subr.bf16.mxu0 0
        %664 = vmatpush1.bf16.msra.mxu0 0
        %665 = vmatprep.subr.bf16.mxu0 0
        %666 = vmatpush1.bf16.msra.mxu0 0
        %667 = vmatprep.subr.bf16.mxu0 0
        %668 = vmatpush1.bf16.msra.mxu0 0
        %669 = vmatprep.subr.bf16.mxu0 0
        %670 = vmatpush1.bf16.msra.mxu0 0
        %671 = vmatprep.subr.bf16.mxu0 0
        %672 = vmatpush1.bf16.msra.mxu0 0
        %673 = vmatprep.subr.bf16.mxu0 0
        %674 = vmatpush1.bf16.msra.mxu0 0
        %675 = vmatprep.subr.bf16.mxu0 0
        %676 = vmatpush1.bf16.msra.mxu0 0
        %677 = vmatprep.subr.bf16.mxu0 0
        %678 = vmatpush1.bf16.msra.mxu0 0
        %679 = vmatprep.subr.bf16.mxu0 0
        %680 = vmatpush1.bf16.msra.mxu0 0
        %681 = vmatprep.subr.bf16.mxu0 0
        %682 = vmatpush1.bf16.msra.mxu0 0
        %683 = vmatprep.subr.bf16.mxu0 0
        %684 = vmatpush1.bf16.msra.mxu0 0
        %685 = vmatprep.subr.bf16.mxu0 0
        %686 = vmatpush1.bf16.msra.mxu0 0
        %687 = vmatprep.mubr.bf16.mxu0 0
        %688 = vmatmul.mubr.bf16.gmra.mrb[0].mxu0 %v496
        %v689 = vpop.f32.mrb[0].mxu0
        %v690 = vadd.f32 0.0, %v689
        %v691 = vpop.f32.mrb[0].mxu0
        %v692 = vadd.f32 0.0, %v691
        %v693 = vpop.f32.mrb[0].mxu0
        %v694 = vadd.f32 0.0, %v693
        %v695 = vpop.f32.mrb[0].mxu0
        %v696 = vadd.f32 0.0, %v695
        %697 = vdwg.mxu0
        %699 = vset.pattern.permute.xlu0 0
        %700 = vperm.xlu0 %699, %v397
        %v701 = vpop.permute.xlu0 %700
        %704 = vset.pattern.permute.xlu0 0
        %705 = vperm.xlu0 %704, %v398
        %v706 = vpop.permute.xlu0 %705
        %v708 = vmul.f32 %v561, %v701
        %v709 = vmul.f32 %v563, %v701
        %v710 = vmul.f32 %v604, %v701
        %v711 = vmul.f32 %v606, %v701
        %v712 = vmul.f32 %v647, %v701
        %v713 = vmul.f32 %v649, %v701
        %v714 = vmul.f32 %v690, %v701
        %v715 = vmul.f32 %v692, %v701
        %v716 = vmul.f32 %v565, %v706
        %v717 = vmul.f32 %v567, %v706
        %v718 = vmul.f32 %v608, %v706
        %v719 = vmul.f32 %v610, %v706
        %v720 = vmul.f32 %v651, %v706
        %v721 = vmul.f32 %v653, %v706
        %v722 = vmul.f32 %v694, %v706
        %v723 = vmul.f32 %v696, %v706
        %725 = vset.pattern.permute.xlu0 0
        %726 = vperm.xlu0 %725, %v399
        %v727 = vpop.permute.xlu0 %726
        %730 = vset.pattern.permute.xlu0 0
        %731 = vperm.xlu0 %730, %v400
        %v732 = vpop.permute.xlu0 %731
        %v734 = vadd.f32 %v708, %v727
        %v735 = vadd.f32 %v709, %v727
        %v736 = vadd.f32 %v710, %v727
        %v737 = vadd.f32 %v711, %v727
        %v738 = vadd.f32 %v712, %v727
        %v739 = vadd.f32 %v713, %v727
        %v740 = vadd.f32 %v714, %v727
        %v741 = vadd.f32 %v715, %v727
        %v742 = vadd.f32 %v716, %v732
        %v743 = vadd.f32 %v717, %v732
        %v744 = vadd.f32 %v718, %v732
        %v745 = vadd.f32 %v719, %v732
        %v746 = vadd.f32 %v720, %v732
        %v747 = vadd.f32 %v721, %v732
        %v748 = vadd.f32 %v722, %v732
        %v749 = vadd.f32 %v723, %v732
        %v750 = vmax.f32 %v734, 0.0
        %v751 = vmax.f32 %v735, 0.0
        %v752 = vmax.f32 %v736, 0.0
        %v753 = vmax.f32 %v737, 0.0
        %v754 = vmax.f32 %v738, 0.0
        %v755 = vmax.f32 %v739, 0.0
        %v756 = vmax.f32 %v740, 0.0
        %v757 = vmax.f32 %v741, 0.0
        %v758 = vmax.f32 %v742, 0.0
        %v759 = vmax.f32 %v743, 0.0
        %v760 = vmax.f32 %v744, 0.0
        %v761 = vmax.f32 %v745, 0.0
        %v762 = vmax.f32 %v746, 0.0
        %v763 = vmax.f32 %v747, 0.0
        %v764 = vmax.f32 %v748, 0.0
        %v765 = vmax.f32 %v749, 0.0
        %s766 = scalar_lea.vmem %s366, 128 [#allocation2]
        %v767 = vld [vmem:[%s766] sm:$0xff]
        %v768 = vld [vmem:[%s766 + $0x8] sm:$0xff]
        %v769 = vld [vmem:[%s766 + $0x10] sm:$0xff]
        %v770 = vld [vmem:[%s766 + $0x18] sm:$0xff]
        %v771 = vld [vmem:[%s766 + $0x20] sm:$0xff]
        %v772 = vld [vmem:[%s766 + $0x28] sm:$0xff]
        %v773 = vld [vmem:[%s766 + $0x30] sm:$0xff]
        %v774 = vld [vmem:[%s766 + $0x38] sm:$0xff]
        %v775 = vld [vmem:[%s766 + $0x40] sm:$0xff]
        %v776 = vld [vmem:[%s766 + $0x48] sm:$0xff]
        %v777 = vld [vmem:[%s766 + $0x50] sm:$0xff]
        %v778 = vld [vmem:[%s766 + $0x58] sm:$0xff]
        %v779 = vld [vmem:[%s766 + $0x60] sm:$0x33]
        %v780 = vld [vmem:[%s766 + $0x68] sm:$0x33]
        %v781 = vld [vmem:[%s766 + $0x70] sm:$0x33]
        %v782 = vld [vmem:[%s766 + $0x78] sm:$0x33]
        %v799 = vunpack.c.l.b16 %v767
        %v800 = vunpack.c.h.b16 %v767
        %v801 = vunpack.c.l.b16 %v768
        %v802 = vunpack.c.h.b16 %v768
        %v803 = vunpack.c.l.b16 %v769
        %v804 = vunpack.c.h.b16 %v769
        %v805 = vunpack.c.l.b16 %v770
        %v806 = vunpack.c.h.b16 %v770
        %v807 = vunpack.c.l.b16 %v771
        %v808 = vunpack.c.h.b16 %v771
        %v809 = vunpack.c.l.b16 %v772
        %v810 = vunpack.c.h.b16 %v772
        %v811 = vunpack.c.l.b16 %v773
        %v812 = vunpack.c.h.b16 %v773
        %v813 = vunpack.c.l.b16 %v774
        %v814 = vunpack.c.h.b16 %v774
        %v815 = vunpack.c.l.b16 %v775
        %v816 = vunpack.c.h.b16 %v775
        %v817 = vunpack.c.l.b16 %v776
        %v818 = vunpack.c.h.b16 %v776
        %v819 = vunpack.c.l.b16 %v777
        %v820 = vunpack.c.h.b16 %v777
        %v821 = vunpack.c.l.b16 %v778
        %v822 = vunpack.c.h.b16 %v778
        %v823 = vunpack.c.l.b16 %v779
        %v824 = vunpack.c.h.b16 %v779
        %v825 = vunpack.c.l.b16 %v780
        %v826 = vunpack.c.h.b16 %v780
        %v827 = vunpack.c.l.b16 %v781
        %v828 = vunpack.c.h.b16 %v781
        %v829 = vunpack.c.l.b16 %v782
        %v830 = vunpack.c.h.b16 %v782
        %v831 = vpack.c.b16 %v807, %v799
        %v832 = vpack.c.b16 %v808, %v800
        %v833 = vpack.c.b16 %v809, %v801
        %v834 = vpack.c.b16 %v810, %v802
        %v835 = vpack.c.b16 %v811, %v803
        %v836 = vpack.c.b16 %v812, %v804
        %v837 = vpack.c.b16 %v813, %v805
        %v838 = vpack.c.b16 %v814, %v806
        %v839 = vpack.c.b16 %v823, %v815
        %v840 = vpack.c.b16 %v824, %v816
        %v841 = vpack.c.b16 %v825, %v817
        %v842 = vpack.c.b16 %v826, %v818
        %v843 = vpack.c.b16 %v827, %v819
        %v844 = vpack.c.b16 %v828, %v820
        %v845 = vpack.c.b16 %v829, %v821
        %v846 = vpack.c.b16 %v830, %v822
        %v856 = vand.u32 %v839, %v501
        %v859 = vand.u32 %v840, %v501
        %v862 = vand.u32 %v841, %v501
        %v865 = vand.u32 %v842, %v501
        %v868 = vand.u32 %v843, %v501
        %v871 = vand.u32 %v844, %v501
        %v874 = vand.u32 %v845, %v501
        %v877 = vand.u32 %v846, %v501
        %879 = vmatprep.subr.bf16.mxu0 %v832
        %880 = vmatpush1.bf16.msra.mxu0 %v831
        %881 = vmatprep.subr.bf16.mxu0 %v859
        %882 = vmatpush1.bf16.msra.mxu0 %v856
        %883 = vmatprep.subr.bf16.mxu0 0
        %884 = vmatpush1.bf16.msra.mxu0 0
        %885 = vmatprep.subr.bf16.mxu0 0
        %886 = vmatpush1.bf16.msra.mxu0 0
        %887 = vmatprep.subr.bf16.mxu0 0
        %888 = vmatpush1.bf16.msra.mxu0 0
        %889 = vmatprep.subr.bf16.mxu0 0
        %890 = vmatpush1.bf16.msra.mxu0 0
        %891 = vmatprep.subr.bf16.mxu0 0
        %892 = vmatpush1.bf16.msra.mxu0 0
        %893 = vmatprep.subr.bf16.mxu0 0
        %894 = vmatpush1.bf16.msra.mxu0 0
        %895 = vmatprep.subr.bf16.mxu0 0
        %896 = vmatpush1.bf16.msra.mxu0 0
        %897 = vmatprep.subr.bf16.mxu0 0
        %898 = vmatpush1.bf16.msra.mxu0 0
        %899 = vmatprep.subr.bf16.mxu0 0
        %900 = vmatpush1.bf16.msra.mxu0 0
        %901 = vmatprep.subr.bf16.mxu0 0
        %902 = vmatpush1.bf16.msra.mxu0 0
        %903 = vmatprep.subr.bf16.mxu0 0
        %904 = vmatpush1.bf16.msra.mxu0 0
        %905 = vmatprep.subr.bf16.mxu0 0
        %906 = vmatpush1.bf16.msra.mxu0 0
        %907 = vmatprep.subr.bf16.mxu0 0
        %908 = vmatpush1.bf16.msra.mxu0 0
        %909 = vmatprep.subr.bf16.mxu0 0
        %910 = vmatpush1.bf16.msra.mxu0 0
        %911 = vmatprep.mubr.bf16.mxu0 0
        %912 = vmatmul.mubr.bf16.gmra.mrb[0].mxu0 %v496
        %v913 = vpop.f32.mrb[0].mxu0
        %v914 = vadd.f32 0.0, %v913
        %v915 = vpop.f32.mrb[0].mxu0
        %v916 = vadd.f32 0.0, %v915
        %v917 = vpop.f32.mrb[0].mxu0
        %v918 = vadd.f32 0.0, %v917
        %v919 = vpop.f32.mrb[0].mxu0
        %v920 = vadd.f32 0.0, %v919
        %921 = vdwg.mxu0
        %922 = vmatprep.subr.bf16.mxu0 %v834
        %923 = vmatpush1.bf16.msra.mxu0 %v833
        %924 = vmatprep.subr.bf16.mxu0 %v865
        %925 = vmatpush1.bf16.msra.mxu0 %v862
        %926 = vmatprep.subr.bf16.mxu0 0
        %927 = vmatpush1.bf16.msra.mxu0 0
        %928 = vmatprep.subr.bf16.mxu0 0
        %929 = vmatpush1.bf16.msra.mxu0 0
        %930 = vmatprep.subr.bf16.mxu0 0
        %931 = vmatpush1.bf16.msra.mxu0 0
        %932 = vmatprep.subr.bf16.mxu0 0
        %933 = vmatpush1.bf16.msra.mxu0 0
        %934 = vmatprep.subr.bf16.mxu0 0
        %935 = vmatpush1.bf16.msra.mxu0 0
        %936 = vmatprep.subr.bf16.mxu0 0
        %937 = vmatpush1.bf16.msra.mxu0 0
        %938 = vmatprep.subr.bf16.mxu0 0
        %939 = vmatpush1.bf16.msra.mxu0 0
        %940 = vmatprep.subr.bf16.mxu0 0
        %941 = vmatpush1.bf16.msra.mxu0 0
        %942 = vmatprep.subr.bf16.mxu0 0
        %943 = vmatpush1.bf16.msra.mxu0 0
        %944 = vmatprep.subr.bf16.mxu0 0
        %945 = vmatpush1.bf16.msra.mxu0 0
        %946 = vmatprep.subr.bf16.mxu0 0
        %947 = vmatpush1.bf16.msra.mxu0 0
        %948 = vmatprep.subr.bf16.mxu0 0
        %949 = vmatpush1.bf16.msra.mxu0 0
        %950 = vmatprep.subr.bf16.mxu0 0
        %951 = vmatpush1.bf16.msra.mxu0 0
        %952 = vmatprep.subr.bf16.mxu0 0
        %953 = vmatpush1.bf16.msra.mxu0 0
        %954 = vmatprep.mubr.bf16.mxu0 0
        %955 = vmatmul.mubr.bf16.gmra.mrb[0].mxu0 %v496
        %v956 = vpop.f32.mrb[0].mxu0
        %v957 = vadd.f32 0.0, %v956
        %v958 = vpop.f32.mrb[0].mxu0
        %v959 = vadd.f32 0.0, %v958
        %v960 = vpop.f32.mrb[0].mxu0
        %v961 = vadd.f32 0.0, %v960
        %v962 = vpop.f32.mrb[0].mxu0
        %v963 = vadd.f32 0.0, %v962
        %964 = vdwg.mxu0
        %965 = vmatprep.subr.bf16.mxu0 %v836
        %966 = vmatpush1.bf16.msra.mxu0 %v835
        %967 = vmatprep.subr.bf16.mxu0 %v871
        %968 = vmatpush1.bf16.msra.mxu0 %v868
        %969 = vmatprep.subr.bf16.mxu0 0
        %970 = vmatpush1.bf16.msra.mxu0 0
        %971 = vmatprep.subr.bf16.mxu0 0
        %972 = vmatpush1.bf16.msra.mxu0 0
        %973 = vmatprep.subr.bf16.mxu0 0
        %974 = vmatpush1.bf16.msra.mxu0 0
        %975 = vmatprep.subr.bf16.mxu0 0
        %976 = vmatpush1.bf16.msra.mxu0 0
        %977 = vmatprep.subr.bf16.mxu0 0
        %978 = vmatpush1.bf16.msra.mxu0 0
        %979 = vmatprep.subr.bf16.mxu0 0
        %980 = vmatpush1.bf16.msra.mxu0 0
        %981 = vmatprep.subr.bf16.mxu0 0
        %982 = vmatpush1.bf16.msra.mxu0 0
        %983 = vmatprep.subr.bf16.mxu0 0
        %984 = vmatpush1.bf16.msra.mxu0 0
        %985 = vmatprep.subr.bf16.mxu0 0
        %986 = vmatpush1.bf16.msra.mxu0 0
        %987 = vmatprep.subr.bf16.mxu0 0
        %988 = vmatpush1.bf16.msra.mxu0 0
        %989 = vmatprep.subr.bf16.mxu0 0
        %990 = vmatpush1.bf16.msra.mxu0 0
        %991 = vmatprep.subr.bf16.mxu0 0
        %992 = vmatpush1.bf16.msra.mxu0 0
        %993 = vmatprep.subr.bf16.mxu0 0
        %994 = vmatpush1.bf16.msra.mxu0 0
        %995 = vmatprep.subr.bf16.mxu0 0
        %996 = vmatpush1.bf16.msra.mxu0 0
        %997 = vmatprep.mubr.bf16.mxu0 0
        %998 = vmatmul.mubr.bf16.gmra.mrb[0].mxu0 %v496
        %v999 = vpop.f32.mrb[0].mxu0
        %v1000 = vadd.f32 0.0, %v999
        %v1001 = vpop.f32.mrb[0].mxu0
        %v1002 = vadd.f32 0.0, %v1001
        %v1003 = vpop.f32.mrb[0].mxu0
        %v1004 = vadd.f32 0.0, %v1003
        %v1005 = vpop.f32.mrb[0].mxu0
        %v1006 = vadd.f32 0.0, %v1005
        %1007 = vdwg.mxu0
        %1008 = vmatprep.subr.bf16.mxu0 %v838
        %1009 = vmatpush1.bf16.msra.mxu0 %v837
        %1010 = vmatprep.subr.bf16.mxu0 %v877
        %1011 = vmatpush1.bf16.msra.mxu0 %v874
        %1012 = vmatprep.subr.bf16.mxu0 0
        %1013 = vmatpush1.bf16.msra.mxu0 0
        %1014 = vmatprep.subr.bf16.mxu0 0
        %1015 = vmatpush1.bf16.msra.mxu0 0
        %1016 = vmatprep.subr.bf16.mxu0 0
        %1017 = vmatpush1.bf16.msra.mxu0 0
        %1018 = vmatprep.subr.bf16.mxu0 0
        %1019 = vmatpush1.bf16.msra.mxu0 0
        %1020 = vmatprep.subr.bf16.mxu0 0
        %1021 = vmatpush1.bf16.msra.mxu0 0
        %1022 = vmatprep.subr.bf16.mxu0 0
        %1023 = vmatpush1.bf16.msra.mxu0 0
        %1024 = vmatprep.subr.bf16.mxu0 0
        %1025 = vmatpush1.bf16.msra.mxu0 0
        %1026 = vmatprep.subr.bf16.mxu0 0
        %1027 = vmatpush1.bf16.msra.mxu0 0
        %1028 = vmatprep.subr.bf16.mxu0 0
        %1029 = vmatpush1.bf16.msra.mxu0 0
        %1030 = vmatprep.subr.bf16.mxu0 0
        %1031 = vmatpush1.bf16.msra.mxu0 0
        %1032 = vmatprep.subr.bf16.mxu0 0
        %1033 = vmatpush1.bf16.msra.mxu0 0
        %1034 = vmatprep.subr.bf16.mxu0 0
        %1035 = vmatpush1.bf16.msra.mxu0 0
        %1036 = vmatprep.subr.bf16.mxu0 0
        %1037 = vmatpush1.bf16.msra.mxu0 0
        %1038 = vmatprep.subr.bf16.mxu0 0
        %1039 = vmatpush1.bf16.msra.mxu0 0
        %1040 = vmatprep.mubr.bf16.mxu0 0
        %1041 = vmatmul.mubr.bf16.gmra.mrb[0].mxu0 %v496
        %v1042 = vpop.f32.mrb[0].mxu0
        %v1043 = vadd.f32 0.0, %v1042
        %v1044 = vpop.f32.mrb[0].mxu0
        %v1045 = vadd.f32 0.0, %v1044
        %v1046 = vpop.f32.mrb[0].mxu0
        %v1047 = vadd.f32 0.0, %v1046
        %v1048 = vpop.f32.mrb[0].mxu0
        %v1049 = vadd.f32 0.0, %v1048
        %1050 = vdwg.mxu0
        %v1051 = vmul.f32 %v914, %v701
        %v1052 = vmul.f32 %v916, %v701
        %v1053 = vmul.f32 %v957, %v701
        %v1054 = vmul.f32 %v959, %v701
        %v1055 = vmul.f32 %v1000, %v701
        %v1056 = vmul.f32 %v1002, %v701
        %v1057 = vmul.f32 %v1043, %v701
        %v1058 = vmul.f32 %v1045, %v701
        %v1059 = vmul.f32 %v918, %v706
        %v1060 = vmul.f32 %v920, %v706
        %v1061 = vmul.f32 %v961, %v706
        %v1062 = vmul.f32 %v963, %v706
        %v1063 = vmul.f32 %v1004, %v706
        %v1064 = vmul.f32 %v1006, %v706
        %v1065 = vmul.f32 %v1047, %v706
        %v1066 = vmul.f32 %v1049, %v706
        %v1067 = vadd.f32 %v1051, %v727
        %v1068 = vadd.f32 %v1052, %v727
        %v1069 = vadd.f32 %v1053, %v727
        %v1070 = vadd.f32 %v1054, %v727
        %v1071 = vadd.f32 %v1055, %v727
        %v1072 = vadd.f32 %v1056, %v727
        %v1073 = vadd.f32 %v1057, %v727
        %v1074 = vadd.f32 %v1058, %v727
        %v1075 = vadd.f32 %v1059, %v732
        %v1076 = vadd.f32 %v1060, %v732
        %v1077 = vadd.f32 %v1061, %v732
        %v1078 = vadd.f32 %v1062, %v732
        %v1079 = vadd.f32 %v1063, %v732
        %v1080 = vadd.f32 %v1064, %v732
        %v1081 = vadd.f32 %v1065, %v732
        %v1082 = vadd.f32 %v1066, %v732
        %v1083 = vmax.f32 %v1067, 0.0
        %v1084 = vmax.f32 %v1068, 0.0
        %v1085 = vmax.f32 %v1069, 0.0
        %v1086 = vmax.f32 %v1070, 0.0
        %v1087 = vmax.f32 %v1071, 0.0
        %v1088 = vmax.f32 %v1072, 0.0
        %v1089 = vmax.f32 %v1073, 0.0
        %v1090 = vmax.f32 %v1074, 0.0
        %v1091 = vmax.f32 %v1075, 0.0
        %v1092 = vmax.f32 %v1076, 0.0
        %v1093 = vmax.f32 %v1077, 0.0
        %v1094 = vmax.f32 %v1078, 0.0
        %v1095 = vmax.f32 %v1079, 0.0
        %v1096 = vmax.f32 %v1080, 0.0
        %v1097 = vmax.f32 %v1081, 0.0
        %v1098 = vmax.f32 %v1082, 0.0
        %v1099 = vmax.f32 %v750, %v1083
        %v1100 = vmax.f32 %v751, %v1084
        %v1101 = vmax.f32 %v752, %v1085
        %v1102 = vmax.f32 %v753, %v1086
        %v1103 = vmax.f32 %v754, %v1087
        %v1104 = vmax.f32 %v755, %v1088
        %v1105 = vmax.f32 %v756, %v1089
        %v1106 = vmax.f32 %v757, %v1090
        %v1107 = vmax.f32 %v758, %v1091
        %v1108 = vmax.f32 %v759, %v1092
        %v1109 = vmax.f32 %v760, %v1093
        %v1110 = vmax.f32 %v761, %v1094
        %v1111 = vmax.f32 %v762, %v1095
        %v1112 = vmax.f32 %v763, %v1096
        %v1113 = vmax.f32 %v764, %v1097
        %v1114 = vmax.f32 %v765, %v1098
        %s1115 = scalar_lea.vmem %s366, 256 [#allocation2]
        %v1116 = vld [vmem:[%s1115] sm:$0xff]
        %v1117 = vld [vmem:[%s1115 + $0x8] sm:$0xff]
        %v1118 = vld [vmem:[%s1115 + $0x10] sm:$0xff]
        %v1119 = vld [vmem:[%s1115 + $0x18] sm:$0xff]
        %v1120 = vld [vmem:[%s1115 + $0x20] sm:$0xff]
        %v1121 = vld [vmem:[%s1115 + $0x28] sm:$0xff]
        %v1122 = vld [vmem:[%s1115 + $0x30] sm:$0xff]
        %v1123 = vld [vmem:[%s1115 + $0x38] sm:$0xff]
        %v1124 = vld [vmem:[%s1115 + $0x40] sm:$0xff]
        %v1125 = vld [vmem:[%s1115 + $0x48] sm:$0xff]
        %v1126 = vld [vmem:[%s1115 + $0x50] sm:$0xff]
        %v1127 = vld [vmem:[%s1115 + $0x58] sm:$0xff]
        %v1128 = vld [vmem:[%s1115 + $0x60] sm:$0x33]
        %v1129 = vld [vmem:[%s1115 + $0x68] sm:$0x33]
        %v1130 = vld [vmem:[%s1115 + $0x70] sm:$0x33]
        %v1131 = vld [vmem:[%s1115 + $0x78] sm:$0x33]
        %v1148 = vunpack.c.l.b16 %v1116
        %v1149 = vunpack.c.h.b16 %v1116
        %v1150 = vunpack.c.l.b16 %v1117
        %v1151 = vunpack.c.h.b16 %v1117
        %v1152 = vunpack.c.l.b16 %v1118
        %v1153 = vunpack.c.h.b16 %v1118
        %v1154 = vunpack.c.l.b16 %v1119
        %v1155 = vunpack.c.h.b16 %v1119
        %v1156 = vunpack.c.l.b16 %v1120
        %v1157 = vunpack.c.h.b16 %v1120
        %v1158 = vunpack.c.l.b16 %v1121
        %v1159 = vunpack.c.h.b16 %v1121
        %v1160 = vunpack.c.l.b16 %v1122
        %v1161 = vunpack.c.h.b16 %v1122
        %v1162 = vunpack.c.l.b16 %v1123
        %v1163 = vunpack.c.h.b16 %v1123
        %v1164 = vunpack.c.l.b16 %v1124
        %v1165 = vunpack.c.h.b16 %v1124
        %v1166 = vunpack.c.l.b16 %v1125
        %v1167 = vunpack.c.h.b16 %v1125
        %v1168 = vunpack.c.l.b16 %v1126
        %v1169 = vunpack.c.h.b16 %v1126
        %v1170 = vunpack.c.l.b16 %v1127
        %v1171 = vunpack.c.h.b16 %v1127
        %v1172 = vunpack.c.l.b16 %v1128
        %v1173 = vunpack.c.h.b16 %v1128
        %v1174 = vunpack.c.l.b16 %v1129
        %v1175 = vunpack.c.h.b16 %v1129
        %v1176 = vunpack.c.l.b16 %v1130
        %v1177 = vunpack.c.h.b16 %v1130
        %v1178 = vunpack.c.l.b16 %v1131
        %v1179 = vunpack.c.h.b16 %v1131
        %v1180 = vpack.c.b16 %v1156, %v1148
        %v1181 = vpack.c.b16 %v1157, %v1149
        %v1182 = vpack.c.b16 %v1158, %v1150
        %v1183 = vpack.c.b16 %v1159, %v1151
        %v1184 = vpack.c.b16 %v1160, %v1152
        %v1185 = vpack.c.b16 %v1161, %v1153
        %v1186 = vpack.c.b16 %v1162, %v1154
        %v1187 = vpack.c.b16 %v1163, %v1155
        %v1188 = vpack.c.b16 %v1172, %v1164
        %v1189 = vpack.c.b16 %v1173, %v1165
        %v1190 = vpack.c.b16 %v1174, %v1166
        %v1191 = vpack.c.b16 %v1175, %v1167
        %v1192 = vpack.c.b16 %v1176, %v1168
        %v1193 = vpack.c.b16 %v1177, %v1169
        %v1194 = vpack.c.b16 %v1178, %v1170
        %v1195 = vpack.c.b16 %v1179, %v1171
        %v1205 = vand.u32 %v1188, %v501
        %v1208 = vand.u32 %v1189, %v501
        %v1211 = vand.u32 %v1190, %v501
        %v1214 = vand.u32 %v1191, %v501
        %v1217 = vand.u32 %v1192, %v501
        %v1220 = vand.u32 %v1193, %v501
        %v1223 = vand.u32 %v1194, %v501
        %v1226 = vand.u32 %v1195, %v501
        %1228 = vmatprep.subr.bf16.mxu0 %v1181
        %1229 = vmatpush1.bf16.msra.mxu0 %v1180
        %1230 = vmatprep.subr.bf16.mxu0 %v1208
        %1231 = vmatpush1.bf16.msra.mxu0 %v1205
        %1232 = vmatprep.subr.bf16.mxu0 0
        %1233 = vmatpush1.bf16.msra.mxu0 0
        %1234 = vmatprep.subr.bf16.mxu0 0
        %1235 = vmatpush1.bf16.msra.mxu0 0
        %1236 = vmatprep.subr.bf16.mxu0 0
        %1237 = vmatpush1.bf16.msra.mxu0 0
        %1238 = vmatprep.subr.bf16.mxu0 0
        %1239 = vmatpush1.bf16.msra.mxu0 0
        %1240 = vmatprep.subr.bf16.mxu0 0
        %1241 = vmatpush1.bf16.msra.mxu0 0
        %1242 = vmatprep.subr.bf16.mxu0 0
        %1243 = vmatpush1.bf16.msra.mxu0 0
        %1244 = vmatprep.subr.bf16.mxu0 0
        %1245 = vmatpush1.bf16.msra.mxu0 0
        %1246 = vmatprep.subr.bf16.mxu0 0
        %1247 = vmatpush1.bf16.msra.mxu0 0
        %1248 = vmatprep.subr.bf16.mxu0 0
        %1249 = vmatpush1.bf16.msra.mxu0 0
        %1250 = vmatprep.subr.bf16.mxu0 0
        %1251 = vmatpush1.bf16.msra.mxu0 0
        %1252 = vmatprep.subr.bf16.mxu0 0
        %1253 = vmatpush1.bf16.msra.mxu0 0
        %1254 = vmatprep.subr.bf16.mxu0 0
        %1255 = vmatpush1.bf16.msra.mxu0 0
        %1256 = vmatprep.subr.bf16.mxu0 0
        %1257 = vmatpush1.bf16.msra.mxu0 0
        %1258 = vmatprep.subr.bf16.mxu0 0
        %1259 = vmatpush1.bf16.msra.mxu0 0
        %1260 = vmatprep.mubr.bf16.mxu0 0
        %1261 = vmatmul.mubr.bf16.gmra.mrb[0].mxu0 %v496
        %v1262 = vpop.f32.mrb[0].mxu0
        %v1263 = vadd.f32 0.0, %v1262
        %v1264 = vpop.f32.mrb[0].mxu0
        %v1265 = vadd.f32 0.0, %v1264
        %v1266 = vpop.f32.mrb[0].mxu0
        %v1267 = vadd.f32 0.0, %v1266
        %v1268 = vpop.f32.mrb[0].mxu0
        %v1269 = vadd.f32 0.0, %v1268
        %1270 = vdwg.mxu0
        %1271 = vmatprep.subr.bf16.mxu0 %v1183
        %1272 = vmatpush1.bf16.msra.mxu0 %v1182
        %1273 = vmatprep.subr.bf16.mxu0 %v1214
        %1274 = vmatpush1.bf16.msra.mxu0 %v1211
        %1275 = vmatprep.subr.bf16.mxu0 0
        %1276 = vmatpush1.bf16.msra.mxu0 0
        %1277 = vmatprep.subr.bf16.mxu0 0
        %1278 = vmatpush1.bf16.msra.mxu0 0
        %1279 = vmatprep.subr.bf16.mxu0 0
        %1280 = vmatpush1.bf16.msra.mxu0 0
        %1281 = vmatprep.subr.bf16.mxu0 0
        %1282 = vmatpush1.bf16.msra.mxu0 0
        %1283 = vmatprep.subr.bf16.mxu0 0
        %1284 = vmatpush1.bf16.msra.mxu0 0
        %1285 = vmatprep.subr.bf16.mxu0 0
        %1286 = vmatpush1.bf16.msra.mxu0 0
        %1287 = vmatprep.subr.bf16.mxu0 0
        %1288 = vmatpush1.bf16.msra.mxu0 0
        %1289 = vmatprep.subr.bf16.mxu0 0
        %1290 = vmatpush1.bf16.msra.mxu0 0
        %1291 = vmatprep.subr.bf16.mxu0 0
        %1292 = vmatpush1.bf16.msra.mxu0 0
        %1293 = vmatprep.subr.bf16.mxu0 0
        %1294 = vmatpush1.bf16.msra.mxu0 0
        %1295 = vmatprep.subr.bf16.mxu0 0
        %1296 = vmatpush1.bf16.msra.mxu0 0
        %1297 = vmatprep.subr.bf16.mxu0 0
        %1298 = vmatpush1.bf16.msra.mxu0 0
        %1299 = vmatprep.subr.bf16.mxu0 0
        %1300 = vmatpush1.bf16.msra.mxu0 0
        %1301 = vmatprep.subr.bf16.mxu0 0
        %1302 = vmatpush1.bf16.msra.mxu0 0
        %1303 = vmatprep.mubr.bf16.mxu0 0
        %1304 = vmatmul.mubr.bf16.gmra.mrb[0].mxu0 %v496
        %v1305 = vpop.f32.mrb[0].mxu0
        %v1306 = vadd.f32 0.0, %v1305
        %v1307 = vpop.f32.mrb[0].mxu0
        %v1308 = vadd.f32 0.0, %v1307
        %v1309 = vpop.f32.mrb[0].mxu0
        %v1310 = vadd.f32 0.0, %v1309
        %v1311 = vpop.f32.mrb[0].mxu0
        %v1312 = vadd.f32 0.0, %v1311
        %1313 = vdwg.mxu0
        %1314 = vmatprep.subr.bf16.mxu0 %v1185
        %1315 = vmatpush1.bf16.msra.mxu0 %v1184
        %1316 = vmatprep.subr.bf16.mxu0 %v1220
        %1317 = vmatpush1.bf16.msra.mxu0 %v1217
        %1318 = vmatprep.subr.bf16.mxu0 0
        %1319 = vmatpush1.bf16.msra.mxu0 0
        %1320 = vmatprep.subr.bf16.mxu0 0
        %1321 = vmatpush1.bf16.msra.mxu0 0
        %1322 = vmatprep.subr.bf16.mxu0 0
        %1323 = vmatpush1.bf16.msra.mxu0 0
        %1324 = vmatprep.subr.bf16.mxu0 0
        %1325 = vmatpush1.bf16.msra.mxu0 0
        %1326 = vmatprep.subr.bf16.mxu0 0
        %1327 = vmatpush1.bf16.msra.mxu0 0
        %1328 = vmatprep.subr.bf16.mxu0 0
        %1329 = vmatpush1.bf16.msra.mxu0 0
        %1330 = vmatprep.subr.bf16.mxu0 0
        %1331 = vmatpush1.bf16.msra.mxu0 0
        %1332 = vmatprep.subr.bf16.mxu0 0
        %1333 = vmatpush1.bf16.msra.mxu0 0
        %1334 = vmatprep.subr.bf16.mxu0 0
        %1335 = vmatpush1.bf16.msra.mxu0 0
        %1336 = vmatprep.subr.bf16.mxu0 0
        %1337 = vmatpush1.bf16.msra.mxu0 0
        %1338 = vmatprep.subr.bf16.mxu0 0
        %1339 = vmatpush1.bf16.msra.mxu0 0
        %1340 = vmatprep.subr.bf16.mxu0 0
        %1341 = vmatpush1.bf16.msra.mxu0 0
        %1342 = vmatprep.subr.bf16.mxu0 0
        %1343 = vmatpush1.bf16.msra.mxu0 0
        %1344 = vmatprep.subr.bf16.mxu0 0
        %1345 = vmatpush1.bf16.msra.mxu0 0
        %1346 = vmatprep.mubr.bf16.mxu0 0
        %1347 = vmatmul.mubr.bf16.gmra.mrb[0].mxu0 %v496
        %v1348 = vpop.f32.mrb[0].mxu0
        %v1349 = vadd.f32 0.0, %v1348
        %v1350 = vpop.f32.mrb[0].mxu0
        %v1351 = vadd.f32 0.0, %v1350
        %v1352 = vpop.f32.mrb[0].mxu0
        %v1353 = vadd.f32 0.0, %v1352
        %v1354 = vpop.f32.mrb[0].mxu0
        %v1355 = vadd.f32 0.0, %v1354
        %1356 = vdwg.mxu0
        %1357 = vmatprep.subr.bf16.mxu0 %v1187
        %1358 = vmatpush1.bf16.msra.mxu0 %v1186
        %1359 = vmatprep.subr.bf16.mxu0 %v1226
        %1360 = vmatpush1.bf16.msra.mxu0 %v1223
        %1361 = vmatprep.subr.bf16.mxu0 0
        %1362 = vmatpush1.bf16.msra.mxu0 0
        %1363 = vmatprep.subr.bf16.mxu0 0
        %1364 = vmatpush1.bf16.msra.mxu0 0
        %1365 = vmatprep.subr.bf16.mxu0 0
        %1366 = vmatpush1.bf16.msra.mxu0 0
        %1367 = vmatprep.subr.bf16.mxu0 0
        %1368 = vmatpush1.bf16.msra.mxu0 0
        %1369 = vmatprep.subr.bf16.mxu0 0
        %1370 = vmatpush1.bf16.msra.mxu0 0
        %1371 = vmatprep.subr.bf16.mxu0 0
        %1372 = vmatpush1.bf16.msra.mxu0 0
        %1373 = vmatprep.subr.bf16.mxu0 0
        %1374 = vmatpush1.bf16.msra.mxu0 0
        %1375 = vmatprep.subr.bf16.mxu0 0
        %1376 = vmatpush1.bf16.msra.mxu0 0
        %1377 = vmatprep.subr.bf16.mxu0 0
        %1378 = vmatpush1.bf16.msra.mxu0 0
        %1379 = vmatprep.subr.bf16.mxu0 0
        %1380 = vmatpush1.bf16.msra.mxu0 0
        %1381 = vmatprep.subr.bf16.mxu0 0
        %1382 = vmatpush1.bf16.msra.mxu0 0
        %1383 = vmatprep.subr.bf16.mxu0 0
        %1384 = vmatpush1.bf16.msra.mxu0 0
        %1385 = vmatprep.subr.bf16.mxu0 0
        %1386 = vmatpush1.bf16.msra.mxu0 0
        %1387 = vmatprep.subr.bf16.mxu0 0
        %1388 = vmatpush1.bf16.msra.mxu0 0
        %1389 = vmatprep.mubr.bf16.mxu0 0
        %1390 = vmatmul.mubr.bf16.gmra.mrb[0].mxu0 %v496
        %v1391 = vpop.f32.mrb[0].mxu0
        %v1392 = vadd.f32 0.0, %v1391
        %v1393 = vpop.f32.mrb[0].mxu0
        %v1394 = vadd.f32 0.0, %v1393
        %v1395 = vpop.f32.mrb[0].mxu0
        %v1396 = vadd.f32 0.0, %v1395
        %v1397 = vpop.f32.mrb[0].mxu0
        %v1398 = vadd.f32 0.0, %v1397
        %1399 = vdwg.mxu0
        %v1400 = vmul.f32 %v1263, %v701
        %v1401 = vmul.f32 %v1265, %v701
        %v1402 = vmul.f32 %v1306, %v701
        %v1403 = vmul.f32 %v1308, %v701
        %v1404 = vmul.f32 %v1349, %v701
        %v1405 = vmul.f32 %v1351, %v701
        %v1406 = vmul.f32 %v1392, %v701
        %v1407 = vmul.f32 %v1394, %v701
        %v1408 = vmul.f32 %v1267, %v706
        %v1409 = vmul.f32 %v1269, %v706
        %v1410 = vmul.f32 %v1310, %v706
        %v1411 = vmul.f32 %v1312, %v706
        %v1412 = vmul.f32 %v1353, %v706
        %v1413 = vmul.f32 %v1355, %v706
        %v1414 = vmul.f32 %v1396, %v706
        %v1415 = vmul.f32 %v1398, %v706
        %v1416 = vadd.f32 %v1400, %v727
        %v1417 = vadd.f32 %v1401, %v727
        %v1418 = vadd.f32 %v1402, %v727
        %v1419 = vadd.f32 %v1403, %v727
        %v1420 = vadd.f32 %v1404, %v727
        %v1421 = vadd.f32 %v1405, %v727
        %v1422 = vadd.f32 %v1406, %v727
        %v1423 = vadd.f32 %v1407, %v727
        %v1424 = vadd.f32 %v1408, %v732
        %v1425 = vadd.f32 %v1409, %v732
        %v1426 = vadd.f32 %v1410, %v732
        %v1427 = vadd.f32 %v1411, %v732
        %v1428 = vadd.f32 %v1412, %v732
        %v1429 = vadd.f32 %v1413, %v732
        %v1430 = vadd.f32 %v1414, %v732
        %v1431 = vadd.f32 %v1415, %v732
        %v1432 = vmax.f32 %v1416, 0.0
        %v1433 = vmax.f32 %v1417, 0.0
        %v1434 = vmax.f32 %v1418, 0.0
        %v1435 = vmax.f32 %v1419, 0.0
        %v1436 = vmax.f32 %v1420, 0.0
        %v1437 = vmax.f32 %v1421, 0.0
        %v1438 = vmax.f32 %v1422, 0.0
        %v1439 = vmax.f32 %v1423, 0.0
        %v1440 = vmax.f32 %v1424, 0.0
        %v1441 = vmax.f32 %v1425, 0.0
        %v1442 = vmax.f32 %v1426, 0.0
        %v1443 = vmax.f32 %v1427, 0.0
        %v1444 = vmax.f32 %v1428, 0.0
        %v1445 = vmax.f32 %v1429, 0.0
        %v1446 = vmax.f32 %v1430, 0.0
        %v1447 = vmax.f32 %v1431, 0.0
        %s1448 = scalar_lea.vmem %s366, 384 [#allocation2]
        %v1449 = vld [vmem:[%s1448] sm:$0xff]
        %v1450 = vld [vmem:[%s1448 + $0x8] sm:$0xff]
        %v1451 = vld [vmem:[%s1448 + $0x10] sm:$0xff]
        %v1452 = vld [vmem:[%s1448 + $0x18] sm:$0xff]
        %v1453 = vld [vmem:[%s1448 + $0x20] sm:$0xff]
        %v1454 = vld [vmem:[%s1448 + $0x28] sm:$0xff]
        %v1455 = vld [vmem:[%s1448 + $0x30] sm:$0xff]
        %v1456 = vld [vmem:[%s1448 + $0x38] sm:$0xff]
        %v1457 = vld [vmem:[%s1448 + $0x40] sm:$0xff]
        %v1458 = vld [vmem:[%s1448 + $0x48] sm:$0xff]
        %v1459 = vld [vmem:[%s1448 + $0x50] sm:$0xff]
        %v1460 = vld [vmem:[%s1448 + $0x58] sm:$0xff]
        %v1461 = vld [vmem:[%s1448 + $0x60] sm:$0x33]
        %v1462 = vld [vmem:[%s1448 + $0x68] sm:$0x33]
        %v1463 = vld [vmem:[%s1448 + $0x70] sm:$0x33]
        %v1464 = vld [vmem:[%s1448 + $0x78] sm:$0x33]
        %v1481 = vunpack.c.l.b16 %v1449
        %v1482 = vunpack.c.h.b16 %v1449
        %v1483 = vunpack.c.l.b16 %v1450
        %v1484 = vunpack.c.h.b16 %v1450
        %v1485 = vunpack.c.l.b16 %v1451
        %v1486 = vunpack.c.h.b16 %v1451
        %v1487 = vunpack.c.l.b16 %v1452
        %v1488 = vunpack.c.h.b16 %v1452
        %v1489 = vunpack.c.l.b16 %v1453
        %v1490 = vunpack.c.h.b16 %v1453
        %v1491 = vunpack.c.l.b16 %v1454
        %v1492 = vunpack.c.h.b16 %v1454
        %v1493 = vunpack.c.l.b16 %v1455
        %v1494 = vunpack.c.h.b16 %v1455
        %v1495 = vunpack.c.l.b16 %v1456
        %v1496 = vunpack.c.h.b16 %v1456
        %v1497 = vunpack.c.l.b16 %v1457
        %v1498 = vunpack.c.h.b16 %v1457
        %v1499 = vunpack.c.l.b16 %v1458
        %v1500 = vunpack.c.h.b16 %v1458
        %v1501 = vunpack.c.l.b16 %v1459
        %v1502 = vunpack.c.h.b16 %v1459
        %v1503 = vunpack.c.l.b16 %v1460
        %v1504 = vunpack.c.h.b16 %v1460
        %v1505 = vunpack.c.l.b16 %v1461
        %v1506 = vunpack.c.h.b16 %v1461
        %v1507 = vunpack.c.l.b16 %v1462
        %v1508 = vunpack.c.h.b16 %v1462
        %v1509 = vunpack.c.l.b16 %v1463
        %v1510 = vunpack.c.h.b16 %v1463
        %v1511 = vunpack.c.l.b16 %v1464
        %v1512 = vunpack.c.h.b16 %v1464
        %v1513 = vpack.c.b16 %v1489, %v1481
        %v1514 = vpack.c.b16 %v1490, %v1482
        %v1515 = vpack.c.b16 %v1491, %v1483
        %v1516 = vpack.c.b16 %v1492, %v1484
        %v1517 = vpack.c.b16 %v1493, %v1485
        %v1518 = vpack.c.b16 %v1494, %v1486
        %v1519 = vpack.c.b16 %v1495, %v1487
        %v1520 = vpack.c.b16 %v1496, %v1488
        %v1521 = vpack.c.b16 %v1505, %v1497
        %v1522 = vpack.c.b16 %v1506, %v1498
        %v1523 = vpack.c.b16 %v1507, %v1499
        %v1524 = vpack.c.b16 %v1508, %v1500
        %v1525 = vpack.c.b16 %v1509, %v1501
        %v1526 = vpack.c.b16 %v1510, %v1502
        %v1527 = vpack.c.b16 %v1511, %v1503
        %v1528 = vpack.c.b16 %v1512, %v1504
        %v1538 = vand.u32 %v1521, %v501
        %v1541 = vand.u32 %v1522, %v501
        %v1544 = vand.u32 %v1523, %v501
        %v1547 = vand.u32 %v1524, %v501
        %v1550 = vand.u32 %v1525, %v501
        %v1553 = vand.u32 %v1526, %v501
        %v1556 = vand.u32 %v1527, %v501
        %v1559 = vand.u32 %v1528, %v501
        %1561 = vmatprep.subr.bf16.mxu0 %v1514
        %1562 = vmatpush1.bf16.msra.mxu0 %v1513
        %1563 = vmatprep.subr.bf16.mxu0 %v1541
        %1564 = vmatpush1.bf16.msra.mxu0 %v1538
        %1565 = vmatprep.subr.bf16.mxu0 0
        %1566 = vmatpush1.bf16.msra.mxu0 0
        %1567 = vmatprep.subr.bf16.mxu0 0
        %1568 = vmatpush1.bf16.msra.mxu0 0
        %1569 = vmatprep.subr.bf16.mxu0 0
        %1570 = vmatpush1.bf16.msra.mxu0 0
        %1571 = vmatprep.subr.bf16.mxu0 0
        %1572 = vmatpush1.bf16.msra.mxu0 0
        %1573 = vmatprep.subr.bf16.mxu0 0
        %1574 = vmatpush1.bf16.msra.mxu0 0
        %1575 = vmatprep.subr.bf16.mxu0 0
        %1576 = vmatpush1.bf16.msra.mxu0 0
        %1577 = vmatprep.subr.bf16.mxu0 0
        %1578 = vmatpush1.bf16.msra.mxu0 0
        %1579 = vmatprep.subr.bf16.mxu0 0
        %1580 = vmatpush1.bf16.msra.mxu0 0
        %1581 = vmatprep.subr.bf16.mxu0 0
        %1582 = vmatpush1.bf16.msra.mxu0 0
        %1583 = vmatprep.subr.bf16.mxu0 0
        %1584 = vmatpush1.bf16.msra.mxu0 0
        %1585 = vmatprep.subr.bf16.mxu0 0
        %1586 = vmatpush1.bf16.msra.mxu0 0
        %1587 = vmatprep.subr.bf16.mxu0 0
        %1588 = vmatpush1.bf16.msra.mxu0 0
        %1589 = vmatprep.subr.bf16.mxu0 0
        %1590 = vmatpush1.bf16.msra.mxu0 0
        %1591 = vmatprep.subr.bf16.mxu0 0
        %1592 = vmatpush1.bf16.msra.mxu0 0
        %1593 = vmatprep.mubr.bf16.mxu0 0
        %1594 = vmatmul.mubr.bf16.gmra.mrb[0].mxu0 %v496
        %v1595 = vpop.f32.mrb[0].mxu0
        %v1596 = vadd.f32 0.0, %v1595
        %v1597 = vpop.f32.mrb[0].mxu0
        %v1598 = vadd.f32 0.0, %v1597
        %v1599 = vpop.f32.mrb[0].mxu0
        %v1600 = vadd.f32 0.0, %v1599
        %v1601 = vpop.f32.mrb[0].mxu0
        %v1602 = vadd.f32 0.0, %v1601
        %1603 = vdwg.mxu0
        %1604 = vmatprep.subr.bf16.mxu0 %v1516
        %1605 = vmatpush1.bf16.msra.mxu0 %v1515
        %1606 = vmatprep.subr.bf16.mxu0 %v1547
        %1607 = vmatpush1.bf16.msra.mxu0 %v1544
        %1608 = vmatprep.subr.bf16.mxu0 0
        %1609 = vmatpush1.bf16.msra.mxu0 0
        %1610 = vmatprep.subr.bf16.mxu0 0
        %1611 = vmatpush1.bf16.msra.mxu0 0
        %1612 = vmatprep.subr.bf16.mxu0 0
        %1613 = vmatpush1.bf16.msra.mxu0 0
        %1614 = vmatprep.subr.bf16.mxu0 0
        %1615 = vmatpush1.bf16.msra.mxu0 0
        %1616 = vmatprep.subr.bf16.mxu0 0
        %1617 = vmatpush1.bf16.msra.mxu0 0
        %1618 = vmatprep.subr.bf16.mxu0 0
        %1619 = vmatpush1.bf16.msra.mxu0 0
        %1620 = vmatprep.subr.bf16.mxu0 0
        %1621 = vmatpush1.bf16.msra.mxu0 0
        %1622 = vmatprep.subr.bf16.mxu0 0
        %1623 = vmatpush1.bf16.msra.mxu0 0
        %1624 = vmatprep.subr.bf16.mxu0 0
        %1625 = vmatpush1.bf16.msra.mxu0 0
        %1626 = vmatprep.subr.bf16.mxu0 0
        %1627 = vmatpush1.bf16.msra.mxu0 0
        %1628 = vmatprep.subr.bf16.mxu0 0
        %1629 = vmatpush1.bf16.msra.mxu0 0
        %1630 = vmatprep.subr.bf16.mxu0 0
        %1631 = vmatpush1.bf16.msra.mxu0 0
        %1632 = vmatprep.subr.bf16.mxu0 0
        %1633 = vmatpush1.bf16.msra.mxu0 0
        %1634 = vmatprep.subr.bf16.mxu0 0
        %1635 = vmatpush1.bf16.msra.mxu0 0
        %1636 = vmatprep.mubr.bf16.mxu0 0
        %1637 = vmatmul.mubr.bf16.gmra.mrb[0].mxu0 %v496
        %v1638 = vpop.f32.mrb[0].mxu0
        %v1639 = vadd.f32 0.0, %v1638
        %v1640 = vpop.f32.mrb[0].mxu0
        %v1641 = vadd.f32 0.0, %v1640
        %v1642 = vpop.f32.mrb[0].mxu0
        %v1643 = vadd.f32 0.0, %v1642
        %v1644 = vpop.f32.mrb[0].mxu0
        %v1645 = vadd.f32 0.0, %v1644
        %1646 = vdwg.mxu0
        %1647 = vmatprep.subr.bf16.mxu0 %v1518
        %1648 = vmatpush1.bf16.msra.mxu0 %v1517
        %1649 = vmatprep.subr.bf16.mxu0 %v1553
        %1650 = vmatpush1.bf16.msra.mxu0 %v1550
        %1651 = vmatprep.subr.bf16.mxu0 0
        %1652 = vmatpush1.bf16.msra.mxu0 0
        %1653 = vmatprep.subr.bf16.mxu0 0
        %1654 = vmatpush1.bf16.msra.mxu0 0
        %1655 = vmatprep.subr.bf16.mxu0 0
        %1656 = vmatpush1.bf16.msra.mxu0 0
        %1657 = vmatprep.subr.bf16.mxu0 0
        %1658 = vmatpush1.bf16.msra.mxu0 0
        %1659 = vmatprep.subr.bf16.mxu0 0
        %1660 = vmatpush1.bf16.msra.mxu0 0
        %1661 = vmatprep.subr.bf16.mxu0 0
        %1662 = vmatpush1.bf16.msra.mxu0 0
        %1663 = vmatprep.subr.bf16.mxu0 0
        %1664 = vmatpush1.bf16.msra.mxu0 0
        %1665 = vmatprep.subr.bf16.mxu0 0
        %1666 = vmatpush1.bf16.msra.mxu0 0
        %1667 = vmatprep.subr.bf16.mxu0 0
        %1668 = vmatpush1.bf16.msra.mxu0 0
        %1669 = vmatprep.subr.bf16.mxu0 0
        %1670 = vmatpush1.bf16.msra.mxu0 0
        %1671 = vmatprep.subr.bf16.mxu0 0
        %1672 = vmatpush1.bf16.msra.mxu0 0
        %1673 = vmatprep.subr.bf16.mxu0 0
        %1674 = vmatpush1.bf16.msra.mxu0 0
        %1675 = vmatprep.subr.bf16.mxu0 0
        %1676 = vmatpush1.bf16.msra.mxu0 0
        %1677 = vmatprep.subr.bf16.mxu0 0
        %1678 = vmatpush1.bf16.msra.mxu0 0
        %1679 = vmatprep.mubr.bf16.mxu0 0
        %1680 = vmatmul.mubr.bf16.gmra.mrb[0].mxu0 %v496
        %v1681 = vpop.f32.mrb[0].mxu0
        %v1682 = vadd.f32 0.0, %v1681
        %v1683 = vpop.f32.mrb[0].mxu0
        %v1684 = vadd.f32 0.0, %v1683
        %v1685 = vpop.f32.mrb[0].mxu0
        %v1686 = vadd.f32 0.0, %v1685
        %v1687 = vpop.f32.mrb[0].mxu0
        %v1688 = vadd.f32 0.0, %v1687
        %1689 = vdwg.mxu0
        %1690 = vmatprep.subr.bf16.mxu0 %v1520
        %1691 = vmatpush1.bf16.msra.mxu0 %v1519
        %1692 = vmatprep.subr.bf16.mxu0 %v1559
        %1693 = vmatpush1.bf16.msra.mxu0 %v1556
        %1694 = vmatprep.subr.bf16.mxu0 0
        %1695 = vmatpush1.bf16.msra.mxu0 0
        %1696 = vmatprep.subr.bf16.mxu0 0
        %1697 = vmatpush1.bf16.msra.mxu0 0
        %1698 = vmatprep.subr.bf16.mxu0 0
        %1699 = vmatpush1.bf16.msra.mxu0 0
        %1700 = vmatprep.subr.bf16.mxu0 0
        %1701 = vmatpush1.bf16.msra.mxu0 0
        %1702 = vmatprep.subr.bf16.mxu0 0
        %1703 = vmatpush1.bf16.msra.mxu0 0
        %1704 = vmatprep.subr.bf16.mxu0 0
        %1705 = vmatpush1.bf16.msra.mxu0 0
        %1706 = vmatprep.subr.bf16.mxu0 0
        %1707 = vmatpush1.bf16.msra.mxu0 0
        %1708 = vmatprep.subr.bf16.mxu0 0
        %1709 = vmatpush1.bf16.msra.mxu0 0
        %1710 = vmatprep.subr.bf16.mxu0 0
        %1711 = vmatpush1.bf16.msra.mxu0 0
        %1712 = vmatprep.subr.bf16.mxu0 0
        %1713 = vmatpush1.bf16.msra.mxu0 0
        %1714 = vmatprep.subr.bf16.mxu0 0
        %1715 = vmatpush1.bf16.msra.mxu0 0
        %1716 = vmatprep.subr.bf16.mxu0 0
        %1717 = vmatpush1.bf16.msra.mxu0 0
        %1718 = vmatprep.subr.bf16.mxu0 0
        %1719 = vmatpush1.bf16.msra.mxu0 0
        %1720 = vmatprep.subr.bf16.mxu0 0
        %1721 = vmatpush1.bf16.msra.mxu0 0
        %1722 = vmatprep.mubr.bf16.mxu0 0
        %1723 = vmatmul.mubr.bf16.gmra.mrb[0].mxu0 %v496
        %v1724 = vpop.f32.mrb[0].mxu0
        %v1725 = vadd.f32 0.0, %v1724
        %v1726 = vpop.f32.mrb[0].mxu0
        %v1727 = vadd.f32 0.0, %v1726
        %v1728 = vpop.f32.mrb[0].mxu0
        %v1729 = vadd.f32 0.0, %v1728
        %v1730 = vpop.f32.mrb[0].mxu0
        %v1731 = vadd.f32 0.0, %v1730
        %1732 = vdwg.mxu0
        %v1733 = vmul.f32 %v1596, %v701
        %v1734 = vmul.f32 %v1598, %v701
        %v1735 = vmul.f32 %v1639, %v701
        %v1736 = vmul.f32 %v1641, %v701
        %v1737 = vmul.f32 %v1682, %v701
        %v1738 = vmul.f32 %v1684, %v701
        %v1739 = vmul.f32 %v1725, %v701
        %v1740 = vmul.f32 %v1727, %v701
        %v1741 = vmul.f32 %v1600, %v706
        %v1742 = vmul.f32 %v1602, %v706
        %v1743 = vmul.f32 %v1643, %v706
        %v1744 = vmul.f32 %v1645, %v706
        %v1745 = vmul.f32 %v1686, %v706
        %v1746 = vmul.f32 %v1688, %v706
        %v1747 = vmul.f32 %v1729, %v706
        %v1748 = vmul.f32 %v1731, %v706
        %v1749 = vadd.f32 %v1733, %v727
        %v1750 = vadd.f32 %v1734, %v727
        %v1751 = vadd.f32 %v1735, %v727
        %v1752 = vadd.f32 %v1736, %v727
        %v1753 = vadd.f32 %v1737, %v727
        %v1754 = vadd.f32 %v1738, %v727
        %v1755 = vadd.f32 %v1739, %v727
        %v1756 = vadd.f32 %v1740, %v727
        %v1757 = vadd.f32 %v1741, %v732
        %v1758 = vadd.f32 %v1742, %v732
        %v1759 = vadd.f32 %v1743, %v732
        %v1760 = vadd.f32 %v1744, %v732
        %v1761 = vadd.f32 %v1745, %v732
        %v1762 = vadd.f32 %v1746, %v732
        %v1763 = vadd.f32 %v1747, %v732
        %v1764 = vadd.f32 %v1748, %v732
        %v1765 = vmax.f32 %v1749, 0.0
        %v1766 = vmax.f32 %v1750, 0.0
        %v1767 = vmax.f32 %v1751, 0.0
        %v1768 = vmax.f32 %v1752, 0.0
        %v1769 = vmax.f32 %v1753, 0.0
        %v1770 = vmax.f32 %v1754, 0.0
        %v1771 = vmax.f32 %v1755, 0.0
        %v1772 = vmax.f32 %v1756, 0.0
        %v1773 = vmax.f32 %v1757, 0.0
        %v1774 = vmax.f32 %v1758, 0.0
        %v1775 = vmax.f32 %v1759, 0.0
        %v1776 = vmax.f32 %v1760, 0.0
        %v1777 = vmax.f32 %v1761, 0.0
        %v1778 = vmax.f32 %v1762, 0.0
        %v1779 = vmax.f32 %v1763, 0.0
        %v1780 = vmax.f32 %v1764, 0.0
        %v1781 = vmax.f32 %v1432, %v1765
        %v1782 = vmax.f32 %v1433, %v1766
        %v1783 = vmax.f32 %v1434, %v1767
        %v1784 = vmax.f32 %v1435, %v1768
        %v1785 = vmax.f32 %v1436, %v1769
        %v1786 = vmax.f32 %v1437, %v1770
        %v1787 = vmax.f32 %v1438, %v1771
        %v1788 = vmax.f32 %v1439, %v1772
        %v1789 = vmax.f32 %v1440, %v1773
        %v1790 = vmax.f32 %v1441, %v1774
        %v1791 = vmax.f32 %v1442, %v1775
        %v1792 = vmax.f32 %v1443, %v1776
        %v1793 = vmax.f32 %v1444, %v1777
        %v1794 = vmax.f32 %v1445, %v1778
        %v1795 = vmax.f32 %v1446, %v1779
        %v1796 = vmax.f32 %v1447, %v1780
        %v1797 = vmax.f32 %v1099, %v1781
        %v1798 = vmax.f32 %v1100, %v1782
        %v1799 = vmax.f32 %v1101, %v1783
        %v1800 = vmax.f32 %v1102, %v1784
        %v1801 = vmax.f32 %v1103, %v1785
        %v1802 = vmax.f32 %v1104, %v1786
        %v1803 = vmax.f32 %v1105, %v1787
        %v1804 = vmax.f32 %v1106, %v1788
        %v1805 = vmax.f32 %v1107, %v1789
        %v1806 = vmax.f32 %v1108, %v1790
        %v1807 = vmax.f32 %v1109, %v1791
        %v1808 = vmax.f32 %v1110, %v1792
        %v1809 = vmax.f32 %v1111, %v1793
        %v1810 = vmax.f32 %v1112, %v1794
        %v1811 = vmax.f32 %v1113, %v1795
        %v1812 = vmax.f32 %v1114, %v1796
        %v1813 = vld [vmem:[%s4] sm:$0xff]
        %v1814 = vld [vmem:[%s4 + $0x8] sm:$0x3]
        %1816 = vset.pattern.permute.xlu0 0
        %1817 = vperm.xlu0 %1816, %v1813
        %v1818 = vpop.permute.xlu0 %1817
        %1821 = vset.pattern.permute.xlu0 0
        %1822 = vperm.xlu0 %1821, %v1814
        %v1823 = vpop.permute.xlu0 %1822
        %v1825 = vmul.f32 %v1797, %v1818
        %v1826 = vmul.f32 %v1798, %v1818
        %v1827 = vmul.f32 %v1799, %v1818
        %v1828 = vmul.f32 %v1800, %v1818
        %v1829 = vmul.f32 %v1801, %v1818
        %v1830 = vmul.f32 %v1802, %v1818
        %v1831 = vmul.f32 %v1803, %v1818
        %v1832 = vmul.f32 %v1804, %v1818
        %v1833 = vmul.f32 %v1805, %v1823
        %v1834 = vmul.f32 %v1806, %v1823
        %v1835 = vmul.f32 %v1807, %v1823
        %v1836 = vmul.f32 %v1808, %v1823
        %v1837 = vmul.f32 %v1809, %v1823
        %v1838 = vmul.f32 %v1810, %v1823
        %v1839 = vmul.f32 %v1811, %v1823
        %v1840 = vmul.f32 %v1812, %v1823
        %v1841 = vld [vmem:[%s5] sm:$0xff]
        %v1842 = vld [vmem:[%s5 + $0x8] sm:$0x3]
        %1844 = vset.pattern.permute.xlu0 0
        %1845 = vperm.xlu0 %1844, %v1841
        %v1846 = vpop.permute.xlu0 %1845
        %1849 = vset.pattern.permute.xlu0 0
        %1850 = vperm.xlu0 %1849, %v1842
        %v1851 = vpop.permute.xlu0 %1850
        %v1853 = vadd.f32 %v1825, %v1846
        %v1854 = vadd.f32 %v1826, %v1846
        %v1855 = vadd.f32 %v1827, %v1846
        %v1856 = vadd.f32 %v1828, %v1846
        %v1857 = vadd.f32 %v1829, %v1846
        %v1858 = vadd.f32 %v1830, %v1846
        %v1859 = vadd.f32 %v1831, %v1846
        %v1860 = vadd.f32 %v1832, %v1846
        %v1861 = vadd.f32 %v1833, %v1851
        %v1862 = vadd.f32 %v1834, %v1851
        %v1863 = vadd.f32 %v1835, %v1851
        %v1864 = vadd.f32 %v1836, %v1851
        %v1865 = vadd.f32 %v1837, %v1851
        %v1866 = vadd.f32 %v1838, %v1851
        %v1867 = vadd.f32 %v1839, %v1851
        %v1868 = vadd.f32 %v1840, %v1851
        %v1869 = vpack.c.bf16 %v1861, %v1853
        %v1870 = vpack.c.bf16 %v1862, %v1854
        %v1871 = vpack.c.bf16 %v1863, %v1855
        %v1872 = vpack.c.bf16 %v1864, %v1856
        %v1873 = vpack.c.bf16 %v1865, %v1857
        %v1874 = vpack.c.bf16 %v1866, %v1858
        %v1875 = vpack.c.bf16 %v1867, %v1859
        %v1876 = vpack.c.bf16 %v1868, %v1860
        %v1885 = vunpack.c.l.b16 %v1869
        %v1886 = vunpack.c.l.b16 %v1870
        %v1887 = vunpack.c.l.b16 %v1871
        %v1888 = vunpack.c.l.b16 %v1872
        %v1889 = vunpack.c.l.b16 %v1873
        %v1890 = vunpack.c.l.b16 %v1874
        %v1891 = vunpack.c.l.b16 %v1875
        %v1892 = vunpack.c.l.b16 %v1876
        %v1893 = vunpack.c.h.b16 %v1869
        %v1894 = vunpack.c.h.b16 %v1870
        %v1895 = vunpack.c.h.b16 %v1871
        %v1896 = vunpack.c.h.b16 %v1872
        %v1897 = vunpack.c.h.b16 %v1873
        %v1898 = vunpack.c.h.b16 %v1874
        %v1899 = vunpack.c.h.b16 %v1875
        %v1900 = vunpack.c.h.b16 %v1876
        %v1901 = vpack.c.b16 %v1886, %v1885
        %v1902 = vpack.c.b16 %v1888, %v1887
        %v1903 = vpack.c.b16 %v1890, %v1889
        %v1904 = vpack.c.b16 %v1892, %v1891
        %v1905 = vpack.c.b16 %v1894, %v1893
        %v1906 = vpack.c.b16 %v1896, %v1895
        %v1907 = vpack.c.b16 %v1898, %v1897
        %v1908 = vpack.c.b16 %v1900, %v1899
        %1917 = vst [vmem:[%s391] sm:$0xff] %v1901
        %1918 = vst [vmem:[%s391 + $0x8] sm:$0xff] %v1902
        %1919 = vst [vmem:[%s391 + $0x10] sm:$0xff] %v1903
        %1920 = vst [vmem:[%s391 + $0x18] sm:$0xff] %v1904
        %1921 = vst [vmem:[%s391 + $0x20] sm:$0x11] %v1905
        %1922 = vst [vmem:[%s391 + $0x28] sm:$0x11] %v1906
        %1923 = vst [vmem:[%s391 + $0x30] sm:$0x11] %v1907
        %1924 = vst [vmem:[%s391 + $0x38] sm:$0x11] %v1908
        %s1925 = sand.u32 %s156, 1
        %s1926 = sand.u32 %s156, 1
        %s1927 = smul.addr %s1926, 64
        %s1928 = scalar_lea.vmem [#allocation3], %s1927
        // Predicated region
        $region68: #{image_embedding_forward.4} parent=62 // pred_check
          %p1929 = pneg %p166
        $region69: #{image_embedding_forward.4} parent=62 // pred_check_branch
          %1931 = sbr.rel (%p1929) target = $region71
        $region70: #{image_embedding_forward.4} parent=62 // pred_region
          %s1932 = smul.u32 8, %s17
          %s1933 = smul.addr %s1932, 4
          %s1934 = scalar_lea.vmem %s6, %s1933
          // Predicated region
          $region72: #{image_embedding_forward.4} parent=70 // pred_check
            _
          $region73: #{image_embedding_forward.4} parent=70 // pred_check_branch
            %1936 = sbr.rel (0) target = $region75
          $region74: #{image_embedding_forward.4} parent=70 // pred_region
            // Predicated region
            $region76: #{image_embedding_forward.4} parent=74 // pred_check
              _
            $region77: #{image_embedding_forward.4} parent=74 // pred_check_branch
              %1938 = sbr.rel (0) target = $region79
            $region78: #{image_embedding_forward.4} parent=74 // pred_region
              loop: start=0, step=1, limit=1
              $region80: #{image_embedding_forward.4} parent=78 // loop_pre_header
                _
              $region81: #{image_embedding_forward.4} parent=78 // loop_header
                %s1940 = sphi 0, %s1944
                %p1941 = scmp.ge.s32.totalorder %s1940, 1
                %s1945 = sphi %s1928, %s1928
                %s1946 = sphi %s1934, %s1934
              $region82: #{image_embedding_forward.4} parent=78 // loop_header_branch
                %1943 = sbr.rel (%p1941) target = $region86
              $region83: #{image_embedding_forward.4} parent=78 // loop_body
                %v1947 = vld [vmem:[%s1945] sm:$0xff]
                %1948 = vst [vmem:[%s1946] sm:$0xff] %v1947
                %v1949 = vld [vmem:[%s1945 + $0x8] sm:$0xff]
                %1950 = vst [vmem:[%s1946 + $0x8] sm:$0xff] %v1949
                %v1951 = vld [vmem:[%s1945 + $0x10] sm:$0xff]
                %1952 = vst [vmem:[%s1946 + $0x10] sm:$0xff] %v1951
                %v1953 = vld [vmem:[%s1945 + $0x18] sm:$0xff]
                %1954 = vst [vmem:[%s1946 + $0x18] sm:$0xff] %v1953
                %v1955 = vld [vmem:[%s1945 + $0x20] sm:$0xff]
                %1956 = vst [vmem:[%s1946 + $0x40] sm:$0xff] %v1955
                %v1957 = vld [vmem:[%s1945 + $0x28] sm:$0xff]
                %1958 = vst [vmem:[%s1946 + $0x48] sm:$0xff] %v1957
                %v1959 = vld [vmem:[%s1945 + $0x30] sm:$0xff]
                %1960 = vst [vmem:[%s1946 + $0x50] sm:$0xff] %v1959
                %v1961 = vld [vmem:[%s1945 + $0x38] sm:$0xff]
                %1962 = vst [vmem:[%s1946 + $0x58] sm:$0xff] %v1961
              $region84: #{image_embedding_forward.4} parent=78 // loop_footer
                %s1944 = sadd.s32 1, %s1940
              $region85: #{image_embedding_forward.4} parent=78 // loop_footer_branch
                %1939 = sbr.rel target = $region81
              $region86: #{image_embedding_forward.4} parent=78 // loop_exit
                _
            $region79: #{image_embedding_forward.4} parent=74 // pred_fallthru
              _
            // Predicated region
            $region87: #{image_embedding_forward.4} parent=74 // pred_check
              _
            $region88: #{image_embedding_forward.4} parent=74 // pred_check_branch
              %1964 = sbr.rel target = $region90
            $region89: #{image_embedding_forward.4} parent=74 // pred_region
              _
            $region90: #{image_embedding_forward.4} parent=74 // pred_fallthru
              _
          $region75: #{image_embedding_forward.4} parent=70 // pred_fallthru
            _
          %1965 = vnop
        $region71: #{image_embedding_forward.4} parent=62 // pred_fallthru
          _
      $region63: #{image_embedding_forward.4} parent=5 // pred_fallthru
        _
      %p1966 = scmp.le.s32.totalorder 2, %s12
      // Predicated region
      $region91: #{image_embedding_forward.4} parent=5 // pred_check
        %p1967 = pneg %p1966
      $region92: #{image_embedding_forward.4} parent=5 // pred_check_branch
        %1969 = sbr.rel (%p1967) target = $region94
      $region93: #{image_embedding_forward.4} parent=5 // pred_region
        %s1970 = ssub.s32 %s12, 2
        // Predicated region
        $region95: #{image_embedding_forward.4} parent=93 // pred_check
          %p1971 = pneg %p172
        $region96: #{image_embedding_forward.4} parent=93 // pred_check_branch
          %1973 = sbr.rel (%p1971) target = $region98
        $region97: #{image_embedding_forward.4} parent=93 // pred_region
          %s1974 = sand.u32 %s157, 1
          %s1975 = sand.u32 %s157, 1
          %s1976 = smul.addr %s1975, 64
          %s1977 = scalar_lea.vmem [#allocation3], %s1976
        $region98: #{image_embedding_forward.4} parent=93 // pred_fallthru
          _
      $region94: #{image_embedding_forward.4} parent=5 // pred_fallthru
        _
    $region6: #{image_embedding_forward.4} parent=1 // loop_footer
      %s16 = sadd.s32 1, %s12
    $region7: #{image_embedding_forward.4} parent=1 // loop_footer_branch
      %11 = sbr.rel target = $region3
    $region8: #{image_embedding_forward.4} parent=1 // loop_exit
      _

// kernel: image_embedding_forward.5
$region0: #{image_embedding_forward.5}
  #allocation0 [shape = 'u32[]', space=smem, size = 0x4, offset = 0x4, fixed_abs, tag = 'smem constant byte address 0x4 - core index']
  #allocation1 [shape = 'u32[144,128]{1,0:T(1,128)}', space=vmem, size = 0x12000, scoped, tag = 'internal scratch']
  %s0 = inlined_call_operand.vmem [shape: bf16[4,250], index: 0, kind: input, shape index: {}]
  %s1 = inlined_call_operand.vmem [shape: bf16[250,392], index: 1, kind: input, shape index: {}]
  %s2 = inlined_call_operand.vmem [shape: f32[4,1], index: 2, kind: input, shape index: {}]
  %s3 = inlined_call_operand.vmem [shape: bf16[4,392], index: 3, kind: output, shape index: {}]
  %s4 = sld [smem:[#allocation0]]
  $region83: #{image_embedding_forward.5} parent=0
    _
  %s6 = ssub.s32 1, %s4
  %s7 = scalar_select 0, %s6, %s4
  $region1: #{image_embedding_forward.5} parent=0
    #allocation2 [shape = 'u8[262144]{0}', space=vmem, size = 0x40000, scoped, tag = 'input window, operand 1']
    loop: start=0, step=1, limit=4
    $region2: #{image_embedding_forward.5} parent=1 // loop_pre_header
      _
    $region3: #{image_embedding_forward.5} parent=1 // loop_header
      %s9 = sphi 0, %s13
      %p10 = scmp.ge.s32.totalorder %s9, 4
      %s17 = sphi 0, %s17
      %s19 = sphi 0, %s17
      %s20 = sphi 0, %s19
      %s34 = sphi 0, %s20
      %s40 = sphi 0, %s42
      %s43 = sphi 0, %s40
      %s44 = sphi 0, %s43
      %s60 = sphi 0, %s44
      %s64 = sphi 0, %s64
      %s66 = sphi 0, %s64
      %s67 = sphi 0, %s66
      %s81 = sphi 0, %s67
      %s87 = sphi 0, %s89
      %s90 = sphi 0, %s87
      %s91 = sphi 0, %s90
      %s107 = sphi 0, %s91
    $region4: #{image_embedding_forward.5} parent=1 // loop_header_branch
      %12 = sbr.rel (%p10) target = $region8
    $region5: #{image_embedding_forward.5} parent=1 // loop_body
      %s14 = ssub.s32 %s9, 1
      %s15 = ssub.s32 %s9, 2
      %s16 = sadd.s32 %s9, 1
      %s18 = sadd.s32 %s17, 1
      %p21 = scmp.eq.s32.totalorder %s9, 1
      %p22 = scmp.ne.s32.totalorder %s17, %s19
      %p23 = scmp.eq.s32.totalorder %s9, 0
      %p24 = por %p22, %p23
      %p25 = scmp.ne.s32.totalorder %s17, %s19
      %p26 = scmp.eq.s32.totalorder %s14, 1
      %p27 = por %p25, %p26
      %p28 = scmp.ne.s32.totalorder %s19, %s20
      %p29 = scmp.eq.s32.totalorder %s14, 0
      %p30 = por %p28, %p29
      %p31 = scmp.ne.s32.totalorder %s19, %s20
      %p32 = scmp.eq.s32.totalorder %s15, 1
      %p33 = por %p31, %p32
      %p35 = scmp.ne.s32.totalorder %s20, %s34
      %p36 = scmp.eq.s32.totalorder %s15, 0
      %p37 = por %p35, %p36
      %s38 = ssub.s32 %s9, %s16
      %p39 = scmp.eq.s32.totalorder %s38, 0
      %s41 = sadd.s32 %s40, 1
      %s42 = scalar_select %p39, %s40, %s41
      %p45 = pneg %p39
      %p46 = scmp.eq.s32.totalorder %s9, 1
      %p47 = por %p45, %p46
      %p48 = scmp.ne.s32.totalorder %s40, %s43
      %p49 = scmp.eq.s32.totalorder %s9, 0
      %p50 = por %p48, %p49
      %p51 = scmp.ne.s32.totalorder %s40, %s43
      %p52 = scmp.eq.s32.totalorder %s14, 1
      %p53 = por %p51, %p52
      %p54 = scmp.ne.s32.totalorder %s43, %s44
      %p55 = scmp.eq.s32.totalorder %s14, 0
      %p56 = por %p54, %p55
      %p57 = scmp.ne.s32.totalorder %s43, %s44
      %p58 = scmp.eq.s32.totalorder %s15, 1
      %p59 = por %p57, %p58
      %p61 = scmp.ne.s32.totalorder %s44, %s60
      %p62 = scmp.eq.s32.totalorder %s15, 0
      %p63 = por %p61, %p62
      %s65 = sadd.s32 %s64, 1
      %p68 = scmp.eq.s32.totalorder %s9, 1
      %p69 = scmp.ne.s32.totalorder %s64, %s66
      %p70 = scmp.eq.s32.totalorder %s9, 0
      %p71 = por %p69, %p70
      %p72 = scmp.ne.s32.totalorder %s64, %s66
      %p73 = scmp.eq.s32.totalorder %s14, 1
      %p74 = por %p72, %p73
      %p75 = scmp.ne.s32.totalorder %s66, %s67
      %p76 = scmp.eq.s32.totalorder %s14, 0
      %p77 = por %p75, %p76
      %p78 = scmp.ne.s32.totalorder %s66, %s67
      %p79 = scmp.eq.s32.totalorder %s15, 1
      %p80 = por %p78, %p79
      %p82 = scmp.ne.s32.totalorder %s67, %s81
      %p83 = scmp.eq.s32.totalorder %s15, 0
      %p84 = por %p82, %p83
      %s85 = ssub.s32 %s9, %s16
      %p86 = scmp.eq.s32.totalorder %s85, 0
      %s88 = sadd.s32 %s87, 1
      %s89 = scalar_select %p86, %s87, %s88
      %p92 = pneg %p86
      %p93 = scmp.eq.s32.totalorder %s9, 1
      %p94 = por %p92, %p93
      %p95 = scmp.ne.s32.totalorder %s87, %s90
      %p96 = scmp.eq.s32.totalorder %s9, 0
      %p97 = por %p95, %p96
      %p98 = scmp.ne.s32.totalorder %s87, %s90
      %p99 = scmp.eq.s32.totalorder %s14, 1
      %p100 = por %p98, %p99
      %p101 = scmp.ne.s32.totalorder %s90, %s91
      %p102 = scmp.eq.s32.totalorder %s14, 0
      %p103 = por %p101, %p102
      %p104 = scmp.ne.s32.totalorder %s90, %s91
      %p105 = scmp.eq.s32.totalorder %s15, 1
      %p106 = por %p104, %p105
      %p108 = scmp.ne.s32.totalorder %s91, %s107
      %p109 = scmp.eq.s32.totalorder %s15, 0
      %p110 = por %p108, %p109
      %p111 = scmp.le.s32.totalorder 1, %s9
      %p112 = scmp.lt.s32.totalorder %s9, 3
      %p113 = pnand %p111, %p112
      %p114 = pneg %p113
      // Predicated region
      $region9: #{image_embedding_forward.5} parent=5 // pred_check
        _
      $region10: #{image_embedding_forward.5} parent=5 // pred_check_branch
        %116 = sbr.rel (%p113) target = $region12
      $region11: #{image_embedding_forward.5} parent=5 // pred_region
        %s117 = ssub.s32 %s9, 1
        // Predicated region
        $region13: #{image_embedding_forward.5} parent=11 // pred_check
          %p118 = pneg %p30
        $region14: #{image_embedding_forward.5} parent=11 // pred_check_branch
          %120 = sbr.rel (%p118) target = $region16
        $region15: #{image_embedding_forward.5} parent=11 // pred_region
          _
        $region16: #{image_embedding_forward.5} parent=11 // pred_fallthru
          _
        // Predicated region
        $region17: #{image_embedding_forward.5} parent=11 // pred_check
          %p121 = pneg %p77
        $region18: #{image_embedding_forward.5} parent=11 // pred_check_branch
          %123 = sbr.rel (%p121) target = $region20
        $region19: #{image_embedding_forward.5} parent=11 // pred_region
          _
        $region20: #{image_embedding_forward.5} parent=11 // pred_fallthru
          _
      $region12: #{image_embedding_forward.5} parent=5 // pred_fallthru
        _
      %p124 = scmp.lt.s32.totalorder %s9, 2
      // Predicated region
      $region21: #{image_embedding_forward.5} parent=5 // pred_check
        %p125 = pneg %p124
      $region22: #{image_embedding_forward.5} parent=5 // pred_check_branch
        %127 = sbr.rel (%p125) target = $region24
      $region23: #{image_embedding_forward.5} parent=5 // pred_region
        // Predicated region
        $region25: #{image_embedding_forward.5} parent=23 // pred_check
          %p128 = pneg %p50
        $region26: #{image_embedding_forward.5} parent=23 // pred_check_branch
          %130 = sbr.rel (%p128) target = $region28
        $region27: #{image_embedding_forward.5} parent=23 // pred_region
          %s131 = sand.u32 %s40, 1
          %s132 = sand.u32 %s40, 1
          %s133 = smul.addr %s132, 256
          %s134 = scalar_lea.vmem [#allocation2], %s133
          %s135 = smul.u32 2, %s9
          %s136 = smul.addr %s135, 4
          %s137 = scalar_lea.vmem %s1, %s136
          // Predicated region
          $region29: #{image_embedding_forward.5} parent=27 // pred_check
            _
          $region30: #{image_embedding_forward.5} parent=27 // pred_check_branch
            %139 = sbr.rel (0) target = $region32
          $region31: #{image_embedding_forward.5} parent=27 // pred_region
            // Predicated region
            $region33: #{image_embedding_forward.5} parent=31 // pred_check
              _
            $region34: #{image_embedding_forward.5} parent=31 // pred_check_branch
              %141 = sbr.rel (0) target = $region36
            $region35: #{image_embedding_forward.5} parent=31 // pred_region
              // Predicated region
              $region48: #{image_embedding_forward.5} parent=35 // pred_check
                _
              $region49: #{image_embedding_forward.5} parent=35 // pred_check_branch
                %218 = sbr.rel (0) target = $region51
              $region50: #{image_embedding_forward.5} parent=35 // pred_region
                loop: start=0, step=1, limit=1
                $region52: #{image_embedding_forward.5} parent=50 // loop_pre_header
                  _
                $region53: #{image_embedding_forward.5} parent=50 // loop_header
                  %s220 = sphi 0, %s224
                  %p221 = scmp.ge.s32.totalorder %s220, 1
                  %s225 = sphi %s137, %s137
                  %s226 = sphi %s134, %s134
                $region54: #{image_embedding_forward.5} parent=50 // loop_header_branch
                  %223 = sbr.rel (%p221) target = $region58
                $region55: #{image_embedding_forward.5} parent=50 // loop_body
                  %v227 = vld [vmem:[%s225] sm:$0xff]
                  %228 = vst [vmem:[%s226] sm:$0xff] %v227
                  %v229 = vld [vmem:[%s225 + $0x10] sm:$0xff]
                  %230 = vst [vmem:[%s226 + $0x8] sm:$0xff] %v229
                  %v231 = vld [vmem:[%s225 + $0x20] sm:$0xff]
                  %232 = vst [vmem:[%s226 + $0x10] sm:$0xff] %v231
                  %v233 = vld [vmem:[%s225 + $0x30] sm:$0xff]
                  %234 = vst [vmem:[%s226 + $0x18] sm:$0xff] %v233
                  %v235 = vld [vmem:[%s225 + $0x40] sm:$0xff]
                  %236 = vst [vmem:[%s226 + $0x20] sm:$0xff] %v235
                  %v237 = vld [vmem:[%s225 + $0x50] sm:$0xff]
                  %238 = vst [vmem:[%s226 + $0x28] sm:$0xff] %v237
                  %v239 = vld [vmem:[%s225 + $0x60] sm:$0xff]
                  %240 = vst [vmem:[%s226 + $0x30] sm:$0xff] %v239
                  %v241 = vld [vmem:[%s225 + $0x70] sm:$0xff]
                  %242 = vst [vmem:[%s226 + $0x38] sm:$0xff] %v241
                  %v243 = vld [vmem:[%s225 + $0x80] sm:$0xff]
                  %244 = vst [vmem:[%s226 + $0x40] sm:$0xff] %v243
                  %v245 = vld [vmem:[%s225 + $0x90] sm:$0xff]
                  %246 = vst [vmem:[%s226 + $0x48] sm:$0xff] %v245
                  %v247 = vld [vmem:[%s225 + $0xa0] sm:$0xff]
                  %248 = vst [vmem:[%s226 + $0x50] sm:$0xff] %v247
                  %v249 = vld [vmem:[%s225 + $0xb0] sm:$0xff]
                  %250 = vst [vmem:[%s226 + $0x58] sm:$0xff] %v249
                  %v251 = vld [vmem:[%s225 + $0xc0] sm:$0xff]
                  %252 = vst [vmem:[%s226 + $0x60] sm:$0xff] %v251
                  %v253 = vld [vmem:[%s225 + $0xd0] sm:$0xff]
                  %254 = vst [vmem:[%s226 + $0x68] sm:$0xff] %v253
                  %v255 = vld [vmem:[%s225 + $0xe0] sm:$0xff]
                  %256 = vst [vmem:[%s226 + $0x70] sm:$0xff] %v255
                  %v257 = vld [vmem:[%s225 + $0xf0] sm:$0xff]
                  %258 = vst [vmem:[%s226 + $0x78] sm:$0xff] %v257
                  %v259 = vld [vmem:[%s225 + $0x100] sm:$0xff]
                  %260 = vst [vmem:[%s226 + $0x80] sm:$0xff] %v259
                  %v261 = vld [vmem:[%s225 + $0x110] sm:$0xff]
                  %262 = vst [vmem:[%s226 + $0x88] sm:$0xff] %v261
                  %v263 = vld [vmem:[%s225 + $0x120] sm:$0xff]
                  %264 = vst [vmem:[%s226 + $0x90] sm:$0xff] %v263
                  %v265 = vld [vmem:[%s225 + $0x130] sm:$0xff]
                  %266 = vst [vmem:[%s226 + $0x98] sm:$0xff] %v265
                  %v267 = vld [vmem:[%s225 + $0x140] sm:$0xff]
                  %268 = vst [vmem:[%s226 + $0xa0] sm:$0xff] %v267
                  %v269 = vld [vmem:[%s225 + $0x150] sm:$0xff]
                  %270 = vst [vmem:[%s226 + $0xa8] sm:$0xff] %v269
                  %v271 = vld [vmem:[%s225 + $0x160] sm:$0xff]
                  %272 = vst [vmem:[%s226 + $0xb0] sm:$0xff] %v271
                  %v273 = vld [vmem:[%s225 + $0x170] sm:$0xff]
                  %274 = vst [vmem:[%s226 + $0xb8] sm:$0xff] %v273
                  %v275 = vld [vmem:[%s225 + $0x180] sm:$0xff]
                  %276 = vst [vmem:[%s226 + $0xc0] sm:$0xff] %v275
                  %v277 = vld [vmem:[%s225 + $0x190] sm:$0xff]
                  %278 = vst [vmem:[%s226 + $0xc8] sm:$0xff] %v277
                  %v279 = vld [vmem:[%s225 + $0x1a0] sm:$0xff]
                  %280 = vst [vmem:[%s226 + $0xd0] sm:$0xff] %v279
                  %v281 = vld [vmem:[%s225 + $0x1b0] sm:$0xff]
                  %282 = vst [vmem:[%s226 + $0xd8] sm:$0xff] %v281
                  %v283 = vld [vmem:[%s225 + $0x1c0] sm:$0xff]
                  %284 = vst [vmem:[%s226 + $0xe0] sm:$0xff] %v283
                  %v285 = vld [vmem:[%s225 + $0x1d0] sm:$0xff]
                  %286 = vst [vmem:[%s226 + $0xe8] sm:$0xff] %v285
                  %v287 = vld [vmem:[%s225 + $0x1e0] sm:$0xff]
                  %288 = vst [vmem:[%s226 + $0xf0] sm:$0xff] %v287
                  %v289 = vld [vmem:[%s225 + $0x1f0] sm:$0xff]
                  %290 = vst [vmem:[%s226 + $0xf8] sm:$0xff] %v289
                $region56: #{image_embedding_forward.5} parent=50 // loop_footer
                  %s224 = sadd.s32 1, %s220
                $region57: #{image_embedding_forward.5} parent=50 // loop_footer_branch
                  %219 = sbr.rel target = $region53
                $region58: #{image_embedding_forward.5} parent=50 // loop_exit
                  _
              $region51: #{image_embedding_forward.5} parent=35 // pred_fallthru
                _
              // Predicated region
              $region59: #{image_embedding_forward.5} parent=35 // pred_check
                _
              $region60: #{image_embedding_forward.5} parent=35 // pred_check_branch
                %292 = sbr.rel target = $region62
              $region61: #{image_embedding_forward.5} parent=35 // pred_region
                _
              $region62: #{image_embedding_forward.5} parent=35 // pred_fallthru
                _
            $region36: #{image_embedding_forward.5} parent=31 // pred_fallthru
              _
            // Predicated region
            $region37: #{image_embedding_forward.5} parent=31 // pred_check
              _
            $region38: #{image_embedding_forward.5} parent=31 // pred_check_branch
              %143 = sbr.rel target = $region40
            $region39: #{image_embedding_forward.5} parent=31 // pred_region
              loop: start=0, step=1, limit=1
              $region41: #{image_embedding_forward.5} parent=39 // loop_pre_header
                _
              $region42: #{image_embedding_forward.5} parent=39 // loop_header
                %s146 = sphi 0, %s150
                %p147 = scmp.ge.s32.totalorder %s146, 1
                %s151 = sphi %s137, %s137
                %s152 = sphi %s134, %s134
              $region43: #{image_embedding_forward.5} parent=39 // loop_header_branch
                %149 = sbr.rel (%p147) target = $region47
              $region44: #{image_embedding_forward.5} parent=39 // loop_body
                %v153 = vld [vmem:[%s151] sm:$0xff]
                %154 = vst [vmem:[%s152] sm:$0xff] %v153
                %v155 = vld [vmem:[%s151 + $0x10] sm:$0xff]
                %156 = vst [vmem:[%s152 + $0x8] sm:$0xff] %v155
                %v157 = vld [vmem:[%s151 + $0x20] sm:$0xff]
                %158 = vst [vmem:[%s152 + $0x10] sm:$0xff] %v157
                %v159 = vld [vmem:[%s151 + $0x30] sm:$0xff]
                %160 = vst [vmem:[%s152 + $0x18] sm:$0xff] %v159
                %v161 = vld [vmem:[%s151 + $0x40] sm:$0xff]
                %162 = vst [vmem:[%s152 + $0x20] sm:$0xff] %v161
                %v163 = vld [vmem:[%s151 + $0x50] sm:$0xff]
                %164 = vst [vmem:[%s152 + $0x28] sm:$0xff] %v163
                %v165 = vld [vmem:[%s151 + $0x60] sm:$0xff]
                %166 = vst [vmem:[%s152 + $0x30] sm:$0xff] %v165
                %v167 = vld [vmem:[%s151 + $0x70] sm:$0xff]
                %168 = vst [vmem:[%s152 + $0x38] sm:$0xff] %v167
                %v169 = vld [vmem:[%s151 + $0x80] sm:$0xff]
                %170 = vst [vmem:[%s152 + $0x40] sm:$0xff] %v169
                %v171 = vld [vmem:[%s151 + $0x90] sm:$0xff]
                %172 = vst [vmem:[%s152 + $0x48] sm:$0xff] %v171
                %v173 = vld [vmem:[%s151 + $0xa0] sm:$0xff]
                %174 = vst [vmem:[%s152 + $0x50] sm:$0xff] %v173
                %v175 = vld [vmem:[%s151 + $0xb0] sm:$0xff]
                %176 = vst [vmem:[%s152 + $0x58] sm:$0xff] %v175
                %v177 = vld [vmem:[%s151 + $0xc0] sm:$0xff]
                %178 = vst [vmem:[%s152 + $0x60] sm:$0xff] %v177
                %v179 = vld [vmem:[%s151 + $0xd0] sm:$0xff]
                %180 = vst [vmem:[%s152 + $0x68] sm:$0xff] %v179
                %v181 = vld [vmem:[%s151 + $0xe0] sm:$0xff]
                %182 = vst [vmem:[%s152 + $0x70] sm:$0xff] %v181
                %v183 = vld [vmem:[%s151 + $0xf0] sm:$0xff]
                %184 = vst [vmem:[%s152 + $0x78] sm:$0xff] %v183
                %v185 = vld [vmem:[%s151 + $0x100] sm:$0xff]
                %186 = vst [vmem:[%s152 + $0x80] sm:$0xff] %v185
                %v187 = vld [vmem:[%s151 + $0x110] sm:$0xff]
                %188 = vst [vmem:[%s152 + $0x88] sm:$0xff] %v187
                %v189 = vld [vmem:[%s151 + $0x120] sm:$0xff]
                %190 = vst [vmem:[%s152 + $0x90] sm:$0xff] %v189
                %v191 = vld [vmem:[%s151 + $0x130] sm:$0xff]
                %192 = vst [vmem:[%s152 + $0x98] sm:$0xff] %v191
                %v193 = vld [vmem:[%s151 + $0x140] sm:$0xff]
                %194 = vst [vmem:[%s152 + $0xa0] sm:$0xff] %v193
                %v195 = vld [vmem:[%s151 + $0x150] sm:$0xff]
                %196 = vst [vmem:[%s152 + $0xa8] sm:$0xff] %v195
                %v197 = vld [vmem:[%s151 + $0x160] sm:$0xff]
                %198 = vst [vmem:[%s152 + $0xb0] sm:$0xff] %v197
                %v199 = vld [vmem:[%s151 + $0x170] sm:$0xff]
                %200 = vst [vmem:[%s152 + $0xb8] sm:$0xff] %v199
                %v201 = vld [vmem:[%s151 + $0x180] sm:$0xff]
                %202 = vst [vmem:[%s152 + $0xc0] sm:$0xff] %v201
                %v203 = vld [vmem:[%s151 + $0x190] sm:$0xff]
                %204 = vst [vmem:[%s152 + $0xc8] sm:$0xff] %v203
                %v205 = vld [vmem:[%s151 + $0x1a0] sm:$0xff]
                %206 = vst [vmem:[%s152 + $0xd0] sm:$0xff] %v205
                %v207 = vld [vmem:[%s151 + $0x1b0] sm:$0xff]
                %208 = vst [vmem:[%s152 + $0xd8] sm:$0xff] %v207
                %v209 = vld [vmem:[%s151 + $0x1c0] sm:$0xff]
                %210 = vst [vmem:[%s152 + $0xe0] sm:$0xff] %v209
                %v211 = vld [vmem:[%s151 + $0x1d0] sm:$0xff]
                %212 = vst [vmem:[%s152 + $0xe8] sm:$0xff] %v211
                %v213 = vld [vmem:[%s151 + $0x1e0] sm:$0xff]
                %214 = vst [vmem:[%s152 + $0xf0] sm:$0xff] %v213
                %v215 = vld [vmem:[%s151 + $0x1f0] sm:$0xff]
                %216 = vst [vmem:[%s152 + $0xf8] sm:$0xff] %v215
              $region45: #{image_embedding_forward.5} parent=39 // loop_footer
                %s150 = sadd.s32 1, %s146
              $region46: #{image_embedding_forward.5} parent=39 // loop_footer_branch
                %145 = sbr.rel target = $region42
              $region47: #{image_embedding_forward.5} parent=39 // loop_exit
                _
            $region40: #{image_embedding_forward.5} parent=31 // pred_fallthru
              _
          $region32: #{image_embedding_forward.5} parent=27 // pred_fallthru
            _
          %293 = vnop
        $region28: #{image_embedding_forward.5} parent=23 // pred_fallthru
          _
      $region24: #{image_embedding_forward.5} parent=5 // pred_fallthru
        _
      %p294 = scmp.le.s32.totalorder 1, %s9
      %p295 = scmp.lt.s32.totalorder %s9, 3
      %p296 = pnand %p294, %p295
      %p297 = pneg %p296
      // Predicated region
      $region63: #{image_embedding_forward.5} parent=5 // pred_check
        _
      $region64: #{image_embedding_forward.5} parent=5 // pred_check_branch
        %299 = sbr.rel (%p296) target = $region66
      $region65: #{image_embedding_forward.5} parent=5 // pred_region
        %s300 = ssub.s32 %s9, 1
        %s301 = sand.u32 %s43, 1
        %s302 = sand.u32 %s43, 1
        %s303 = smul.addr %s302, 256
        %s304 = scalar_lea.vmem [#allocation2], %s303
        // Predicated region
        $region67: #{image_embedding_forward.5} parent=65 // pred_check
          %p305 = pneg %p56
        $region68: #{image_embedding_forward.5} parent=65 // pred_check_branch
          %307 = sbr.rel (%p305) target = $region70
        $region69: #{image_embedding_forward.5} parent=65 // pred_region
          _
        $region70: #{image_embedding_forward.5} parent=65 // pred_fallthru
          _
        %p308 = pneg %p30
        %p309 = pneg %p27
        %s310 = sand.u32 %s43, 1
        %s311 = sand.u32 %s43, 1
        %s312 = smul.addr %s311, 256
        %s313 = scalar_lea.vmem [#allocation2], %s312
        %p314 = pneg %p56
        %p315 = pneg %p53
        %p316 = pneg %p77
        %p317 = pneg %p74
        %p318 = pneg %p103
        %p319 = pneg %p100
        %s320 = smul.u32 2, %s14
        %p321 = scmp.lt.s32.totalorder %s320, 3
        %s322 = scalar_select %p321, %s320, 3
        %s323 = smul.addr %s322, 2
        %s324 = scalar_lea.vmem %s3, %s323
        %s325 = smul.u32 2, %s14
        %s326 = smul.u32 2, %s14
        %p327 = scmp.lt.s32.totalorder %s326, 3
        %s328 = scalar_select %p327, %s326, 3
        %s329 = smul.addr %s328, 2
        %s330 = scalar_lea.vmem %s3, %s329
        %s331 = smul.u32 2, %s14
        %v332 = vld [vmem:[%s0] sm:$0xf]
        %v333 = vld [vmem:[%s304] sm:$0xff]
        %v334 = vld [vmem:[%s304 + $0x8] sm:$0xff]
        %v335 = vld [vmem:[%s304 + $0x10] sm:$0xff]
        %v336 = vld [vmem:[%s304 + $0x18] sm:$0xff]
        %v337 = vld [vmem:[%s304 + $0x20] sm:$0xff]
        %v338 = vld [vmem:[%s304 + $0x28] sm:$0xff]
        %v339 = vld [vmem:[%s304 + $0x30] sm:$0xff]
        %v340 = vld [vmem:[%s304 + $0x38] sm:$0xff]
        %v341 = vld [vmem:[%s304 + $0x40] sm:$0xff]
        %v342 = vld [vmem:[%s304 + $0x48] sm:$0xff]
        %v343 = vld [vmem:[%s304 + $0x50] sm:$0xff]
        %v344 = vld [vmem:[%s304 + $0x58] sm:$0xff]
        %v345 = vld [vmem:[%s304 + $0x60] sm:$0xff]
        %v346 = vld [vmem:[%s304 + $0x68] sm:$0xff]
        %v347 = vld [vmem:[%s304 + $0x70] sm:$0xff]
        %v348 = vld [vmem:[%s304 + $0x78] sm:$0xff]
        %v349 = vld [vmem:[%s304 + $0x80] sm:$0xff]
        %v350 = vld [vmem:[%s304 + $0x88] sm:$0xff]
        %v351 = vld [vmem:[%s304 + $0x90] sm:$0xff]
        %v352 = vld [vmem:[%s304 + $0x98] sm:$0xff]
        %v353 = vld [vmem:[%s304 + $0xa0] sm:$0xff]
        %v354 = vld [vmem:[%s304 + $0xa8] sm:$0xff]
        %v355 = vld [vmem:[%s304 + $0xb0] sm:$0xff]
        %v356 = vld [vmem:[%s304 + $0xb8] sm:$0xff]
        %v357 = vld [vmem:[%s304 + $0xc0] sm:$0xff]
        %v358 = vld [vmem:[%s304 + $0xc8] sm:$0xff]
        %v359 = vld [vmem:[%s304 + $0xd0] sm:$0xff]
        %v360 = vld [vmem:[%s304 + $0xd8] sm:$0xff]
        %v361 = vld [vmem:[%s304 + $0xe0] sm:$0xff]
        %v362 = vld [vmem:[%s304 + $0xe8] sm:$0xff]
        %v363 = vld [vmem:[%s304 + $0xf0] sm:$0xff]
        %v364 = vld [vmem:[%s304 + $0xf8] sm:$0x11]
        %v365 = vld [vmem:[%s2] sm:$0xf]
        %367 = vset.pattern.permute.xlu0 0
        %368 = vperm.xlu0 %367, %v365
        %v369 = vpop.permute.xlu0 %368
        %v373 = vunpack.c.l.s4 1983009808
        %v374 = vunpack.c.0.s8 %v373
        %v375 = vlaneseq
        %v376 = vshrl.u32 %v375, 7
        %v377 = vsub.s32 %v374, %v376
        %v378 = vrot.slane %v332, %v377
        %v379 = vcombine.high %v378, %v378
        %v413 = vunpack.c.l.b16 %v333
        %v414 = vunpack.c.h.b16 %v333
        %v415 = vunpack.c.l.b16 %v334
        %v416 = vunpack.c.h.b16 %v334
        %v417 = vunpack.c.l.b16 %v335
        %v418 = vunpack.c.h.b16 %v335
        %v419 = vunpack.c.l.b16 %v336
        %v420 = vunpack.c.h.b16 %v336
        %v421 = vunpack.c.l.b16 %v337
        %v422 = vunpack.c.h.b16 %v337
        %v423 = vunpack.c.l.b16 %v338
        %v424 = vunpack.c.h.b16 %v338
        %v425 = vunpack.c.l.b16 %v339
        %v426 = vunpack.c.h.b16 %v339
        %v427 = vunpack.c.l.b16 %v340
        %v428 = vunpack.c.h.b16 %v340
        %v429 = vunpack.c.l.b16 %v341
        %v430 = vunpack.c.h.b16 %v341
        %v431 = vunpack.c.l.b16 %v342
        %v432 = vunpack.c.h.b16 %v342
        %v433 = vunpack.c.l.b16 %v343
        %v434 = vunpack.c.h.b16 %v343
        %v435 = vunpack.c.l.b16 %v344
        %v436 = vunpack.c.h.b16 %v344
        %v437 = vunpack.c.l.b16 %v345
        %v438 = vunpack.c.h.b16 %v345
        %v439 = vunpack.c.l.b16 %v346
        %v440 = vunpack.c.h.b16 %v346
        %v441 = vunpack.c.l.b16 %v347
        %v442 = vunpack.c.h.b16 %v347
        %v443 = vunpack.c.l.b16 %v348
        %v444 = vunpack.c.h.b16 %v348
        %v445 = vunpack.c.l.b16 %v349
        %v446 = vunpack.c.h.b16 %v349
        %v447 = vunpack.c.l.b16 %v350
        %v448 = vunpack.c.h.b16 %v350
        %v449 = vunpack.c.l.b16 %v351
        %v450 = vunpack.c.h.b16 %v351
        %v451 = vunpack.c.l.b16 %v352
        %v452 = vunpack.c.h.b16 %v352
        %v453 = vunpack.c.l.b16 %v353
        %v454 = vunpack.c.h.b16 %v353
        %v455 = vunpack.c.l.b16 %v354
        %v456 = vunpack.c.h.b16 %v354
        %v457 = vunpack.c.l.b16 %v355
        %v458 = vunpack.c.h.b16 %v355
        %v459 = vunpack.c.l.b16 %v356
        %v460 = vunpack.c.h.b16 %v356
        %v461 = vunpack.c.l.b16 %v357
        %v462 = vunpack.c.h.b16 %v357
        %v463 = vunpack.c.l.b16 %v358
        %v464 = vunpack.c.h.b16 %v358
        %v465 = vunpack.c.l.b16 %v359
        %v466 = vunpack.c.h.b16 %v359
        %v467 = vunpack.c.l.b16 %v360
        %v468 = vunpack.c.h.b16 %v360
        %v469 = vunpack.c.l.b16 %v361
        %v470 = vunpack.c.h.b16 %v361
        %v471 = vunpack.c.l.b16 %v362
        %v472 = vunpack.c.h.b16 %v362
        %v473 = vunpack.c.l.b16 %v363
        %v474 = vunpack.c.h.b16 %v363
        %v475 = vunpack.c.l.b16 %v364
        %v476 = vunpack.c.h.b16 %v364
        %v477 = vpack.c.b16 %v415, %v413
        %v478 = vpack.c.b16 %v416, %v414
        %v479 = vpack.c.b16 %v419, %v417
        %v480 = vpack.c.b16 %v420, %v418
        %v481 = vpack.c.b16 %v423, %v421
        %v482 = vpack.c.b16 %v424, %v422
        %v483 = vpack.c.b16 %v427, %v425
        %v484 = vpack.c.b16 %v428, %v426
        %v485 = vpack.c.b16 %v431, %v429
        %v486 = vpack.c.b16 %v432, %v430
        %v487 = vpack.c.b16 %v435, %v433
        %v488 = vpack.c.b16 %v436, %v434
        %v489 = vpack.c.b16 %v439, %v437
        %v490 = vpack.c.b16 %v440, %v438
        %v491 = vpack.c.b16 %v443, %v441
        %v492 = vpack.c.b16 %v444, %v442
        %v493 = vpack.c.b16 %v447, %v445
        %v494 = vpack.c.b16 %v448, %v446
        %v495 = vpack.c.b16 %v451, %v449
        %v496 = vpack.c.b16 %v452, %v450
        %v497 = vpack.c.b16 %v455, %v453
        %v498 = vpack.c.b16 %v456, %v454
        %v499 = vpack.c.b16 %v459, %v457
        %v500 = vpack.c.b16 %v460, %v458
        %v501 = vpack.c.b16 %v463, %v461
        %v502 = vpack.c.b16 %v464, %v462
        %v503 = vpack.c.b16 %v467, %v465
        %v504 = vpack.c.b16 %v468, %v466
        %v505 = vpack.c.b16 %v471, %v469
        %v506 = vpack.c.b16 %v472, %v470
        %v507 = vpack.c.b16 %v475, %v473
        %v508 = vpack.c.b16 %v476, %v474
        %vm539 = vcmask 998400
        %v541 = vsel %vm539, %v379, 0
        %vm543 = vcmask 1044480
        %v545 = vsel %vm543, %v507, 0
        %v548 = vsel %vm543, %v508, 0
        %550 = vmatprep.subr.bf16.mxu0 %v478
        %551 = vmatpush1.bf16.msra.mxu0 %v477
        %552 = vmatprep.subr.bf16.mxu0 %v480
        %553 = vmatpush1.bf16.msra.mxu0 %v479
        %554 = vmatprep.subr.bf16.mxu0 %v482
        %555 = vmatpush1.bf16.msra.mxu0 %v481
        %556 = vmatprep.subr.bf16.mxu0 %v484
        %557 = vmatpush1.bf16.msra.mxu0 %v483
        %558 = vmatprep.subr.bf16.mxu0 %v486
        %559 = vmatpush1.bf16.msra.mxu0 %v485
        %560 = vmatprep.subr.bf16.mxu0 %v488
        %561 = vmatpush1.bf16.msra.mxu0 %v487
        %562 = vmatprep.subr.bf16.mxu0 %v490
        %563 = vmatpush1.bf16.msra.mxu0 %v489
        %564 = vmatprep.subr.bf16.mxu0 %v492
        %565 = vmatpush1.bf16.msra.mxu0 %v491
        %566 = vmatprep.subr.bf16.mxu0 %v494
        %567 = vmatpush1.bf16.msra.mxu0 %v493
        %568 = vmatprep.subr.bf16.mxu0 %v496
        %569 = vmatpush1.bf16.msra.mxu0 %v495
        %570 = vmatprep.subr.bf16.mxu0 %v498
        %571 = vmatpush1.bf16.msra.mxu0 %v497
        %572 = vmatprep.subr.bf16.mxu0 %v500
        %573 = vmatpush1.bf16.msra.mxu0 %v499
        %574 = vmatprep.subr.bf16.mxu0 %v502
        %575 = vmatpush1.bf16.msra.mxu0 %v501
        %576 = vmatprep.subr.bf16.mxu0 %v504
        %577 = vmatpush1.bf16.msra.mxu0 %v503
        %578 = vmatprep.subr.bf16.mxu0 %v506
        %579 = vmatpush1.bf16.msra.mxu0 %v505
        %580 = vmatprep.subr.bf16.mxu0 %v548
        %581 = vmatpush1.bf16.msra.mxu0 %v545
        %582 = vmatprep.mubr.bf16.mxu0 %v541
        %583 = vmatmul.mubr.bf16.gmra.mrb[0].mxu0 %v378
        %v584 = vpop.f32.mrb[0].mxu0
        %v585 = vadd.f32 %v369, %v584
        %v586 = vpop.f32.mrb[0].mxu0
        %v587 = vadd.f32 %v369, %v586
        %v588 = vpop.f32.mrb[0].mxu0
        %v589 = vpop.f32.mrb[0].mxu0
        %590 = vdwg.mxu0
        %v591 = vmax.f32 %v585, 0.0
        %v592 = vmax.f32 %v587, 0.0
        %v593 = vpack.c.bf16 %v591, %v591
        %v594 = vpack.c.bf16 %v592, %v592
        %v597 = vcombine.low %v593, %v594
        %v599 = vunpack.c.l.s4 1983009808
        %v600 = vunpack.c.0.s8 %v599
        %v601 = vlaneseq
        %v602 = vshrl.u32 %v601, 7
        %v603 = vsub.s32 %v600, %v602
        %v604 = vrot.slane %v597, %v603
        %606 = vst [vmem:[%s330] sm:$0xf] %v604
        %s607 = smul.u32 2, %s14
        %p608 = scmp.lt.s32.totalorder %s607, 3
        %s609 = scalar_select %p608, %s607, 3
        %s610 = smul.addr %s609, 2
        %s611 = scalar_lea.vmem %s3, %s610
        // Predicated region
        $region71: #{image_embedding_forward.5} parent=65 // pred_check
          %p612 = pneg %p100
        $region72: #{image_embedding_forward.5} parent=65 // pred_check_branch
          %614 = sbr.rel (%p612) target = $region74
        $region73: #{image_embedding_forward.5} parent=65 // pred_region
          %s615 = smul.u32 2, %s14
        $region74: #{image_embedding_forward.5} parent=65 // pred_fallthru
          _
      $region66: #{image_embedding_forward.5} parent=5 // pred_fallthru
        _
      %p616 = scmp.le.s32.totalorder 2, %s9
      // Predicated region
      $region75: #{image_embedding_forward.5} parent=5 // pred_check
        %p617 = pneg %p616
      $region76: #{image_embedding_forward.5} parent=5 // pred_check_branch
        %619 = sbr.rel (%p617) target = $region78
      $region77: #{image_embedding_forward.5} parent=5 // pred_region
        %s620 = ssub.s32 %s9, 2
        // Predicated region
        $region79: #{image_embedding_forward.5} parent=77 // pred_check
          %p621 = pneg %p106
        $region80: #{image_embedding_forward.5} parent=77 // pred_check_branch
          %623 = sbr.rel (%p621) target = $region82
        $region81: #{image_embedding_forward.5} parent=77 // pred_region
          %s624 = smul.u32 2, %s15
          %p625 = scmp.lt.s32.totalorder %s624, 3
          %s626 = scalar_select %p625, %s624, 3
          %s627 = smul.addr %s626, 2
          %s628 = scalar_lea.vmem %s3, %s627
        $region82: #{image_embedding_forward.5} parent=77 // pred_fallthru
          _
      $region78: #{image_embedding_forward.5} parent=5 // pred_fallthru
        _
    $region6: #{image_embedding_forward.5} parent=1 // loop_footer
      %s13 = sadd.s32 1, %s9
    $region7: #{image_embedding_forward.5} parent=1 // loop_footer_branch
      %8 = sbr.rel target = $region3
    $region8: #{image_embedding_forward.5} parent=1 // loop_exit
      _

// kernel: image_embedding_forward.6
$region0: #{image_embedding_forward.6}
  #allocation0 [shape = 'u32[]', space=smem, size = 0x4, offset = 0x4, fixed_abs, tag = 'smem constant byte address 0x4 - core index']
  #allocation1 [shape = 'u32[144,128]{1,0:T(1,128)}', space=vmem, size = 0x12000, scoped, tag = 'internal scratch']
  %s0 = inlined_call_operand.vmem [shape: bf16[4,196], index: 0, kind: input, shape index: {}]
  %s1 = inlined_call_operand.vmem [shape: bf16[196,128], index: 1, kind: input, shape index: {}]
  %s2 = inlined_call_operand.vmem [shape: f32[4,1], index: 2, kind: input, shape index: {}]
  %s3 = inlined_call_operand.vmem [shape: bf16[4,128], index: 3, kind: output, shape index: {}]
  %s4 = sld [smem:[#allocation0]]
  $region22: #{image_embedding_forward.6} parent=0
    _
  %s6 = ssub.s32 1, %s4
  %s7 = scalar_select 0, %s6, %s4
  // Predicated region
  $region2: #{image_embedding_forward.6} parent=0 // pred_check
    _
  $region3: #{image_embedding_forward.6} parent=0 // pred_check_branch
    %9 = sbr.rel (0) target = $region5
  $region4: #{image_embedding_forward.6} parent=0 // pred_region
    _
  $region5: #{image_embedding_forward.6} parent=0 // pred_fallthru
    _
  // Predicated region
  $region6: #{image_embedding_forward.6} parent=0 // pred_check
    _
  $region7: #{image_embedding_forward.6} parent=0 // pred_check_branch
    %11 = sbr.rel (0) target = $region9
  $region8: #{image_embedding_forward.6} parent=0 // pred_region
    _
  $region9: #{image_embedding_forward.6} parent=0 // pred_fallthru
    _
  // Predicated region
  $region10: #{image_embedding_forward.6} parent=0 // pred_check
    _
  $region11: #{image_embedding_forward.6} parent=0 // pred_check_branch
    %13 = sbr.rel (0) target = $region13
  $region12: #{image_embedding_forward.6} parent=0 // pred_region
    _
  $region13: #{image_embedding_forward.6} parent=0 // pred_fallthru
    _
  %v15 = vld [vmem:[%s0] sm:$0xf]
  %v16 = vld [vmem:[%s1] sm:$0xf]
  %v17 = vld [vmem:[%s1 + $0x4] sm:$0xf]
  %v18 = vld [vmem:[%s1 + $0x8] sm:$0xf]
  %v19 = vld [vmem:[%s1 + $0xc] sm:$0xf]
  %v20 = vld [vmem:[%s1 + $0x10] sm:$0xf]
  %v21 = vld [vmem:[%s1 + $0x14] sm:$0xf]
  %v22 = vld [vmem:[%s1 + $0x18] sm:$0xf]
  %v23 = vld [vmem:[%s1 + $0x1c] sm:$0xf]
  %v24 = vld [vmem:[%s1 + $0x20] sm:$0xf]
  %v25 = vld [vmem:[%s1 + $0x24] sm:$0xf]
  %v26 = vld [vmem:[%s1 + $0x28] sm:$0xf]
  %v27 = vld [vmem:[%s1 + $0x2c] sm:$0xf]
  %v28 = vld [vmem:[%s1 + $0x30] sm:$0xf]
  %v29 = vld [vmem:[%s1 + $0x34] sm:$0xf]
  %v30 = vld [vmem:[%s1 + $0x38] sm:$0xf]
  %v31 = vld [vmem:[%s1 + $0x3c] sm:$0xf]
  %v32 = vld [vmem:[%s1 + $0x40] sm:$0xf]
  %v33 = vld [vmem:[%s1 + $0x44] sm:$0xf]
  %v34 = vld [vmem:[%s1 + $0x48] sm:$0xf]
  %v35 = vld [vmem:[%s1 + $0x4c] sm:$0xf]
  %v36 = vld [vmem:[%s1 + $0x50] sm:$0xf]
  %v37 = vld [vmem:[%s1 + $0x54] sm:$0xf]
  %v38 = vld [vmem:[%s1 + $0x58] sm:$0xf]
  %v39 = vld [vmem:[%s1 + $0x5c] sm:$0xf]
  %v40 = vld [vmem:[%s1 + $0x60] sm:$0x3]
  %v41 = vld [vmem:[%s2] sm:$0xf]
  %43 = vset.pattern.permute.xlu0 0
  %44 = vperm.xlu0 %43, %v41
  %v45 = vpop.permute.xlu0 %44
  %v49 = vunpack.c.l.s4 1983009808
  %v50 = vunpack.c.0.s8 %v49
  %v51 = vlaneseq
  %v52 = vshrl.u32 %v51, 7
  %v53 = vsub.s32 %v50, %v52
  %v54 = vrot.slane %v15, %v53
  %v55 = vcombine.high %v54, %v54
  %v82 = vunpack.c.l.b16 %v16
  %v83 = vunpack.c.l.b16 %v17
  %v84 = vunpack.c.l.b16 %v18
  %v85 = vunpack.c.l.b16 %v19
  %v86 = vunpack.c.l.b16 %v20
  %v87 = vunpack.c.l.b16 %v21
  %v88 = vunpack.c.l.b16 %v22
  %v89 = vunpack.c.l.b16 %v23
  %v90 = vunpack.c.l.b16 %v24
  %v91 = vunpack.c.l.b16 %v25
  %v92 = vunpack.c.l.b16 %v26
  %v93 = vunpack.c.l.b16 %v27
  %v94 = vunpack.c.l.b16 %v28
  %v95 = vunpack.c.l.b16 %v29
  %v96 = vunpack.c.l.b16 %v30
  %v97 = vunpack.c.l.b16 %v31
  %v98 = vunpack.c.l.b16 %v32
  %v99 = vunpack.c.l.b16 %v33
  %v100 = vunpack.c.l.b16 %v34
  %v101 = vunpack.c.l.b16 %v35
  %v102 = vunpack.c.l.b16 %v36
  %v103 = vunpack.c.l.b16 %v37
  %v104 = vunpack.c.l.b16 %v38
  %v105 = vunpack.c.l.b16 %v39
  %v106 = vunpack.c.l.b16 %v40
  %v107 = vpack.c.b16 %v83, %v82
  %v108 = vpack.c.b16 %v85, %v84
  %v109 = vpack.c.b16 %v87, %v86
  %v110 = vpack.c.b16 %v89, %v88
  %v111 = vpack.c.b16 %v91, %v90
  %v112 = vpack.c.b16 %v93, %v92
  %v113 = vpack.c.b16 %v95, %v94
  %v114 = vpack.c.b16 %v97, %v96
  %v115 = vpack.c.b16 %v99, %v98
  %v116 = vpack.c.b16 %v101, %v100
  %v117 = vpack.c.b16 %v103, %v102
  %v118 = vpack.c.b16 %v105, %v104
  %v119 = vpack.c.b16 %v106, %v106
  %vm132 = vcmask 556032
  %v134 = vsel %vm132, %v55, 0
  %vm136 = vcmask 1041408
  %v138 = vsel %vm136, %v119, 0
  %140 = vmatprep.subr.bf16.mxu0 0
  %141 = vmatpush1.bf16.msra.mxu0 %v107
  %142 = vmatprep.subr.bf16.mxu0 0
  %143 = vmatpush1.bf16.msra.mxu0 %v108
  %144 = vmatprep.subr.bf16.mxu0 0
  %145 = vmatpush1.bf16.msra.mxu0 %v109
  %146 = vmatprep.subr.bf16.mxu0 0
  %147 = vmatpush1.bf16.msra.mxu0 %v110
  %148 = vmatprep.subr.bf16.mxu0 0
  %149 = vmatpush1.bf16.msra.mxu0 %v111
  %150 = vmatprep.subr.bf16.mxu0 0
  %151 = vmatpush1.bf16.msra.mxu0 %v112
  %152 = vmatprep.subr.bf16.mxu0 0
  %153 = vmatpush1.bf16.msra.mxu0 %v113
  %154 = vmatprep.subr.bf16.mxu0 0
  %155 = vmatpush1.bf16.msra.mxu0 %v114
  %156 = vmatprep.subr.bf16.mxu0 0
  %157 = vmatpush1.bf16.msra.mxu0 %v115
  %158 = vmatprep.subr.bf16.mxu0 0
  %159 = vmatpush1.bf16.msra.mxu0 %v116
  %160 = vmatprep.subr.bf16.mxu0 0
  %161 = vmatpush1.bf16.msra.mxu0 %v117
  %162 = vmatprep.subr.bf16.mxu0 0
  %163 = vmatpush1.bf16.msra.mxu0 %v118
  %164 = vmatprep.subr.bf16.mxu0 0
  %165 = vmatpush1.bf16.msra.mxu0 %v138
  %166 = vmatprep.subr.bf16.mxu0 0
  %167 = vmatpush1.bf16.msra.mxu0 0
  %168 = vmatprep.subr.bf16.mxu0 0
  %169 = vmatpush1.bf16.msra.mxu0 0
  %170 = vmatprep.subr.bf16.mxu0 0
  %171 = vmatpush1.bf16.msra.mxu0 0
  %172 = vmatprep.mubr.bf16.mxu0 %v134
  %173 = vmatmul.mubr.bf16.gmra.mrb[0].mxu0 %v54
  %v174 = vpop.f32.mrb[0].mxu0
  %v175 = vadd.f32 %v45, %v174
  %v176 = vpop.f32.mrb[0].mxu0
  %v177 = vpop.f32.mrb[0].mxu0
  %v178 = vpop.f32.mrb[0].mxu0
  %179 = vdwg.mxu0
  %v180 = vpack.c.bf16 %v175, %v175
  %181 = vst [vmem:[%s3] sm:$0x3] %v180
  // Predicated region
  $region14: #{image_embedding_forward.6} parent=0 // pred_check
    _
  $region15: #{image_embedding_forward.6} parent=0 // pred_check_branch
    %183 = sbr.rel (0) target = $region17
  $region16: #{image_embedding_forward.6} parent=0 // pred_region
    _
  $region17: #{image_embedding_forward.6} parent=0 // pred_fallthru
    _
  // Predicated region
  $region18: #{image_embedding_forward.6} parent=0 // pred_check
    _
  $region19: #{image_embedding_forward.6} parent=0 // pred_check_branch
    %185 = sbr.rel (0) target = $region21
  $region20: #{image_embedding_forward.6} parent=0 // pred_region
    _
  $region21: #{image_embedding_forward.6} parent=0 // pred_fallthru
    _

// kernel: image_embedding_forward.7
$region0: #{image_embedding_forward.7}
  #allocation0 [shape = 'u32[]', space=smem, size = 0x4, offset = 0x4, fixed_abs, tag = 'smem constant byte address 0x4 - core index']
  #allocation1 [shape = 'u32[144,128]{1,0:T(1,128)}', space=vmem, size = 0x12000, scoped, tag = 'internal scratch']
  %s0 = inlined_call_operand.vmem [shape: bf16[2,256], index: 0, kind: input, shape index: {}]
  %s1 = inlined_call_operand.vmem [shape: bf16[256,256], index: 1, kind: input, shape index: {}]
  %s2 = inlined_call_operand.vmem [shape: f32[1,256], index: 2, kind: input, shape index: {}]
  %s3 = inlined_call_operand.hbm [shape: f32[2,256], index: 3, kind: output, shape index: {}]
  %s4 = sld [smem:[#allocation0]]
  $region86: #{image_embedding_forward.7} parent=0
    _
  %s6 = ssub.s32 1, %s4
  %s7 = scalar_select 0, %s6, %s4
  $region1: #{image_embedding_forward.7} parent=0
    #allocation2 [shape = 'u8[131072]{0}', space=vmem, size = 0x20000, scoped, tag = 'input window, operand 1']
    #allocation3 [shape = 'u8[2048]{0}', space=vmem, size = 0x800, scoped, tag = 'output window, operand 0']
    #allocation4 [shape = 's32[2]{0}', space=sflag, size = 0x8, scoped, tag = 'scoped memory for image_embedding_forward.7']
    %8 = vsyncpa [#allocation4], 0
    %s9 = scalar_lea.sflag [#allocation4], 1
    %10 = vsyncpa %s9, 0
    loop: start=0, step=1, limit=4
    $region2: #{image_embedding_forward.7} parent=1 // loop_pre_header
      _
    $region3: #{image_embedding_forward.7} parent=1 // loop_header
      %s12 = sphi 0, %s16
      %p13 = scmp.ge.s32.totalorder %s12, 4
      %s20 = sphi 0, %s20
      %s22 = sphi 0, %s20
      %s23 = sphi 0, %s22
      %s37 = sphi 0, %s23
      %s43 = sphi 0, %s45
      %s46 = sphi 0, %s43
      %s47 = sphi 0, %s46
      %s63 = sphi 0, %s47
      %s69 = sphi 0, %s71
      %s72 = sphi 0, %s69
      %s73 = sphi 0, %s72
      %s89 = sphi 0, %s73
      %s95 = sphi 0, %s97
      %s98 = sphi 0, %s95
      %s99 = sphi 0, %s98
      %s115 = sphi 0, %s99
    $region4: #{image_embedding_forward.7} parent=1 // loop_header_branch
      %15 = sbr.rel (%p13) target = $region8
    $region5: #{image_embedding_forward.7} parent=1 // loop_body
      %s17 = ssub.s32 %s12, 1
      %s18 = ssub.s32 %s12, 2
      %s19 = sadd.s32 %s12, 1
      %s21 = sadd.s32 %s20, 1
      %p24 = scmp.eq.s32.totalorder %s12, 1
      %p25 = scmp.ne.s32.totalorder %s20, %s22
      %p26 = scmp.eq.s32.totalorder %s12, 0
      %p27 = por %p25, %p26
      %p28 = scmp.ne.s32.totalorder %s20, %s22
      %p29 = scmp.eq.s32.totalorder %s17, 1
      %p30 = por %p28, %p29
      %p31 = scmp.ne.s32.totalorder %s22, %s23
      %p32 = scmp.eq.s32.totalorder %s17, 0
      %p33 = por %p31, %p32
      %p34 = scmp.ne.s32.totalorder %s22, %s23
      %p35 = scmp.eq.s32.totalorder %s18, 1
      %p36 = por %p34, %p35
      %p38 = scmp.ne.s32.totalorder %s23, %s37
      %p39 = scmp.eq.s32.totalorder %s18, 0
      %p40 = por %p38, %p39
      %s41 = ssub.s32 %s12, %s19
      %p42 = scmp.eq.s32.totalorder %s41, 0
      %s44 = sadd.s32 %s43, 1
      %s45 = scalar_select %p42, %s43, %s44
      %p48 = pneg %p42
      %p49 = scmp.eq.s32.totalorder %s12, 1
      %p50 = por %p48, %p49
      %p51 = scmp.ne.s32.totalorder %s43, %s46
      %p52 = scmp.eq.s32.totalorder %s12, 0
      %p53 = por %p51, %p52
      %p54 = scmp.ne.s32.totalorder %s43, %s46
      %p55 = scmp.eq.s32.totalorder %s17, 1
      %p56 = por %p54, %p55
      %p57 = scmp.ne.s32.totalorder %s46, %s47
      %p58 = scmp.eq.s32.totalorder %s17, 0
      %p59 = por %p57, %p58
      %p60 = scmp.ne.s32.totalorder %s46, %s47
      %p61 = scmp.eq.s32.totalorder %s18, 1
      %p62 = por %p60, %p61
      %p64 = scmp.ne.s32.totalorder %s47, %s63
      %p65 = scmp.eq.s32.totalorder %s18, 0
      %p66 = por %p64, %p65
      %s67 = ssub.s32 %s12, %s19
      %p68 = scmp.eq.s32.totalorder %s67, 0
      %s70 = sadd.s32 %s69, 1
      %s71 = scalar_select %p68, %s69, %s70
      %p74 = pneg %p68
      %p75 = scmp.eq.s32.totalorder %s12, 1
      %p76 = por %p74, %p75
      %p77 = scmp.ne.s32.totalorder %s69, %s72
      %p78 = scmp.eq.s32.totalorder %s12, 0
      %p79 = por %p77, %p78
      %p80 = scmp.ne.s32.totalorder %s69, %s72
      %p81 = scmp.eq.s32.totalorder %s17, 1
      %p82 = por %p80, %p81
      %p83 = scmp.ne.s32.totalorder %s72, %s73
      %p84 = scmp.eq.s32.totalorder %s17, 0
      %p85 = por %p83, %p84
      %p86 = scmp.ne.s32.totalorder %s72, %s73
      %p87 = scmp.eq.s32.totalorder %s18, 1
      %p88 = por %p86, %p87
      %p90 = scmp.ne.s32.totalorder %s73, %s89
      %p91 = scmp.eq.s32.totalorder %s18, 0
      %p92 = por %p90, %p91
      %s93 = ssub.s32 %s12, %s19
      %p94 = scmp.eq.s32.totalorder %s93, 0
      %s96 = sadd.s32 %s95, 1
      %s97 = scalar_select %p94, %s95, %s96
      %p100 = pneg %p94
      %p101 = scmp.eq.s32.totalorder %s12, 1
      %p102 = por %p100, %p101
      %p103 = scmp.ne.s32.totalorder %s95, %s98
      %p104 = scmp.eq.s32.totalorder %s12, 0
      %p105 = por %p103, %p104
      %p106 = scmp.ne.s32.totalorder %s95, %s98
      %p107 = scmp.eq.s32.totalorder %s17, 1
      %p108 = por %p106, %p107
      %p109 = scmp.ne.s32.totalorder %s98, %s99
      %p110 = scmp.eq.s32.totalorder %s17, 0
      %p111 = por %p109, %p110
      %p112 = scmp.ne.s32.totalorder %s98, %s99
      %p113 = scmp.eq.s32.totalorder %s18, 1
      %p114 = por %p112, %p113
      %p116 = scmp.ne.s32.totalorder %s99, %s115
      %p117 = scmp.eq.s32.totalorder %s18, 0
      %p118 = por %p116, %p117
      %p119 = scmp.le.s32.totalorder 1, %s12
      %p120 = scmp.lt.s32.totalorder %s12, 3
      %p121 = pnand %p119, %p120
      %p122 = pneg %p121
      // Predicated region
      $region9: #{image_embedding_forward.7} parent=5 // pred_check
        _
      $region10: #{image_embedding_forward.7} parent=5 // pred_check_branch
        %124 = sbr.rel (%p121) target = $region12
      $region11: #{image_embedding_forward.7} parent=5 // pred_region
        %s125 = ssub.s32 %s12, 1
        // Predicated region
        $region13: #{image_embedding_forward.7} parent=11 // pred_check
          %p126 = pneg %p33
        $region14: #{image_embedding_forward.7} parent=11 // pred_check_branch
          %128 = sbr.rel (%p126) target = $region16
        $region15: #{image_embedding_forward.7} parent=11 // pred_region
          _
        $region16: #{image_embedding_forward.7} parent=11 // pred_fallthru
          _
      $region12: #{image_embedding_forward.7} parent=5 // pred_fallthru
        _
      %p129 = scmp.lt.s32.totalorder %s12, 2
      // Predicated region
      $region17: #{image_embedding_forward.7} parent=5 // pred_check
        %p130 = pneg %p129
      $region18: #{image_embedding_forward.7} parent=5 // pred_check_branch
        %132 = sbr.rel (%p130) target = $region20
      $region19: #{image_embedding_forward.7} parent=5 // pred_region
        // Predicated region
        $region21: #{image_embedding_forward.7} parent=19 // pred_check
          %p133 = pneg %p53
        $region22: #{image_embedding_forward.7} parent=19 // pred_check_branch
          %135 = sbr.rel (%p133) target = $region24
        $region23: #{image_embedding_forward.7} parent=19 // pred_region
          %s136 = sand.u32 %s43, 1
          %s137 = sand.u32 %s43, 1
          %s138 = smul.addr %s137, 128
          %s139 = scalar_lea.vmem [#allocation2], %s138
          %s140 = smul.addr %s12, 4
          %s141 = scalar_lea.vmem %s1, %s140
          // Predicated region
          $region25: #{image_embedding_forward.7} parent=23 // pred_check
            _
          $region26: #{image_embedding_forward.7} parent=23 // pred_check_branch
            %143 = sbr.rel (0) target = $region28
          $region27: #{image_embedding_forward.7} parent=23 // pred_region
            // Predicated region
            $region29: #{image_embedding_forward.7} parent=27 // pred_check
              _
            $region30: #{image_embedding_forward.7} parent=27 // pred_check_branch
              %145 = sbr.rel target = $region32
            $region31: #{image_embedding_forward.7} parent=27 // pred_region
              // Predicated region
              $region44: #{image_embedding_forward.7} parent=31 // pred_check
                _
              $region45: #{image_embedding_forward.7} parent=31 // pred_check_branch
                %222 = sbr.rel (0) target = $region47
              $region46: #{image_embedding_forward.7} parent=31 // pred_region
                loop: start=0, step=1, limit=1
                $region48: #{image_embedding_forward.7} parent=46 // loop_pre_header
                  _
                $region49: #{image_embedding_forward.7} parent=46 // loop_header
                  %s224 = sphi 0, %s228
                  %p225 = scmp.ge.s32.totalorder %s224, 1
                  %s229 = sphi %s141, %s141
                  %s230 = sphi %s139, %s139
                $region50: #{image_embedding_forward.7} parent=46 // loop_header_branch
                  %227 = sbr.rel (%p225) target = $region54
                $region51: #{image_embedding_forward.7} parent=46 // loop_body
                  _
                $region52: #{image_embedding_forward.7} parent=46 // loop_footer
                  %s228 = sadd.s32 1, %s224
                $region53: #{image_embedding_forward.7} parent=46 // loop_footer_branch
                  %223 = sbr.rel target = $region49
                $region54: #{image_embedding_forward.7} parent=46 // loop_exit
                  _
                loop: start=0, step=1, limit=1
                $region55: #{image_embedding_forward.7} parent=46 // loop_pre_header
                  _
                $region56: #{image_embedding_forward.7} parent=46 // loop_header
                  %s233 = sphi 0, %s237
                  %p234 = scmp.ge.s32.totalorder %s233, 1
                  %s238 = sphi %s141, %s141
                  %s239 = sphi %s139, %s139
                $region57: #{image_embedding_forward.7} parent=46 // loop_header_branch
                  %236 = sbr.rel (%p234) target = $region61
                $region58: #{image_embedding_forward.7} parent=46 // loop_body
                  %v240 = vld [vmem:[%s238] sm:$0xf]
                  %241 = vst [vmem:[%s239] sm:$0xf] %v240
                  %v242 = vld [vmem:[%s238 + $0x8] sm:$0xf]
                  %243 = vst [vmem:[%s239 + $0x4] sm:$0xf] %v242
                  %v244 = vld [vmem:[%s238 + $0x10] sm:$0xf]
                  %245 = vst [vmem:[%s239 + $0x8] sm:$0xf] %v244
                  %v246 = vld [vmem:[%s238 + $0x18] sm:$0xf]
                  %247 = vst [vmem:[%s239 + $0xc] sm:$0xf] %v246
                  %v248 = vld [vmem:[%s238 + $0x20] sm:$0xf]
                  %249 = vst [vmem:[%s239 + $0x10] sm:$0xf] %v248
                  %v250 = vld [vmem:[%s238 + $0x28] sm:$0xf]
                  %251 = vst [vmem:[%s239 + $0x14] sm:$0xf] %v250
                  %v252 = vld [vmem:[%s238 + $0x30] sm:$0xf]
                  %253 = vst [vmem:[%s239 + $0x18] sm:$0xf] %v252
                  %v254 = vld [vmem:[%s238 + $0x38] sm:$0xf]
                  %255 = vst [vmem:[%s239 + $0x1c] sm:$0xf] %v254
                  %v256 = vld [vmem:[%s238 + $0x40] sm:$0xf]
                  %257 = vst [vmem:[%s239 + $0x20] sm:$0xf] %v256
                  %v258 = vld [vmem:[%s238 + $0x48] sm:$0xf]
                  %259 = vst [vmem:[%s239 + $0x24] sm:$0xf] %v258
                  %v260 = vld [vmem:[%s238 + $0x50] sm:$0xf]
                  %261 = vst [vmem:[%s239 + $0x28] sm:$0xf] %v260
                  %v262 = vld [vmem:[%s238 + $0x58] sm:$0xf]
                  %263 = vst [vmem:[%s239 + $0x2c] sm:$0xf] %v262
                  %v264 = vld [vmem:[%s238 + $0x60] sm:$0xf]
                  %265 = vst [vmem:[%s239 + $0x30] sm:$0xf] %v264
                  %v266 = vld [vmem:[%s238 + $0x68] sm:$0xf]
                  %267 = vst [vmem:[%s239 + $0x34] sm:$0xf] %v266
                  %v268 = vld [vmem:[%s238 + $0x70] sm:$0xf]
                  %269 = vst [vmem:[%s239 + $0x38] sm:$0xf] %v268
                  %v270 = vld [vmem:[%s238 + $0x78] sm:$0xf]
                  %271 = vst [vmem:[%s239 + $0x3c] sm:$0xf] %v270
                  %v272 = vld [vmem:[%s238 + $0x80] sm:$0xf]
                  %273 = vst [vmem:[%s239 + $0x40] sm:$0xf] %v272
                  %v274 = vld [vmem:[%s238 + $0x88] sm:$0xf]
                  %275 = vst [vmem:[%s239 + $0x44] sm:$0xf] %v274
                  %v276 = vld [vmem:[%s238 + $0x90] sm:$0xf]
                  %277 = vst [vmem:[%s239 + $0x48] sm:$0xf] %v276
                  %v278 = vld [vmem:[%s238 + $0x98] sm:$0xf]
                  %279 = vst [vmem:[%s239 + $0x4c] sm:$0xf] %v278
                  %v280 = vld [vmem:[%s238 + $0xa0] sm:$0xf]
                  %281 = vst [vmem:[%s239 + $0x50] sm:$0xf] %v280
                  %v282 = vld [vmem:[%s238 + $0xa8] sm:$0xf]
                  %283 = vst [vmem:[%s239 + $0x54] sm:$0xf] %v282
                  %v284 = vld [vmem:[%s238 + $0xb0] sm:$0xf]
                  %285 = vst [vmem:[%s239 + $0x58] sm:$0xf] %v284
                  %v286 = vld [vmem:[%s238 + $0xb8] sm:$0xf]
                  %287 = vst [vmem:[%s239 + $0x5c] sm:$0xf] %v286
                  %v288 = vld [vmem:[%s238 + $0xc0] sm:$0xf]
                  %289 = vst [vmem:[%s239 + $0x60] sm:$0xf] %v288
                  %v290 = vld [vmem:[%s238 + $0xc8] sm:$0xf]
                  %291 = vst [vmem:[%s239 + $0x64] sm:$0xf] %v290
                  %v292 = vld [vmem:[%s238 + $0xd0] sm:$0xf]
                  %293 = vst [vmem:[%s239 + $0x68] sm:$0xf] %v292
                  %v294 = vld [vmem:[%s238 + $0xd8] sm:$0xf]
                  %295 = vst [vmem:[%s239 + $0x6c] sm:$0xf] %v294
                  %v296 = vld [vmem:[%s238 + $0xe0] sm:$0xf]
                  %297 = vst [vmem:[%s239 + $0x70] sm:$0xf] %v296
                  %v298 = vld [vmem:[%s238 + $0xe8] sm:$0xf]
                  %299 = vst [vmem:[%s239 + $0x74] sm:$0xf] %v298
                  %v300 = vld [vmem:[%s238 + $0xf0] sm:$0xf]
                  %301 = vst [vmem:[%s239 + $0x78] sm:$0xf] %v300
                  %v302 = vld [vmem:[%s238 + $0xf8] sm:$0xf]
                  %303 = vst [vmem:[%s239 + $0x7c] sm:$0xf] %v302
                $region59: #{image_embedding_forward.7} parent=46 // loop_footer
                  %s237 = sadd.s32 1, %s233
                $region60: #{image_embedding_forward.7} parent=46 // loop_footer_branch
                  %232 = sbr.rel target = $region56
                $region61: #{image_embedding_forward.7} parent=46 // loop_exit
                  _
              $region47: #{image_embedding_forward.7} parent=31 // pred_fallthru
                _
            $region32: #{image_embedding_forward.7} parent=27 // pred_fallthru
              _
            // Predicated region
            $region33: #{image_embedding_forward.7} parent=27 // pred_check
              _
            $region34: #{image_embedding_forward.7} parent=27 // pred_check_branch
              %147 = sbr.rel (0) target = $region36
            $region35: #{image_embedding_forward.7} parent=27 // pred_region
              loop: start=0, step=1, limit=1
              $region37: #{image_embedding_forward.7} parent=35 // loop_pre_header
                _
              $region38: #{image_embedding_forward.7} parent=35 // loop_header
                %s150 = sphi 0, %s154
                %p151 = scmp.ge.s32.totalorder %s150, 1
                %s155 = sphi %s141, %s141
                %s156 = sphi %s139, %s139
              $region39: #{image_embedding_forward.7} parent=35 // loop_header_branch
                %153 = sbr.rel (%p151) target = $region43
              $region40: #{image_embedding_forward.7} parent=35 // loop_body
                %v157 = vld [vmem:[%s155] sm:$0xf]
                %158 = vst [vmem:[%s156] sm:$0xf] %v157
                %v159 = vld [vmem:[%s155 + $0x8] sm:$0xf]
                %160 = vst [vmem:[%s156 + $0x4] sm:$0xf] %v159
                %v161 = vld [vmem:[%s155 + $0x10] sm:$0xf]
                %162 = vst [vmem:[%s156 + $0x8] sm:$0xf] %v161
                %v163 = vld [vmem:[%s155 + $0x18] sm:$0xf]
                %164 = vst [vmem:[%s156 + $0xc] sm:$0xf] %v163
                %v165 = vld [vmem:[%s155 + $0x20] sm:$0xf]
                %166 = vst [vmem:[%s156 + $0x10] sm:$0xf] %v165
                %v167 = vld [vmem:[%s155 + $0x28] sm:$0xf]
                %168 = vst [vmem:[%s156 + $0x14] sm:$0xf] %v167
                %v169 = vld [vmem:[%s155 + $0x30] sm:$0xf]
                %170 = vst [vmem:[%s156 + $0x18] sm:$0xf] %v169
                %v171 = vld [vmem:[%s155 + $0x38] sm:$0xf]
                %172 = vst [vmem:[%s156 + $0x1c] sm:$0xf] %v171
                %v173 = vld [vmem:[%s155 + $0x40] sm:$0xf]
                %174 = vst [vmem:[%s156 + $0x20] sm:$0xf] %v173
                %v175 = vld [vmem:[%s155 + $0x48] sm:$0xf]
                %176 = vst [vmem:[%s156 + $0x24] sm:$0xf] %v175
                %v177 = vld [vmem:[%s155 + $0x50] sm:$0xf]
                %178 = vst [vmem:[%s156 + $0x28] sm:$0xf] %v177
                %v179 = vld [vmem:[%s155 + $0x58] sm:$0xf]
                %180 = vst [vmem:[%s156 + $0x2c] sm:$0xf] %v179
                %v181 = vld [vmem:[%s155 + $0x60] sm:$0xf]
                %182 = vst [vmem:[%s156 + $0x30] sm:$0xf] %v181
                %v183 = vld [vmem:[%s155 + $0x68] sm:$0xf]
                %184 = vst [vmem:[%s156 + $0x34] sm:$0xf] %v183
                %v185 = vld [vmem:[%s155 + $0x70] sm:$0xf]
                %186 = vst [vmem:[%s156 + $0x38] sm:$0xf] %v185
                %v187 = vld [vmem:[%s155 + $0x78] sm:$0xf]
                %188 = vst [vmem:[%s156 + $0x3c] sm:$0xf] %v187
                %v189 = vld [vmem:[%s155 + $0x80] sm:$0xf]
                %190 = vst [vmem:[%s156 + $0x40] sm:$0xf] %v189
                %v191 = vld [vmem:[%s155 + $0x88] sm:$0xf]
                %192 = vst [vmem:[%s156 + $0x44] sm:$0xf] %v191
                %v193 = vld [vmem:[%s155 + $0x90] sm:$0xf]
                %194 = vst [vmem:[%s156 + $0x48] sm:$0xf] %v193
                %v195 = vld [vmem:[%s155 + $0x98] sm:$0xf]
                %196 = vst [vmem:[%s156 + $0x4c] sm:$0xf] %v195
                %v197 = vld [vmem:[%s155 + $0xa0] sm:$0xf]
                %198 = vst [vmem:[%s156 + $0x50] sm:$0xf] %v197
                %v199 = vld [vmem:[%s155 + $0xa8] sm:$0xf]
                %200 = vst [vmem:[%s156 + $0x54] sm:$0xf] %v199
                %v201 = vld [vmem:[%s155 + $0xb0] sm:$0xf]
                %202 = vst [vmem:[%s156 + $0x58] sm:$0xf] %v201
                %v203 = vld [vmem:[%s155 + $0xb8] sm:$0xf]
                %204 = vst [vmem:[%s156 + $0x5c] sm:$0xf] %v203
                %v205 = vld [vmem:[%s155 + $0xc0] sm:$0xf]
                %206 = vst [vmem:[%s156 + $0x60] sm:$0xf] %v205
                %v207 = vld [vmem:[%s155 + $0xc8] sm:$0xf]
                %208 = vst [vmem:[%s156 + $0x64] sm:$0xf] %v207
                %v209 = vld [vmem:[%s155 + $0xd0] sm:$0xf]
                %210 = vst [vmem:[%s156 + $0x68] sm:$0xf] %v209
                %v211 = vld [vmem:[%s155 + $0xd8] sm:$0xf]
                %212 = vst [vmem:[%s156 + $0x6c] sm:$0xf] %v211
                %v213 = vld [vmem:[%s155 + $0xe0] sm:$0xf]
                %214 = vst [vmem:[%s156 + $0x70] sm:$0xf] %v213
                %v215 = vld [vmem:[%s155 + $0xe8] sm:$0xf]
                %216 = vst [vmem:[%s156 + $0x74] sm:$0xf] %v215
                %v217 = vld [vmem:[%s155 + $0xf0] sm:$0xf]
                %218 = vst [vmem:[%s156 + $0x78] sm:$0xf] %v217
                %v219 = vld [vmem:[%s155 + $0xf8] sm:$0xf]
                %220 = vst [vmem:[%s156 + $0x7c] sm:$0xf] %v219
              $region41: #{image_embedding_forward.7} parent=35 // loop_footer
                %s154 = sadd.s32 1, %s150
              $region42: #{image_embedding_forward.7} parent=35 // loop_footer_branch
                %149 = sbr.rel target = $region38
              $region43: #{image_embedding_forward.7} parent=35 // loop_exit
                _
            $region36: #{image_embedding_forward.7} parent=27 // pred_fallthru
              _
          $region28: #{image_embedding_forward.7} parent=23 // pred_fallthru
            _
          %304 = vnop
        $region24: #{image_embedding_forward.7} parent=19 // pred_fallthru
          _
        // Predicated region
        $region62: #{image_embedding_forward.7} parent=19 // pred_check
          %p305 = pneg %p79
        $region63: #{image_embedding_forward.7} parent=19 // pred_check_branch
          %307 = sbr.rel (%p305) target = $region65
        $region64: #{image_embedding_forward.7} parent=19 // pred_region
          %p308 = scmp.lt.s32.totalorder %s12, 1
          %s309 = scalar_select %p308, %s12, 1
          %s310 = scalar_lea.vmem %s2, %s309
        $region65: #{image_embedding_forward.7} parent=19 // pred_fallthru
          _
      $region20: #{image_embedding_forward.7} parent=5 // pred_fallthru
        _
      %p311 = scmp.le.s32.totalorder 1, %s12
      %p312 = scmp.lt.s32.totalorder %s12, 3
      %p313 = pnand %p311, %p312
      %p314 = pneg %p313
      // Predicated region
      $region66: #{image_embedding_forward.7} parent=5 // pred_check
        _
      $region67: #{image_embedding_forward.7} parent=5 // pred_check_branch
        %316 = sbr.rel (%p313) target = $region69
      $region68: #{image_embedding_forward.7} parent=5 // pred_region
        %s317 = ssub.s32 %s12, 1
        %s318 = sand.u32 %s46, 1
        %s319 = sand.u32 %s46, 1
        %s320 = smul.addr %s319, 128
        %s321 = scalar_lea.vmem [#allocation2], %s320
        // Predicated region
        $region70: #{image_embedding_forward.7} parent=68 // pred_check
          %p322 = pneg %p59
        $region71: #{image_embedding_forward.7} parent=68 // pred_check_branch
          %324 = sbr.rel (%p322) target = $region73
        $region72: #{image_embedding_forward.7} parent=68 // pred_region
          _
        $region73: #{image_embedding_forward.7} parent=68 // pred_fallthru
          _
        %p325 = pneg %p33
        %p326 = pneg %p30
        %s327 = sand.u32 %s46, 1
        %s328 = sand.u32 %s46, 1
        %s329 = smul.addr %s328, 128
        %s330 = scalar_lea.vmem [#allocation2], %s329
        %p331 = pneg %p59
        %p332 = pneg %p56
        %p333 = scmp.lt.s32.totalorder %s17, 1
        %s334 = scalar_select %p333, %s17, 1
        %s335 = scalar_lea.vmem %s2, %s334
        %p336 = pneg %p85
        %p337 = pneg %p82
        %p338 = pneg %p111
        %p339 = pneg %p108
        %s340 = sand.u32 %s98, 1
        %s341 = scalar_lea.sflag [#allocation4], %s340
        %s342 = sand.u32 %s98, 1
        %s343 = smul.addr %s342, 2
        %s344 = scalar_lea.vmem [#allocation3], %s343
        %p345 = scmp.lt.s32.totalorder %s17, 1
        %s346 = scalar_select %p345, %s17, 1
        %s347 = scalar_lea.vmem %s2, %s346
        %v349 = vld [vmem:[%s0] sm:$0x3]
        %v350 = vld [vmem:[%s321] sm:$0xf]
        %v351 = vld [vmem:[%s321 + $0x4] sm:$0xf]
        %v352 = vld [vmem:[%s321 + $0x8] sm:$0xf]
        %v353 = vld [vmem:[%s321 + $0xc] sm:$0xf]
        %v354 = vld [vmem:[%s321 + $0x10] sm:$0xf]
        %v355 = vld [vmem:[%s321 + $0x14] sm:$0xf]
        %v356 = vld [vmem:[%s321 + $0x18] sm:$0xf]
        %v357 = vld [vmem:[%s321 + $0x1c] sm:$0xf]
        %v358 = vld [vmem:[%s321 + $0x20] sm:$0xf]
        %v359 = vld [vmem:[%s321 + $0x24] sm:$0xf]
        %v360 = vld [vmem:[%s321 + $0x28] sm:$0xf]
        %v361 = vld [vmem:[%s321 + $0x2c] sm:$0xf]
        %v362 = vld [vmem:[%s321 + $0x30] sm:$0xf]
        %v363 = vld [vmem:[%s321 + $0x34] sm:$0xf]
        %v364 = vld [vmem:[%s321 + $0x38] sm:$0xf]
        %v365 = vld [vmem:[%s321 + $0x3c] sm:$0xf]
        %v366 = vld [vmem:[%s321 + $0x40] sm:$0xf]
        %v367 = vld [vmem:[%s321 + $0x44] sm:$0xf]
        %v368 = vld [vmem:[%s321 + $0x48] sm:$0xf]
        %v369 = vld [vmem:[%s321 + $0x4c] sm:$0xf]
        %v370 = vld [vmem:[%s321 + $0x50] sm:$0xf]
        %v371 = vld [vmem:[%s321 + $0x54] sm:$0xf]
        %v372 = vld [vmem:[%s321 + $0x58] sm:$0xf]
        %v373 = vld [vmem:[%s321 + $0x5c] sm:$0xf]
        %v374 = vld [vmem:[%s321 + $0x60] sm:$0xf]
        %v375 = vld [vmem:[%s321 + $0x64] sm:$0xf]
        %v376 = vld [vmem:[%s321 + $0x68] sm:$0xf]
        %v377 = vld [vmem:[%s321 + $0x6c] sm:$0xf]
        %v378 = vld [vmem:[%s321 + $0x70] sm:$0xf]
        %v379 = vld [vmem:[%s321 + $0x74] sm:$0xf]
        %v380 = vld [vmem:[%s321 + $0x78] sm:$0xf]
        %v381 = vld [vmem:[%s321 + $0x7c] sm:$0xf]
        %v382 = vld [vmem:[%s347] sm:$0x1]
        %v384 = vlaneseq
        %v385 = vshrl.u32 %v384, 7
        %v386 = vsub.s32 0, %v385
        %v387 = vrot.slane %v382, %v386
        %v391 = vunpack.c.l.s4 1966171168
        %v392 = vunpack.c.0.s8 %v391
        %v393 = vlaneseq
        %v394 = vshrl.u32 %v393, 7
        %v395 = vsub.s32 %v392, %v394
        %v396 = vrot.slane %v349, %v395
        %v397 = vcombine.high %v396, %v396
        %v399 = vunpack.c.l.s4 1966171168
        %v400 = vunpack.c.0.s8 %v399
        %v401 = vlaneseq
        %v402 = vshrl.u32 %v401, 7
        %v403 = vsub.s32 %v400, %v402
        %v404 = vrot.slane %v396, %v403
        %v406 = vunpack.c.l.s4 1966171168
        %v407 = vunpack.c.0.s8 %v406
        %v408 = vlaneseq
        %v409 = vshrl.u32 %v408, 7
        %v410 = vsub.s32 %v407, %v409
        %v411 = vrot.slane %v397, %v410
        %v446 = vunpack.c.l.b16 %v350
        %v447 = vunpack.c.l.b16 %v351
        %v448 = vunpack.c.l.b16 %v352
        %v449 = vunpack.c.l.b16 %v353
        %v450 = vunpack.c.l.b16 %v354
        %v451 = vunpack.c.l.b16 %v355
        %v452 = vunpack.c.l.b16 %v356
        %v453 = vunpack.c.l.b16 %v357
        %v454 = vunpack.c.l.b16 %v358
        %v455 = vunpack.c.l.b16 %v359
        %v456 = vunpack.c.l.b16 %v360
        %v457 = vunpack.c.l.b16 %v361
        %v458 = vunpack.c.l.b16 %v362
        %v459 = vunpack.c.l.b16 %v363
        %v460 = vunpack.c.l.b16 %v364
        %v461 = vunpack.c.l.b16 %v365
        %v462 = vunpack.c.l.b16 %v366
        %v463 = vunpack.c.l.b16 %v367
        %v464 = vunpack.c.l.b16 %v368
        %v465 = vunpack.c.l.b16 %v369
        %v466 = vunpack.c.l.b16 %v370
        %v467 = vunpack.c.l.b16 %v371
        %v468 = vunpack.c.l.b16 %v372
        %v469 = vunpack.c.l.b16 %v373
        %v470 = vunpack.c.l.b16 %v374
        %v471 = vunpack.c.l.b16 %v375
        %v472 = vunpack.c.l.b16 %v376
        %v473 = vunpack.c.l.b16 %v377
        %v474 = vunpack.c.l.b16 %v378
        %v475 = vunpack.c.l.b16 %v379
        %v476 = vunpack.c.l.b16 %v380
        %v477 = vunpack.c.l.b16 %v381
        %v478 = vpack.c.b16 %v447, %v446
        %v479 = vpack.c.b16 %v449, %v448
        %v480 = vpack.c.b16 %v451, %v450
        %v481 = vpack.c.b16 %v453, %v452
        %v482 = vpack.c.b16 %v455, %v454
        %v483 = vpack.c.b16 %v457, %v456
        %v484 = vpack.c.b16 %v459, %v458
        %v485 = vpack.c.b16 %v461, %v460
        %v486 = vpack.c.b16 %v463, %v462
        %v487 = vpack.c.b16 %v465, %v464
        %v488 = vpack.c.b16 %v467, %v466
        %v489 = vpack.c.b16 %v469, %v468
        %v490 = vpack.c.b16 %v471, %v470
        %v491 = vpack.c.b16 %v473, %v472
        %v492 = vpack.c.b16 %v475, %v474
        %v493 = vpack.c.b16 %v477, %v476
        %510 = vmatprep.subr.bf16.mxu0 0
        %511 = vmatpush1.bf16.msra.mxu0 %v478
        %512 = vmatprep.subr.bf16.mxu0 0
        %513 = vmatpush1.bf16.msra.mxu0 %v479
        %514 = vmatprep.subr.bf16.mxu0 0
        %515 = vmatpush1.bf16.msra.mxu0 %v480
        %516 = vmatprep.subr.bf16.mxu0 0
        %517 = vmatpush1.bf16.msra.mxu0 %v481
        %518 = vmatprep.subr.bf16.mxu0 0
        %519 = vmatpush1.bf16.msra.mxu0 %v482
        %520 = vmatprep.subr.bf16.mxu0 0
        %521 = vmatpush1.bf16.msra.mxu0 %v483
        %522 = vmatprep.subr.bf16.mxu0 0
        %523 = vmatpush1.bf16.msra.mxu0 %v484
        %524 = vmatprep.subr.bf16.mxu0 0
        %525 = vmatpush1.bf16.msra.mxu0 %v485
        %526 = vmatprep.subr.bf16.mxu0 0
        %527 = vmatpush1.bf16.msra.mxu0 %v486
        %528 = vmatprep.subr.bf16.mxu0 0
        %529 = vmatpush1.bf16.msra.mxu0 %v487
        %530 = vmatprep.subr.bf16.mxu0 0
        %531 = vmatpush1.bf16.msra.mxu0 %v488
        %532 = vmatprep.subr.bf16.mxu0 0
        %533 = vmatpush1.bf16.msra.mxu0 %v489
        %534 = vmatprep.subr.bf16.mxu0 0
        %535 = vmatpush1.bf16.msra.mxu0 %v490
        %536 = vmatprep.subr.bf16.mxu0 0
        %537 = vmatpush1.bf16.msra.mxu0 %v491
        %538 = vmatprep.subr.bf16.mxu0 0
        %539 = vmatpush1.bf16.msra.mxu0 %v492
        %540 = vmatprep.subr.bf16.mxu0 0
        %541 = vmatpush1.bf16.msra.mxu0 %v493
        %542 = vmatprep.mubr.bf16.mxu0 %v411
        %543 = vmatmul.mubr.bf16.gmra.mrb[0].mxu0 %v404
        %v544 = vpop.f32.mrb[0].mxu0
        %v545 = vadd.f32 %v387, %v544
        %v546 = vpop.f32.mrb[0].mxu0
        %v547 = vpop.f32.mrb[0].mxu0
        %v548 = vpop.f32.mrb[0].mxu0
        %549 = vdwg.mxu0
        %550 = vst [vmem:[%s344] sm:$0x3] %v545
        %s551 = sand.u32 %s98, 1
        %s552 = scalar_lea.sflag [#allocation4], %s551
        %s553 = sand.u32 %s98, 1
        %s554 = smul.addr %s553, 2
        %s555 = scalar_lea.vmem [#allocation3], %s554
        // Predicated region
        $region74: #{image_embedding_forward.7} parent=68 // pred_check
          %p556 = pneg %p108
        $region75: #{image_embedding_forward.7} parent=68 // pred_check_branch
          %558 = sbr.rel (%p556) target = $region77
        $region76: #{image_embedding_forward.7} parent=68 // pred_region
          %s560 = ssub.s32 32, 32
          %561 = vsyncadd %s552, %s560
          %s562 = smul.addr %s17, 32
          %s563 = scalar_lea.hbm %s3, %s562
          %s565 = sshll.u32 %s555, 4
          %s566 = int_to_ptr.vmem [resolvable:$true] %s565
          %568 = dma.vmem_to_hbm [thread:$0]  %s566, 32, %s563, %s552
        $region77: #{image_embedding_forward.7} parent=68 // pred_fallthru
          _
      $region69: #{image_embedding_forward.7} parent=5 // pred_fallthru
        _
      %p569 = scmp.le.s32.totalorder 2, %s12
      // Predicated region
      $region78: #{image_embedding_forward.7} parent=5 // pred_check
        %p570 = pneg %p569
      $region79: #{image_embedding_forward.7} parent=5 // pred_check_branch
        %572 = sbr.rel (%p570) target = $region81
      $region80: #{image_embedding_forward.7} parent=5 // pred_region
        %s573 = ssub.s32 %s12, 2
        // Predicated region
        $region82: #{image_embedding_forward.7} parent=80 // pred_check
          %p574 = pneg %p114
        $region83: #{image_embedding_forward.7} parent=80 // pred_check_branch
          %576 = sbr.rel (%p574) target = $region85
        $region84: #{image_embedding_forward.7} parent=80 // pred_region
          %s577 = sand.u32 %s99, 1
          %s578 = scalar_lea.sflag [#allocation4], %s577
          %s579 = sand.u32 %s99, 1
          %s580 = smul.addr %s579, 2
          %s581 = scalar_lea.vmem [#allocation3], %s580
          %582 = dma.done %s578, 32
        $region85: #{image_embedding_forward.7} parent=80 // pred_fallthru
          _
      $region81: #{image_embedding_forward.7} parent=5 // pred_fallthru
        _
    $region6: #{image_embedding_forward.7} parent=1 // loop_footer
      %s16 = sadd.s32 1, %s12
    $region7: #{image_embedding_forward.7} parent=1 // loop_footer_branch
      %11 = sbr.rel target = $region3
    $region8: #{image_embedding_forward.7} parent=1 // loop_exit
      _
    %583 = vsyncpa [#allocation4], 1
    %s584 = scalar_lea.sflag [#allocation4], 1
    %585 = vsyncpa %s584, 1

</llo_original>
